<compile_context>
chip_gen: v6e
topology: v6e:2x2x1
jax: 0.10.0
libtpu: 0.0.40
codegen_flags: <defaults>
</compile_context>

<pallas_src>
import numpy as np
import jax
import jax.numpy as jnp
from jax.experimental import pallas as pl
from jax.experimental.pallas import tpu as pltpu

C = 4            # n_feat
H1 = W1 = 16     # full resolution
H2 = W2 = 8      # downsampled resolution
LANES1 = 2 * C * W1   # 128 lanes  (2 lane-packed samples, full res)
LANES2 = 2 * C * W2   # 64 lanes   (2 lane-packed samples, half res)


# ---------------------------------------------------------------------------
# Host-side helpers: conv -> block-banded matrices for the (rows, C*W) layout
# ---------------------------------------------------------------------------
def pack_conv_matrices(w, W):
    """w: (Cout, Cin, K, K) cross-correlation weights -> (K, Cin*W, Cout*W)."""
    w = np.asarray(w, np.float32)
    Cout, Cin, K, _ = w.shape
    P = K // 2
    M = np.zeros((K, Cin * W, Cout * W), np.float32)
    for t in range(K):
        for u in range(K):
            for xd in range(W):
                xs = xd + u - P
                if 0 <= xs < W:
                    for ci in range(Cin):
                        for co in range(Cout):
                            M[t, ci * W + xs, co * W + xd] += w[co, ci, t, u]
    return M


def transpose_conv_phase_weights(wT):
    """wT: (Cin, Cout, 6, 6) ConvTranspose2d(6, s=2, p=2) weights ->
    four 3x3 cross-correlation kernels, phase order (ry,rx)=(0,0),(0,1),(1,0),(1,1)."""
    wT = np.asarray(wT, np.float32)
    phases = []
    for ry in range(2):
        for rx in range(2):
            w3 = np.zeros((wT.shape[1], wT.shape[0], 3, 3), np.float32)
            for t in range(3):
                for u in range(3):
                    w3[:, :, t, u] = wT[:, :, ry + 4 - 2 * t, rx + 4 - 2 * u].T
            phases.append(w3)
    return phases


# ---------------------------------------------------------------------------
# The fused kernel: full MaskBranchDownUp forward for 2*P samples per step.
# Activation layout:  A[pair*16 + y, s*64 + c*16 + x]   (full res, 128 lanes)
#                     A[pair*8  + y, s*32 + c*8  + x]   (half res,  64 lanes)
# ---------------------------------------------------------------------------
def _mask_branch_kernel(x_ref, w16_ref, wdn_ref, w8_ref, wup_ref, w1x1_ref,
                        b16_ref, b8_ref, rdn_ref, rup_ref, o_ref):
    f32, bf16 = jnp.float32, jnp.bfloat16

    x = x_ref[...]                                   # (P*16, 128) f32
    rows1, lanes1 = x.shape
    rows2, lanes2 = rows1 // 2, lanes1 // 2

    # Per-sample row-boundary masks (pltpu.roll is circular over the slab).
    rid1 = jax.lax.broadcasted_iota(jnp.int32, (rows1, lanes1), 0) % H1
    m1_dn, m1_up = rid1 != 0, rid1 != H1 - 1
    rid2 = jax.lax.broadcasted_iota(jnp.int32, (rows2, lanes2), 0) % H2
    m2_dn, m2_up = rid2 != 0, rid2 != H2 - 1

    def shifted_bf16(a, m_dn, m_up):
        # a(y-1), a(y), a(y+1) with zero padding at each sample's first/last
        # row.  XLU rolls + VPU selects; no MXU shift matmuls.
        rows = a.shape[0]
        dn = jnp.where(m_dn, pltpu.roll(a, shift=1, axis=0), 0.0)         # a[y-1]
        up = jnp.where(m_up, pltpu.roll(a, shift=rows - 1, axis=0), 0.0)  # a[y+1]
        return dn.astype(bf16), a.astype(bf16), up.astype(bf16)

    def conv_full(a, w, brow):
        # Full-res 3x3 conv: ONE bf16 matmul, contraction depth 3*128.
        dn, mid, up = shifted_bf16(a, m1_dn, m1_up)
        out = jnp.dot(jnp.concatenate([dn, mid, up], axis=1), w,
                      preferred_element_type=f32)
        return out if brow is None else out + brow

    def conv_half(parts, w_ref, wi, brow):
        # Half-res 3x3 conv: three bf16 matmuls on the pre-shifted operands.
        dn, mid, up = parts
        out = (jnp.dot(dn, w_ref[wi], preferred_element_type=f32)
               + jnp.dot(mid, w_ref[wi + 1], preferred_element_type=f32)
               + jnp.dot(up, w_ref[wi + 2], preferred_element_type=f32))
        return out if brow is None else out + brow

    def res_block_full(a, wi, bi):
        h = jnp.maximum(conv_full(a, w16_ref[wi], b16_ref[bi]), 0.0)
        return conv_full(h, w16_ref[wi + 1], b16_ref[bi + 1]) + a

    def res_block_half(a, wi, bi):
        h = jnp.maximum(
            conv_half(shifted_bf16(a, m2_dn, m2_up), w8_ref, wi, b8_ref[bi]),
            0.0)
        return conv_half(shifted_bf16(h, m2_dn, m2_up), w8_ref, wi + 3,
                         b8_ref[bi + 1]) + a

    # MB_RB1
    x_rb1 = res_block_full(x, 0, 0)

    # MB_Down (3x3, stride 2, pad 1): even-column selection folded into wdn,
    # even-row selection is one tiny 0/1 matmul.
    d = conv_full(x_rb1, wdn_ref[...], None)                        # (rows1, 64)
    x_dn = jnp.dot(rdn_ref[...], d, preferred_element_type=f32) + b8_ref[4]

    # MB_RB2: two residual blocks at half resolution
    h = res_block_half(x_dn, 0, 0)
    x_rb2 = res_block_half(h, 6, 2)

    # MB_Up (ConvTranspose2d k=6 s=2 p=2): 4-phase 3x3 decomposition; the
    # column scatter is folded into wup, row interleave is two 0/1 matmuls.
    parts2 = shifted_bf16(x_rb2, m2_dn, m2_up)
    row0 = conv_half(parts2, wup_ref, 0, None)                      # (rows2, 128)
    row1 = conv_half(parts2, wup_ref, 3, None)
    up = (jnp.dot(rup_ref[0], row0, preferred_element_type=f32)
          + jnp.dot(rup_ref[1], row1, preferred_element_type=f32)
          + b16_ref[4])

    # residual join + MB_RB3
    x_rb3 = res_block_full(x_rb1 + up, 2, 2)

    # MB_1x1conv + sigmoid (kept f32; exp on EUP, approx reciprocal on EUP)
    pre = jnp.dot(x_rb3, w1x1_ref[...], preferred_element_type=f32) + b16_ref[5]
    o_ref[...] = pl.reciprocal(1.0 + jnp.exp(-pre), approx=True)


# ---------------------------------------------------------------------------
# Host-side weight packing
# ---------------------------------------------------------------------------
def pack_params(params, pairs_per_step=2):
    """Pack PyTorch-layout weights into the kernel's matmul form."""
    P = pairs_per_step

    def blockdiag2(m):                     # 2 lane-packed samples share weights
        K, N = m.shape
        out = np.zeros((2 * K, 2 * N), np.float32)
        out[:K, :N] = m
        out[K:, N:] = m
        return out

    def cat3(m3):                          # (3,K,N) -> (3*2K, 2N): [y-1|y|y+1]
        return np.concatenate([blockdiag2(m3[t]) for t in range(3)], axis=0)

    def split3(m3):                        # (3,K,N) -> (3, 2K, 2N)
        return np.stack([blockdiag2(m3[t]) for t in range(3)])

    def brow(b, W):                        # per-channel bias -> lane row (x2 samples)
        r = np.repeat(np.asarray(b, np.float32), W)[None, :]
        return np.tile(r, (1, 2))

    # full-res 3x3 convs (single-matmul "concat" form): RB1.c1, RB1.c2, RB3.c1, RB3.c2
    w16 = np.stack([
        cat3(pack_conv_matrices(params["RB1"][0], W1)),
        cat3(pack_conv_matrices(params["RB1"][2], W1)),
        cat3(pack_conv_matrices(params["RB3"][0], W1)),
        cat3(pack_conv_matrices(params["RB3"][2], W1)),
    ])                                                        # (4, 384, 128)

    # Down conv: fold even-column selection into the weights
    cdn = np.zeros((C * W1, C * W2), np.float32)
    for ci in range(C):
        for xo in range(W2):
            cdn[ci * W1 + 2 * xo, ci * W2 + xo] = 1.0
    mdn = np.einsum("tkn,nm->tkm",
                    pack_conv_matrices(params["Down"][0], W1), cdn)
    wdn = cat3(mdn)                                           # (384, 64)

    # half-res 3x3 convs (3-matmul form): RB2a.c1, RB2a.c2, RB2b.c1, RB2b.c2
    w8 = np.concatenate([
        split3(pack_conv_matrices(params["RB2a"][0], W2)),
        split3(pack_conv_matrices(params["RB2a"][2], W2)),
        split3(pack_conv_matrices(params["RB2b"][0], W2)),
        split3(pack_conv_matrices(params["RB2b"][2], W2)),
    ], axis=0)                                                # (12, 64, 64)

    # Up: 4-phase 3x3 decomposition, column scatter folded in and rx-summed
    # (the two rx phases write disjoint output columns, so summing the folded
    # weight matrices is exact).
    cup = np.zeros((2, C * W2, C * W1), np.float32)
    for rx in range(2):
        for ci in range(C):
            for xh in range(W2):
                cup[rx, ci * W2 + xh, ci * W1 + 2 * xh + rx] = 1.0
    phases = transpose_conv_phase_weights(params["Up"][0])
    wup = []
    for ry in range(2):
        m = np.zeros((3, C * W2, C * W1), np.float32)
        for rx in range(2):
            m += np.einsum("tkn,nm->tkm",
                           pack_conv_matrices(phases[2 * ry + rx], W2), cup[rx])
        wup.append(split3(m))                                 # (3, 64, 128)
    wup = np.concatenate(wup, axis=0)                         # (6, 64, 128)

    # 1x1 conv
    w1x1 = blockdiag2(pack_conv_matrices(params["C1x1"][0], W1)[0])  # (128, 128)

    # biases; order: RB1.c1, RB1.c2, RB3.c1, RB3.c2, Up, 1x1 / RB2*, Down
    b16 = np.stack([brow(params["RB1"][1], W1), brow(params["RB1"][3], W1),
                    brow(params["RB3"][1], W1), brow(params["RB3"][3], W1),
                    brow(params["Up"][1], W1), brow(params["C1x1"][1], W1)])
    b8 = np.stack([brow(params["RB2a"][1], W2), brow(params["RB2a"][3], W2),
                   brow(params["RB2b"][1], W2), brow(params["RB2b"][3], W2),
                   brow(params["Down"][1], W2)])

    # per-pair 0/1 row select (Down) / row scatter (Up), block-diag over P pairs
    rdn1 = np.zeros((H2, H1), np.float32)
    rdn1[np.arange(H2), 2 * np.arange(H2)] = 1.0
    rdn = np.kron(np.eye(P, dtype=np.float32), rdn1)          # (P*8, P*16)
    rup1 = np.zeros((2, H1, H2), np.float32)
    for ry in range(2):
        rup1[ry, 2 * np.arange(H2) + ry, np.arange(H2)] = 1.0
    rup = np.stack([np.kron(np.eye(P, dtype=np.float32), rup1[ry])
                    for ry in range(2)])                      # (2, P*16, P*8)

    bf = jnp.bfloat16
    return (jnp.asarray(w16, dtype=bf), jnp.asarray(wdn, dtype=bf),
            jnp.asarray(w8, dtype=bf), jnp.asarray(wup, dtype=bf),
            jnp.asarray(w1x1), jnp.asarray(b16), jnp.asarray(b8),
            jnp.asarray(rdn), jnp.asarray(rup))


# ---------------------------------------------------------------------------
# Public wrapper (NCHW in / NCHW out)
# ---------------------------------------------------------------------------
def mask_branch_down_up(x_nchw, packed):
    w16, wdn, w8, wup, w1x1, b16, b8, rdn, rup = packed
    P = rdn.shape[0] // H2                  # lane-packed pairs per grid step
    spp = 2 * P                             # samples per grid step
    B = x_nchw.shape[0]
    G = (B + spp - 1) // spp
    Bp = G * spp
    if Bp != B:                             # pad batch to a whole number of steps
        pad = jnp.zeros((Bp - B,) + x_nchw.shape[1:], x_nchw.dtype)
        x_nchw = jnp.concatenate([x_nchw, pad], axis=0)

    # NCHW -> lane-packed pairs (128 lanes), pairs stacked on sublanes per step
    xl = jnp.transpose(x_nchw, (0, 2, 1, 3)).reshape(Bp, H1, C * W1)
    xl = xl.reshape(Bp // 2, 2, H1, C * W1).transpose(0, 2, 1, 3)
    xl = xl.reshape(G * P * H1, LANES1)

    rows1 = P * H1

    def const_spec(a):
        zeros = (0,) * a.ndim
        return pl.BlockSpec(a.shape, lambda g, _z=zeros: _z)

    out = pl.pallas_call(
        _mask_branch_kernel,
        out_shape=jax.ShapeDtypeStruct((G * rows1, LANES1), jnp.float32),
        grid=(G,),
        in_specs=[pl.BlockSpec((rows1, LANES1), lambda g: (g, 0))]
                 + [const_spec(a) for a in packed],
        out_specs=pl.BlockSpec((rows1, LANES1), lambda g: (g, 0)),
        compiler_params=pltpu.CompilerParams(
            dimension_semantics=("parallel",)),
    )(xl, *packed)

    # unpack: (G*P*16, 128) -> NCHW, drop batch padding
    out = out.reshape(Bp // 2, H1, 2, C * W1).transpose(0, 2, 1, 3)
    out = out.reshape(Bp, H1, C, W1).transpose(0, 2, 1, 3)
    return out[:B]


# ---------------------------------------------------------------------------
# Pure-JAX reference (lax convs) for in-script correctness verification
# ---------------------------------------------------------------------------
def _conv_ref(x, w, b, stride=1, padding=0):
    out = jax.lax.conv_general_dilated(
        x, w, window_strides=(stride, stride),
        padding=[(padding, padding)] * 2,
        dimension_numbers=("NCHW", "OIHW", "NCHW"))
    return out + b.reshape(1, -1, 1, 1)


def _conv_transpose_ref(x, wT, b, stride=2, padding=2):
    k = wT.shape[-1]
    w = jnp.transpose(wT, (1, 0, 2, 3))[:, :, ::-1, ::-1]
    out = jax.lax.conv_general_dilated(
        x, w, window_strides=(1, 1),
        padding=[(k - 1 - padding, k - 1 - padding)] * 2,
        lhs_dilation=(stride, stride),
        dimension_numbers=("NCHW", "OIHW", "NCHW"))
    return out + b.reshape(1, -1, 1, 1)


def _res_block_ref(x, w1, b1, w2, b2):
    h = jnp.maximum(_conv_ref(x, w1, b1, padding=1), 0.0)
    return _conv_ref(h, w2, b2, padding=1) + x


def mask_branch_ref(x, params):
    x_rb1 = _res_block_ref(x, *params["RB1"])
    x_dn = _conv_ref(x_rb1, *params["Down"], stride=2, padding=1)
    h = _res_block_ref(x_dn, *params["RB2a"])
    x_rb2 = _res_block_ref(h, *params["RB2b"])
    x_up = _conv_transpose_ref(x_rb2, *params["Up"])
    x_rb3 = _res_block_ref(x_rb1 + x_up, *params["RB3"])
    w, b = params["C1x1"]
    pre = _conv_ref(x_rb3, w, b, padding=0)
    return 1.0 / (1.0 + jnp.exp(-pre))


# ---------------------------------------------------------------------------
# Deterministic parameter init (PyTorch layouts)
# ---------------------------------------------------------------------------
def init_params(key, n_feat=C, ksize=3):
    def conv_wb(k, cout, cin, kh, kw):
        k1, k2 = jax.random.split(k)
        w = jax.random.normal(k1, (cout, cin, kh, kw), jnp.float32) * 0.1
        b = jax.random.normal(k2, (cout,), jnp.float32) * 0.1
        return w, b

    keys = jax.random.split(key, 16)
    p = {}
    for name, kk in (("RB1", 0), ("RB2a", 2), ("RB2b", 4), ("RB3", 6)):
        w1, b1 = conv_wb(keys[kk], n_feat, n_feat, ksize, ksize)
        w2, b2 = conv_wb(keys[kk + 1], n_feat, n_feat, ksize, ksize)
        p[name] = (w1, b1, w2, b2)
    p["Down"] = conv_wb(keys[8], n_feat, n_feat, 3, 3)
    k1, k2 = jax.random.split(keys[9])
    wt = jax.random.normal(k1, (n_feat, n_feat, 6, 6), jnp.float32) * 0.1
    bt = jax.random.normal(k2, (n_feat,), jnp.float32) * 0.1
    p["Up"] = (wt, bt)
    p["C1x1"] = conv_wb(keys[10], n_feat, n_feat, 1, 1)
    return p


if __name__ == "__main__":
    key = jax.random.PRNGKey(0)
    kx, kp = jax.random.split(key)

    B = 8                      # 4 samples per grid step -> grid=(2,), both TCs busy
    x = jax.random.normal(kx, (B, C, H1, W1), jnp.float32)
    params = init_params(kp)
    packed = pack_params(params, pairs_per_step=2)

    fwd = jax.jit(mask_branch_down_up)
    out = jax.block_until_ready(fwd(x, packed))

    assert out.shape == (B, C, H1, W1), out.shape
    assert bool(jnp.all(jnp.isfinite(out)))
    # sigmoid range (small slack for the approx-reciprocal EUP path)
    assert bool(jnp.all((out > -1e-3) & (out < 1.0 + 1e-3)))

    # verify against a dense lax.conv reference of the same module
    ref = jax.jit(mask_branch_ref)(x, params)
    err = float(jnp.max(jnp.abs(out - ref)))
    # bf16 MXU operands through the 11-conv chain + approx-reciprocal sigmoid
    assert err < 3e-2, f"kernel/reference mismatch: max|diff|={err}"

    print("KERNEL_OK")
</pallas_src>

<mosaic_0001>
module attributes {stable_mosaic.version = 11 : i64} {
  func.func @_mask_branch_kernel(%arg0: i32, %arg1: memref<32x128xf32, #tpu.memory_space<vmem>>, %arg2: memref<4x384x128xbf16, #tpu.memory_space<vmem>>, %arg3: memref<384x64xbf16, #tpu.memory_space<vmem>>, %arg4: memref<12x64x64xbf16, #tpu.memory_space<vmem>>, %arg5: memref<6x64x128xbf16, #tpu.memory_space<vmem>>, %arg6: memref<128x128xf32, #tpu.memory_space<vmem>>, %arg7: memref<6x1x128xf32, #tpu.memory_space<vmem>>, %arg8: memref<5x1x64xf32, #tpu.memory_space<vmem>>, %arg9: memref<16x32xf32, #tpu.memory_space<vmem>>, %arg10: memref<2x32x16xf32, #tpu.memory_space<vmem>>, %arg11: memref<32x128xf32, #tpu.memory_space<vmem>>) attributes {dimension_semantics = [#tpu.dimension_semantics<parallel>], iteration_bounds = array<i64: 2>, scalar_prefetch = 0 : i64, scratch_operands = 0 : i64, tpu.core_type = #tpu.core_type<tc>, window_params = [{transform_indices = @transform_0, window_bounds = array<i64: 32, 128>}, {pipeline_mode = #tpu.pipeline_mode<synchronous>, transform_indices = @transform_1, window_bounds = array<i64: 4, 384, 128>}, {pipeline_mode = #tpu.pipeline_mode<synchronous>, transform_indices = @transform_2, window_bounds = array<i64: 384, 64>}, {pipeline_mode = #tpu.pipeline_mode<synchronous>, transform_indices = @transform_3, window_bounds = array<i64: 12, 64, 64>}, {pipeline_mode = #tpu.pipeline_mode<synchronous>, transform_indices = @transform_4, window_bounds = array<i64: 6, 64, 128>}, {pipeline_mode = #tpu.pipeline_mode<synchronous>, transform_indices = @transform_5, window_bounds = array<i64: 128, 128>}, {pipeline_mode = #tpu.pipeline_mode<synchronous>, transform_indices = @transform_6, window_bounds = array<i64: 6, 1, 128>}, {pipeline_mode = #tpu.pipeline_mode<synchronous>, transform_indices = @transform_7, window_bounds = array<i64: 5, 1, 64>}, {pipeline_mode = #tpu.pipeline_mode<synchronous>, transform_indices = @transform_8, window_bounds = array<i64: 16, 32>}, {pipeline_mode = #tpu.pipeline_mode<synchronous>, transform_indices = @transform_9, window_bounds = array<i64: 2, 32, 16>}, {transform_indices = @transform_10, window_bounds = array<i64: 32, 128>}]} {
    %c0 = arith.constant 0 : index
    %c0_0 = arith.constant 0 : index
    %0 = vector.load %arg1[%c0, %c0_0] : memref<32x128xf32, #tpu.memory_space<vmem>>, vector<32x128xf32>
    %1 = tpu.iota {dimensions = array<i32: 0>} : vector<32x128xi32>
    %c16_i32 = arith.constant 16 : i32
    %c0_i32 = arith.constant 0 : i32
    %2 = arith.cmpi eq, %c16_i32, %c0_i32 : i32
    %c1_i32 = arith.constant 1 : i32
    %3 = arith.select %2, %c1_i32, %c16_i32 : i32
    %4 = vector.broadcast %3 : i32 to vector<32x128xi32>
    %5 = arith.remsi %1, %4 : vector<32x128xi32>
    %c0_i32_1 = arith.constant 0 : i32
    %6 = vector.broadcast %c0_i32_1 : i32 to vector<32x128xi32>
    %7 = arith.cmpi ne, %5, %6 : vector<32x128xi32>
    %c0_i32_2 = arith.constant 0 : i32
    %8 = vector.broadcast %c0_i32_2 : i32 to vector<32x128xi32>
    %9 = arith.cmpi slt, %5, %8 : vector<32x128xi32>
    %c0_i32_3 = arith.constant 0 : i32
    %10 = arith.cmpi slt, %3, %c0_i32_3 : i32
    %11 = vector.broadcast %10 : i1 to vector<32x128xi1>
    %12 = vector.broadcast %11 : vector<32x128xi1> to vector<32x128xi1>
    %13 = arith.xori %9, %12 : vector<32x128xi1>
    %14 = arith.andi %13, %7 : vector<32x128xi1>
    %15 = vector.broadcast %3 : i32 to vector<32x128xi32>
    %16 = arith.addi %5, %15 : vector<32x128xi32>
    %17 = arith.select %14, %16, %5 : vector<32x128xi1>, vector<32x128xi32>
    %c0_i32_4 = arith.constant 0 : i32
    %18 = vector.broadcast %c0_i32_4 : i32 to vector<32x128xi32>
    %19 = arith.cmpi ne, %17, %18 : vector<32x128xi32>
    %c15_i32 = arith.constant 15 : i32
    %20 = vector.broadcast %c15_i32 : i32 to vector<32x128xi32>
    %21 = arith.cmpi ne, %17, %20 : vector<32x128xi32>
    %22 = tpu.iota {dimensions = array<i32: 0>} : vector<16x64xi32>
    %c8_i32 = arith.constant 8 : i32
    %c0_i32_5 = arith.constant 0 : i32
    %23 = arith.cmpi eq, %c8_i32, %c0_i32_5 : i32
    %c1_i32_6 = arith.constant 1 : i32
    %24 = arith.select %23, %c1_i32_6, %c8_i32 : i32
    %25 = vector.broadcast %24 : i32 to vector<16x64xi32>
    %26 = arith.remsi %22, %25 : vector<16x64xi32>
    %c0_i32_7 = arith.constant 0 : i32
    %27 = vector.broadcast %c0_i32_7 : i32 to vector<16x64xi32>
    %28 = arith.cmpi ne, %26, %27 : vector<16x64xi32>
    %c0_i32_8 = arith.constant 0 : i32
    %29 = vector.broadcast %c0_i32_8 : i32 to vector<16x64xi32>
    %30 = arith.cmpi slt, %26, %29 : vector<16x64xi32>
    %c0_i32_9 = arith.constant 0 : i32
    %31 = arith.cmpi slt, %24, %c0_i32_9 : i32
    %32 = vector.broadcast %31 : i1 to vector<16x64xi1>
    %33 = vector.broadcast %32 : vector<16x64xi1> to vector<16x64xi1>
    %34 = arith.xori %30, %33 : vector<16x64xi1>
    %35 = arith.andi %34, %28 : vector<16x64xi1>
    %36 = vector.broadcast %24 : i32 to vector<16x64xi32>
    %37 = arith.addi %26, %36 : vector<16x64xi32>
    %38 = arith.select %35, %37, %26 : vector<16x64xi1>, vector<16x64xi32>
    %c0_i32_10 = arith.constant 0 : i32
    %39 = vector.broadcast %c0_i32_10 : i32 to vector<16x64xi32>
    %40 = arith.cmpi ne, %38, %39 : vector<16x64xi32>
    %c7_i32 = arith.constant 7 : i32
    %41 = vector.broadcast %c7_i32 : i32 to vector<16x64xi32>
    %42 = arith.cmpi ne, %38, %41 : vector<16x64xi32>
    %c0_11 = arith.constant 0 : index
    %c0_12 = arith.constant 0 : index
    %c0_13 = arith.constant 0 : index
    %43 = vector.load %arg2[%c0_11, %c0_12, %c0_13] : memref<4x384x128xbf16, #tpu.memory_space<vmem>>, vector<1x384x128xbf16>
    %44 = vector.shape_cast %43 : vector<1x384x128xbf16> to vector<384x128xbf16>
    %c0_14 = arith.constant 0 : index
    %c0_15 = arith.constant 0 : index
    %c0_16 = arith.constant 0 : index
    %45 = vector.load %arg7[%c0_14, %c0_15, %c0_16] : memref<6x1x128xf32, #tpu.memory_space<vmem>>, vector<1x1x128xf32>
    %46 = vector.shape_cast %45 : vector<1x1x128xf32> to vector<1x128xf32>
    %c1_i32_17 = arith.constant 1 : i32
    %47 = tpu.dynamic_rotate %0 by %c1_i32_17 dim 0 : vector<32x128xf32>, i32 -> vector<32x128xf32>
    %cst = arith.constant 0.000000e+00 : f32
    %48 = vector.broadcast %cst : f32 to vector<32x128xf32>
    %49 = arith.select %19, %47, %48 : vector<32x128xi1>, vector<32x128xf32>
    %c31_i32 = arith.constant 31 : i32
    %50 = tpu.dynamic_rotate %0 by %c31_i32 dim 0 : vector<32x128xf32>, i32 -> vector<32x128xf32>
    %cst_18 = arith.constant 0.000000e+00 : f32
    %51 = vector.broadcast %cst_18 : f32 to vector<32x128xf32>
    %52 = arith.select %21, %50, %51 : vector<32x128xi1>, vector<32x128xf32>
    %53 = arith.truncf %49 : vector<32x128xf32> to vector<32x128xbf16>
    %54 = arith.truncf %0 : vector<32x128xf32> to vector<32x128xbf16>
    %55 = arith.truncf %52 : vector<32x128xf32> to vector<32x128xbf16>
    %56 = tpu.concatenate %53, %54, %55 in 1 : vector<32x128xbf16>, vector<32x128xbf16>, vector<32x128xbf16> -> vector<32x384xbf16>
    %cst_19 = arith.constant dense<0.000000e+00> : vector<32x128xf32>
    %57 = tpu.matmul %56, %44, %cst_19 {dimension_numbers = #tpu.dot_dimension_numbers<[1], [0], [0], [1], [0, 0, 1, 1], [], []>} : vector<32x384xbf16>, vector<384x128xbf16>, vector<32x128xf32> -> vector<32x128xf32>
    %58 = vector.broadcast %46 : vector<1x128xf32> to vector<32x128xf32>
    %59 = arith.addf %57, %58 : vector<32x128xf32>
    %cst_20 = arith.constant 0.000000e+00 : f32
    %60 = vector.broadcast %cst_20 : f32 to vector<32x128xf32>
    %61 = arith.maximumf %59, %60 : vector<32x128xf32>
    %c1 = arith.constant 1 : index
    %c0_21 = arith.constant 0 : index
    %c0_22 = arith.constant 0 : index
    %62 = vector.load %arg2[%c1, %c0_21, %c0_22] : memref<4x384x128xbf16, #tpu.memory_space<vmem>>, vector<1x384x128xbf16>
    %63 = vector.shape_cast %62 : vector<1x384x128xbf16> to vector<384x128xbf16>
    %c1_23 = arith.constant 1 : index
    %c0_24 = arith.constant 0 : index
    %c0_25 = arith.constant 0 : index
    %64 = vector.load %arg7[%c1_23, %c0_24, %c0_25] : memref<6x1x128xf32, #tpu.memory_space<vmem>>, vector<1x1x128xf32>
    %65 = vector.shape_cast %64 : vector<1x1x128xf32> to vector<1x128xf32>
    %c1_i32_26 = arith.constant 1 : i32
    %66 = tpu.dynamic_rotate %61 by %c1_i32_26 dim 0 : vector<32x128xf32>, i32 -> vector<32x128xf32>
    %cst_27 = arith.constant 0.000000e+00 : f32
    %67 = vector.broadcast %cst_27 : f32 to vector<32x128xf32>
    %68 = arith.select %19, %66, %67 : vector<32x128xi1>, vector<32x128xf32>
    %c31_i32_28 = arith.constant 31 : i32
    %69 = tpu.dynamic_rotate %61 by %c31_i32_28 dim 0 : vector<32x128xf32>, i32 -> vector<32x128xf32>
    %cst_29 = arith.constant 0.000000e+00 : f32
    %70 = vector.broadcast %cst_29 : f32 to vector<32x128xf32>
    %71 = arith.select %21, %69, %70 : vector<32x128xi1>, vector<32x128xf32>
    %72 = arith.truncf %68 : vector<32x128xf32> to vector<32x128xbf16>
    %73 = arith.truncf %61 : vector<32x128xf32> to vector<32x128xbf16>
    %74 = arith.truncf %71 : vector<32x128xf32> to vector<32x128xbf16>
    %75 = tpu.concatenate %72, %73, %74 in 1 : vector<32x128xbf16>, vector<32x128xbf16>, vector<32x128xbf16> -> vector<32x384xbf16>
    %cst_30 = arith.constant dense<0.000000e+00> : vector<32x128xf32>
    %76 = tpu.matmul %75, %63, %cst_30 {dimension_numbers = #tpu.dot_dimension_numbers<[1], [0], [0], [1], [0, 0, 1, 1], [], []>} : vector<32x384xbf16>, vector<384x128xbf16>, vector<32x128xf32> -> vector<32x128xf32>
    %77 = vector.broadcast %65 : vector<1x128xf32> to vector<32x128xf32>
    %78 = arith.addf %76, %77 : vector<32x128xf32>
    %79 = arith.addf %78, %0 : vector<32x128xf32>
    %c0_31 = arith.constant 0 : index
    %c0_32 = arith.constant 0 : index
    %80 = vector.load %arg3[%c0_31, %c0_32] : memref<384x64xbf16, #tpu.memory_space<vmem>>, vector<384x64xbf16>
    %c1_i32_33 = arith.constant 1 : i32
    %81 = tpu.dynamic_rotate %79 by %c1_i32_33 dim 0 : vector<32x128xf32>, i32 -> vector<32x128xf32>
    %cst_34 = arith.constant 0.000000e+00 : f32
    %82 = vector.broadcast %cst_34 : f32 to vector<32x128xf32>
    %83 = arith.select %19, %81, %82 : vector<32x128xi1>, vector<32x128xf32>
    %c31_i32_35 = arith.constant 31 : i32
    %84 = tpu.dynamic_rotate %79 by %c31_i32_35 dim 0 : vector<32x128xf32>, i32 -> vector<32x128xf32>
    %cst_36 = arith.constant 0.000000e+00 : f32
    %85 = vector.broadcast %cst_36 : f32 to vector<32x128xf32>
    %86 = arith.select %21, %84, %85 : vector<32x128xi1>, vector<32x128xf32>
    %87 = arith.truncf %83 : vector<32x128xf32> to vector<32x128xbf16>
    %88 = arith.truncf %79 : vector<32x128xf32> to vector<32x128xbf16>
    %89 = arith.truncf %86 : vector<32x128xf32> to vector<32x128xbf16>
    %90 = tpu.concatenate %87, %88, %89 in 1 : vector<32x128xbf16>, vector<32x128xbf16>, vector<32x128xbf16> -> vector<32x384xbf16>
    %cst_37 = arith.constant dense<0.000000e+00> : vector<32x64xf32>
    %91 = tpu.matmul %90, %80, %cst_37 {dimension_numbers = #tpu.dot_dimension_numbers<[1], [0], [0], [1], [0, 0, 1, 1], [], []>} : vector<32x384xbf16>, vector<384x64xbf16>, vector<32x64xf32> -> vector<32x64xf32>
    %c0_38 = arith.constant 0 : index
    %c0_39 = arith.constant 0 : index
    %92 = vector.load %arg9[%c0_38, %c0_39] : memref<16x32xf32, #tpu.memory_space<vmem>>, vector<16x32xf32>
    %cst_40 = arith.constant dense<0.000000e+00> : vector<16x64xf32>
    %93 = tpu.matmul %92, %91, %cst_40 {dimension_numbers = #tpu.dot_dimension_numbers<[1], [0], [0], [1], [0, 0, 1, 1], [], []>} : vector<16x32xf32>, vector<32x64xf32>, vector<16x64xf32> -> vector<16x64xf32>
    %c4 = arith.constant 4 : index
    %c0_41 = arith.constant 0 : index
    %c0_42 = arith.constant 0 : index
    %94 = vector.load %arg8[%c4, %c0_41, %c0_42] : memref<5x1x64xf32, #tpu.memory_space<vmem>>, vector<1x1x64xf32>
    %95 = vector.shape_cast %94 : vector<1x1x64xf32> to vector<1x64xf32>
    %96 = vector.broadcast %95 : vector<1x64xf32> to vector<16x64xf32>
    %97 = arith.addf %93, %96 : vector<16x64xf32>
    %c1_i32_43 = arith.constant 1 : i32
    %98 = tpu.dynamic_rotate %97 by %c1_i32_43 dim 0 : vector<16x64xf32>, i32 -> vector<16x64xf32>
    %cst_44 = arith.constant 0.000000e+00 : f32
    %99 = vector.broadcast %cst_44 : f32 to vector<16x64xf32>
    %100 = arith.select %40, %98, %99 : vector<16x64xi1>, vector<16x64xf32>
    %c15_i32_45 = arith.constant 15 : i32
    %101 = tpu.dynamic_rotate %97 by %c15_i32_45 dim 0 : vector<16x64xf32>, i32 -> vector<16x64xf32>
    %cst_46 = arith.constant 0.000000e+00 : f32
    %102 = vector.broadcast %cst_46 : f32 to vector<16x64xf32>
    %103 = arith.select %42, %101, %102 : vector<16x64xi1>, vector<16x64xf32>
    %104 = arith.truncf %100 : vector<16x64xf32> to vector<16x64xbf16>
    %105 = arith.truncf %97 : vector<16x64xf32> to vector<16x64xbf16>
    %106 = arith.truncf %103 : vector<16x64xf32> to vector<16x64xbf16>
    %c0_47 = arith.constant 0 : index
    %c0_48 = arith.constant 0 : index
    %c0_49 = arith.constant 0 : index
    %107 = vector.load %arg8[%c0_47, %c0_48, %c0_49] : memref<5x1x64xf32, #tpu.memory_space<vmem>>, vector<1x1x64xf32>
    %108 = vector.shape_cast %107 : vector<1x1x64xf32> to vector<1x64xf32>
    %c0_50 = arith.constant 0 : index
    %c0_51 = arith.constant 0 : index
    %c0_52 = arith.constant 0 : index
    %109 = vector.load %arg4[%c0_50, %c0_51, %c0_52] : memref<12x64x64xbf16, #tpu.memory_space<vmem>>, vector<1x64x64xbf16>
    %110 = vector.shape_cast %109 : vector<1x64x64xbf16> to vector<64x64xbf16>
    %cst_53 = arith.constant dense<0.000000e+00> : vector<16x64xf32>
    %111 = tpu.matmul %104, %110, %cst_53 {dimension_numbers = #tpu.dot_dimension_numbers<[1], [0], [0], [1], [0, 0, 1, 1], [], []>} : vector<16x64xbf16>, vector<64x64xbf16>, vector<16x64xf32> -> vector<16x64xf32>
    %c1_54 = arith.constant 1 : index
    %c0_55 = arith.constant 0 : index
    %c0_56 = arith.constant 0 : index
    %112 = vector.load %arg4[%c1_54, %c0_55, %c0_56] : memref<12x64x64xbf16, #tpu.memory_space<vmem>>, vector<1x64x64xbf16>
    %113 = vector.shape_cast %112 : vector<1x64x64xbf16> to vector<64x64xbf16>
    %cst_57 = arith.constant dense<0.000000e+00> : vector<16x64xf32>
    %114 = tpu.matmul %105, %113, %cst_57 {dimension_numbers = #tpu.dot_dimension_numbers<[1], [0], [0], [1], [0, 0, 1, 1], [], []>} : vector<16x64xbf16>, vector<64x64xbf16>, vector<16x64xf32> -> vector<16x64xf32>
    %115 = arith.addf %111, %114 : vector<16x64xf32>
    %c2 = arith.constant 2 : index
    %c0_58 = arith.constant 0 : index
    %c0_59 = arith.constant 0 : index
    %116 = vector.load %arg4[%c2, %c0_58, %c0_59] : memref<12x64x64xbf16, #tpu.memory_space<vmem>>, vector<1x64x64xbf16>
    %117 = vector.shape_cast %116 : vector<1x64x64xbf16> to vector<64x64xbf16>
    %cst_60 = arith.constant dense<0.000000e+00> : vector<16x64xf32>
    %118 = tpu.matmul %106, %117, %cst_60 {dimension_numbers = #tpu.dot_dimension_numbers<[1], [0], [0], [1], [0, 0, 1, 1], [], []>} : vector<16x64xbf16>, vector<64x64xbf16>, vector<16x64xf32> -> vector<16x64xf32>
    %119 = arith.addf %115, %118 : vector<16x64xf32>
    %120 = vector.broadcast %108 : vector<1x64xf32> to vector<16x64xf32>
    %121 = arith.addf %119, %120 : vector<16x64xf32>
    %cst_61 = arith.constant 0.000000e+00 : f32
    %122 = vector.broadcast %cst_61 : f32 to vector<16x64xf32>
    %123 = arith.maximumf %121, %122 : vector<16x64xf32>
    %c1_i32_62 = arith.constant 1 : i32
    %124 = tpu.dynamic_rotate %123 by %c1_i32_62 dim 0 : vector<16x64xf32>, i32 -> vector<16x64xf32>
    %cst_63 = arith.constant 0.000000e+00 : f32
    %125 = vector.broadcast %cst_63 : f32 to vector<16x64xf32>
    %126 = arith.select %40, %124, %125 : vector<16x64xi1>, vector<16x64xf32>
    %c15_i32_64 = arith.constant 15 : i32
    %127 = tpu.dynamic_rotate %123 by %c15_i32_64 dim 0 : vector<16x64xf32>, i32 -> vector<16x64xf32>
    %cst_65 = arith.constant 0.000000e+00 : f32
    %128 = vector.broadcast %cst_65 : f32 to vector<16x64xf32>
    %129 = arith.select %42, %127, %128 : vector<16x64xi1>, vector<16x64xf32>
    %130 = arith.truncf %126 : vector<16x64xf32> to vector<16x64xbf16>
    %131 = arith.truncf %123 : vector<16x64xf32> to vector<16x64xbf16>
    %132 = arith.truncf %129 : vector<16x64xf32> to vector<16x64xbf16>
    %c1_66 = arith.constant 1 : index
    %c0_67 = arith.constant 0 : index
    %c0_68 = arith.constant 0 : index
    %133 = vector.load %arg8[%c1_66, %c0_67, %c0_68] : memref<5x1x64xf32, #tpu.memory_space<vmem>>, vector<1x1x64xf32>
    %134 = vector.shape_cast %133 : vector<1x1x64xf32> to vector<1x64xf32>
    %c3 = arith.constant 3 : index
    %c0_69 = arith.constant 0 : index
    %c0_70 = arith.constant 0 : index
    %135 = vector.load %arg4[%c3, %c0_69, %c0_70] : memref<12x64x64xbf16, #tpu.memory_space<vmem>>, vector<1x64x64xbf16>
    %136 = vector.shape_cast %135 : vector<1x64x64xbf16> to vector<64x64xbf16>
    %cst_71 = arith.constant dense<0.000000e+00> : vector<16x64xf32>
    %137 = tpu.matmul %130, %136, %cst_71 {dimension_numbers = #tpu.dot_dimension_numbers<[1], [0], [0], [1], [0, 0, 1, 1], [], []>} : vector<16x64xbf16>, vector<64x64xbf16>, vector<16x64xf32> -> vector<16x64xf32>
    %c4_72 = arith.constant 4 : index
    %c0_73 = arith.constant 0 : index
    %c0_74 = arith.constant 0 : index
    %138 = vector.load %arg4[%c4_72, %c0_73, %c0_74] : memref<12x64x64xbf16, #tpu.memory_space<vmem>>, vector<1x64x64xbf16>
    %139 = vector.shape_cast %138 : vector<1x64x64xbf16> to vector<64x64xbf16>
    %cst_75 = arith.constant dense<0.000000e+00> : vector<16x64xf32>
    %140 = tpu.matmul %131, %139, %cst_75 {dimension_numbers = #tpu.dot_dimension_numbers<[1], [0], [0], [1], [0, 0, 1, 1], [], []>} : vector<16x64xbf16>, vector<64x64xbf16>, vector<16x64xf32> -> vector<16x64xf32>
    %141 = arith.addf %137, %140 : vector<16x64xf32>
    %c5 = arith.constant 5 : index
    %c0_76 = arith.constant 0 : index
    %c0_77 = arith.constant 0 : index
    %142 = vector.load %arg4[%c5, %c0_76, %c0_77] : memref<12x64x64xbf16, #tpu.memory_space<vmem>>, vector<1x64x64xbf16>
    %143 = vector.shape_cast %142 : vector<1x64x64xbf16> to vector<64x64xbf16>
    %cst_78 = arith.constant dense<0.000000e+00> : vector<16x64xf32>
    %144 = tpu.matmul %132, %143, %cst_78 {dimension_numbers = #tpu.dot_dimension_numbers<[1], [0], [0], [1], [0, 0, 1, 1], [], []>} : vector<16x64xbf16>, vector<64x64xbf16>, vector<16x64xf32> -> vector<16x64xf32>
    %145 = arith.addf %141, %144 : vector<16x64xf32>
    %146 = vector.broadcast %134 : vector<1x64xf32> to vector<16x64xf32>
    %147 = arith.addf %145, %146 : vector<16x64xf32>
    %148 = arith.addf %147, %97 : vector<16x64xf32>
    %c1_i32_79 = arith.constant 1 : i32
    %149 = tpu.dynamic_rotate %148 by %c1_i32_79 dim 0 : vector<16x64xf32>, i32 -> vector<16x64xf32>
    %cst_80 = arith.constant 0.000000e+00 : f32
    %150 = vector.broadcast %cst_80 : f32 to vector<16x64xf32>
    %151 = arith.select %40, %149, %150 : vector<16x64xi1>, vector<16x64xf32>
    %c15_i32_81 = arith.constant 15 : i32
    %152 = tpu.dynamic_rotate %148 by %c15_i32_81 dim 0 : vector<16x64xf32>, i32 -> vector<16x64xf32>
    %cst_82 = arith.constant 0.000000e+00 : f32
    %153 = vector.broadcast %cst_82 : f32 to vector<16x64xf32>
    %154 = arith.select %42, %152, %153 : vector<16x64xi1>, vector<16x64xf32>
    %155 = arith.truncf %151 : vector<16x64xf32> to vector<16x64xbf16>
    %156 = arith.truncf %148 : vector<16x64xf32> to vector<16x64xbf16>
    %157 = arith.truncf %154 : vector<16x64xf32> to vector<16x64xbf16>
    %c2_83 = arith.constant 2 : index
    %c0_84 = arith.constant 0 : index
    %c0_85 = arith.constant 0 : index
    %158 = vector.load %arg8[%c2_83, %c0_84, %c0_85] : memref<5x1x64xf32, #tpu.memory_space<vmem>>, vector<1x1x64xf32>
    %159 = vector.shape_cast %158 : vector<1x1x64xf32> to vector<1x64xf32>
    %c6 = arith.constant 6 : index
    %c0_86 = arith.constant 0 : index
    %c0_87 = arith.constant 0 : index
    %160 = vector.load %arg4[%c6, %c0_86, %c0_87] : memref<12x64x64xbf16, #tpu.memory_space<vmem>>, vector<1x64x64xbf16>
    %161 = vector.shape_cast %160 : vector<1x64x64xbf16> to vector<64x64xbf16>
    %cst_88 = arith.constant dense<0.000000e+00> : vector<16x64xf32>
    %162 = tpu.matmul %155, %161, %cst_88 {dimension_numbers = #tpu.dot_dimension_numbers<[1], [0], [0], [1], [0, 0, 1, 1], [], []>} : vector<16x64xbf16>, vector<64x64xbf16>, vector<16x64xf32> -> vector<16x64xf32>
    %c7 = arith.constant 7 : index
    %c0_89 = arith.constant 0 : index
    %c0_90 = arith.constant 0 : index
    %163 = vector.load %arg4[%c7, %c0_89, %c0_90] : memref<12x64x64xbf16, #tpu.memory_space<vmem>>, vector<1x64x64xbf16>
    %164 = vector.shape_cast %163 : vector<1x64x64xbf16> to vector<64x64xbf16>
    %cst_91 = arith.constant dense<0.000000e+00> : vector<16x64xf32>
    %165 = tpu.matmul %156, %164, %cst_91 {dimension_numbers = #tpu.dot_dimension_numbers<[1], [0], [0], [1], [0, 0, 1, 1], [], []>} : vector<16x64xbf16>, vector<64x64xbf16>, vector<16x64xf32> -> vector<16x64xf32>
    %166 = arith.addf %162, %165 : vector<16x64xf32>
    %c8 = arith.constant 8 : index
    %c0_92 = arith.constant 0 : index
    %c0_93 = arith.constant 0 : index
    %167 = vector.load %arg4[%c8, %c0_92, %c0_93] : memref<12x64x64xbf16, #tpu.memory_space<vmem>>, vector<1x64x64xbf16>
    %168 = vector.shape_cast %167 : vector<1x64x64xbf16> to vector<64x64xbf16>
    %cst_94 = arith.constant dense<0.000000e+00> : vector<16x64xf32>
    %169 = tpu.matmul %157, %168, %cst_94 {dimension_numbers = #tpu.dot_dimension_numbers<[1], [0], [0], [1], [0, 0, 1, 1], [], []>} : vector<16x64xbf16>, vector<64x64xbf16>, vector<16x64xf32> -> vector<16x64xf32>
    %170 = arith.addf %166, %169 : vector<16x64xf32>
    %171 = vector.broadcast %159 : vector<1x64xf32> to vector<16x64xf32>
    %172 = arith.addf %170, %171 : vector<16x64xf32>
    %cst_95 = arith.constant 0.000000e+00 : f32
    %173 = vector.broadcast %cst_95 : f32 to vector<16x64xf32>
    %174 = arith.maximumf %172, %173 : vector<16x64xf32>
    %c1_i32_96 = arith.constant 1 : i32
    %175 = tpu.dynamic_rotate %174 by %c1_i32_96 dim 0 : vector<16x64xf32>, i32 -> vector<16x64xf32>
    %cst_97 = arith.constant 0.000000e+00 : f32
    %176 = vector.broadcast %cst_97 : f32 to vector<16x64xf32>
    %177 = arith.select %40, %175, %176 : vector<16x64xi1>, vector<16x64xf32>
    %c15_i32_98 = arith.constant 15 : i32
    %178 = tpu.dynamic_rotate %174 by %c15_i32_98 dim 0 : vector<16x64xf32>, i32 -> vector<16x64xf32>
    %cst_99 = arith.constant 0.000000e+00 : f32
    %179 = vector.broadcast %cst_99 : f32 to vector<16x64xf32>
    %180 = arith.select %42, %178, %179 : vector<16x64xi1>, vector<16x64xf32>
    %181 = arith.truncf %177 : vector<16x64xf32> to vector<16x64xbf16>
    %182 = arith.truncf %174 : vector<16x64xf32> to vector<16x64xbf16>
    %183 = arith.truncf %180 : vector<16x64xf32> to vector<16x64xbf16>
    %c3_100 = arith.constant 3 : index
    %c0_101 = arith.constant 0 : index
    %c0_102 = arith.constant 0 : index
    %184 = vector.load %arg8[%c3_100, %c0_101, %c0_102] : memref<5x1x64xf32, #tpu.memory_space<vmem>>, vector<1x1x64xf32>
    %185 = vector.shape_cast %184 : vector<1x1x64xf32> to vector<1x64xf32>
    %c9 = arith.constant 9 : index
    %c0_103 = arith.constant 0 : index
    %c0_104 = arith.constant 0 : index
    %186 = vector.load %arg4[%c9, %c0_103, %c0_104] : memref<12x64x64xbf16, #tpu.memory_space<vmem>>, vector<1x64x64xbf16>
    %187 = vector.shape_cast %186 : vector<1x64x64xbf16> to vector<64x64xbf16>
    %cst_105 = arith.constant dense<0.000000e+00> : vector<16x64xf32>
    %188 = tpu.matmul %181, %187, %cst_105 {dimension_numbers = #tpu.dot_dimension_numbers<[1], [0], [0], [1], [0, 0, 1, 1], [], []>} : vector<16x64xbf16>, vector<64x64xbf16>, vector<16x64xf32> -> vector<16x64xf32>
    %c10 = arith.constant 10 : index
    %c0_106 = arith.constant 0 : index
    %c0_107 = arith.constant 0 : index
    %189 = vector.load %arg4[%c10, %c0_106, %c0_107] : memref<12x64x64xbf16, #tpu.memory_space<vmem>>, vector<1x64x64xbf16>
    %190 = vector.shape_cast %189 : vector<1x64x64xbf16> to vector<64x64xbf16>
    %cst_108 = arith.constant dense<0.000000e+00> : vector<16x64xf32>
    %191 = tpu.matmul %182, %190, %cst_108 {dimension_numbers = #tpu.dot_dimension_numbers<[1], [0], [0], [1], [0, 0, 1, 1], [], []>} : vector<16x64xbf16>, vector<64x64xbf16>, vector<16x64xf32> -> vector<16x64xf32>
    %192 = arith.addf %188, %191 : vector<16x64xf32>
    %c11 = arith.constant 11 : index
    %c0_109 = arith.constant 0 : index
    %c0_110 = arith.constant 0 : index
    %193 = vector.load %arg4[%c11, %c0_109, %c0_110] : memref<12x64x64xbf16, #tpu.memory_space<vmem>>, vector<1x64x64xbf16>
    %194 = vector.shape_cast %193 : vector<1x64x64xbf16> to vector<64x64xbf16>
    %cst_111 = arith.constant dense<0.000000e+00> : vector<16x64xf32>
    %195 = tpu.matmul %183, %194, %cst_111 {dimension_numbers = #tpu.dot_dimension_numbers<[1], [0], [0], [1], [0, 0, 1, 1], [], []>} : vector<16x64xbf16>, vector<64x64xbf16>, vector<16x64xf32> -> vector<16x64xf32>
    %196 = arith.addf %192, %195 : vector<16x64xf32>
    %197 = vector.broadcast %185 : vector<1x64xf32> to vector<16x64xf32>
    %198 = arith.addf %196, %197 : vector<16x64xf32>
    %199 = arith.addf %198, %148 : vector<16x64xf32>
    %c1_i32_112 = arith.constant 1 : i32
    %200 = tpu.dynamic_rotate %199 by %c1_i32_112 dim 0 : vector<16x64xf32>, i32 -> vector<16x64xf32>
    %cst_113 = arith.constant 0.000000e+00 : f32
    %201 = vector.broadcast %cst_113 : f32 to vector<16x64xf32>
    %202 = arith.select %40, %200, %201 : vector<16x64xi1>, vector<16x64xf32>
    %c15_i32_114 = arith.constant 15 : i32
    %203 = tpu.dynamic_rotate %199 by %c15_i32_114 dim 0 : vector<16x64xf32>, i32 -> vector<16x64xf32>
    %cst_115 = arith.constant 0.000000e+00 : f32
    %204 = vector.broadcast %cst_115 : f32 to vector<16x64xf32>
    %205 = arith.select %42, %203, %204 : vector<16x64xi1>, vector<16x64xf32>
    %206 = arith.truncf %202 : vector<16x64xf32> to vector<16x64xbf16>
    %207 = arith.truncf %199 : vector<16x64xf32> to vector<16x64xbf16>
    %208 = arith.truncf %205 : vector<16x64xf32> to vector<16x64xbf16>
    %c0_116 = arith.constant 0 : index
    %c0_117 = arith.constant 0 : index
    %c0_118 = arith.constant 0 : index
    %209 = vector.load %arg5[%c0_116, %c0_117, %c0_118] : memref<6x64x128xbf16, #tpu.memory_space<vmem>>, vector<1x64x128xbf16>
    %210 = vector.shape_cast %209 : vector<1x64x128xbf16> to vector<64x128xbf16>
    %cst_119 = arith.constant dense<0.000000e+00> : vector<16x128xf32>
    %211 = tpu.matmul %206, %210, %cst_119 {dimension_numbers = #tpu.dot_dimension_numbers<[1], [0], [0], [1], [0, 0, 1, 1], [], []>} : vector<16x64xbf16>, vector<64x128xbf16>, vector<16x128xf32> -> vector<16x128xf32>
    %c1_120 = arith.constant 1 : index
    %c0_121 = arith.constant 0 : index
    %c0_122 = arith.constant 0 : index
    %212 = vector.load %arg5[%c1_120, %c0_121, %c0_122] : memref<6x64x128xbf16, #tpu.memory_space<vmem>>, vector<1x64x128xbf16>
    %213 = vector.shape_cast %212 : vector<1x64x128xbf16> to vector<64x128xbf16>
    %cst_123 = arith.constant dense<0.000000e+00> : vector<16x128xf32>
    %214 = tpu.matmul %207, %213, %cst_123 {dimension_numbers = #tpu.dot_dimension_numbers<[1], [0], [0], [1], [0, 0, 1, 1], [], []>} : vector<16x64xbf16>, vector<64x128xbf16>, vector<16x128xf32> -> vector<16x128xf32>
    %215 = arith.addf %211, %214 : vector<16x128xf32>
    %c2_124 = arith.constant 2 : index
    %c0_125 = arith.constant 0 : index
    %c0_126 = arith.constant 0 : index
    %216 = vector.load %arg5[%c2_124, %c0_125, %c0_126] : memref<6x64x128xbf16, #tpu.memory_space<vmem>>, vector<1x64x128xbf16>
    %217 = vector.shape_cast %216 : vector<1x64x128xbf16> to vector<64x128xbf16>
    %cst_127 = arith.constant dense<0.000000e+00> : vector<16x128xf32>
    %218 = tpu.matmul %208, %217, %cst_127 {dimension_numbers = #tpu.dot_dimension_numbers<[1], [0], [0], [1], [0, 0, 1, 1], [], []>} : vector<16x64xbf16>, vector<64x128xbf16>, vector<16x128xf32> -> vector<16x128xf32>
    %219 = arith.addf %215, %218 : vector<16x128xf32>
    %c3_128 = arith.constant 3 : index
    %c0_129 = arith.constant 0 : index
    %c0_130 = arith.constant 0 : index
    %220 = vector.load %arg5[%c3_128, %c0_129, %c0_130] : memref<6x64x128xbf16, #tpu.memory_space<vmem>>, vector<1x64x128xbf16>
    %221 = vector.shape_cast %220 : vector<1x64x128xbf16> to vector<64x128xbf16>
    %cst_131 = arith.constant dense<0.000000e+00> : vector<16x128xf32>
    %222 = tpu.matmul %206, %221, %cst_131 {dimension_numbers = #tpu.dot_dimension_numbers<[1], [0], [0], [1], [0, 0, 1, 1], [], []>} : vector<16x64xbf16>, vector<64x128xbf16>, vector<16x128xf32> -> vector<16x128xf32>
    %c4_132 = arith.constant 4 : index
    %c0_133 = arith.constant 0 : index
    %c0_134 = arith.constant 0 : index
    %223 = vector.load %arg5[%c4_132, %c0_133, %c0_134] : memref<6x64x128xbf16, #tpu.memory_space<vmem>>, vector<1x64x128xbf16>
    %224 = vector.shape_cast %223 : vector<1x64x128xbf16> to vector<64x128xbf16>
    %cst_135 = arith.constant dense<0.000000e+00> : vector<16x128xf32>
    %225 = tpu.matmul %207, %224, %cst_135 {dimension_numbers = #tpu.dot_dimension_numbers<[1], [0], [0], [1], [0, 0, 1, 1], [], []>} : vector<16x64xbf16>, vector<64x128xbf16>, vector<16x128xf32> -> vector<16x128xf32>
    %226 = arith.addf %222, %225 : vector<16x128xf32>
    %c5_136 = arith.constant 5 : index
    %c0_137 = arith.constant 0 : index
    %c0_138 = arith.constant 0 : index
    %227 = vector.load %arg5[%c5_136, %c0_137, %c0_138] : memref<6x64x128xbf16, #tpu.memory_space<vmem>>, vector<1x64x128xbf16>
    %228 = vector.shape_cast %227 : vector<1x64x128xbf16> to vector<64x128xbf16>
    %cst_139 = arith.constant dense<0.000000e+00> : vector<16x128xf32>
    %229 = tpu.matmul %208, %228, %cst_139 {dimension_numbers = #tpu.dot_dimension_numbers<[1], [0], [0], [1], [0, 0, 1, 1], [], []>} : vector<16x64xbf16>, vector<64x128xbf16>, vector<16x128xf32> -> vector<16x128xf32>
    %230 = arith.addf %226, %229 : vector<16x128xf32>
    %c0_140 = arith.constant 0 : index
    %c0_141 = arith.constant 0 : index
    %c0_142 = arith.constant 0 : index
    %231 = vector.load %arg10[%c0_140, %c0_141, %c0_142] : memref<2x32x16xf32, #tpu.memory_space<vmem>>, vector<1x32x16xf32>
    %232 = vector.shape_cast %231 : vector<1x32x16xf32> to vector<32x16xf32>
    %cst_143 = arith.constant dense<0.000000e+00> : vector<32x128xf32>
    %233 = tpu.matmul %232, %219, %cst_143 {dimension_numbers = #tpu.dot_dimension_numbers<[1], [0], [0], [1], [0, 0, 1, 1], [], []>} : vector<32x16xf32>, vector<16x128xf32>, vector<32x128xf32> -> vector<32x128xf32>
    %c1_144 = arith.constant 1 : index
    %c0_145 = arith.constant 0 : index
    %c0_146 = arith.constant 0 : index
    %234 = vector.load %arg10[%c1_144, %c0_145, %c0_146] : memref<2x32x16xf32, #tpu.memory_space<vmem>>, vector<1x32x16xf32>
    %235 = vector.shape_cast %234 : vector<1x32x16xf32> to vector<32x16xf32>
    %cst_147 = arith.constant dense<0.000000e+00> : vector<32x128xf32>
    %236 = tpu.matmul %235, %230, %cst_147 {dimension_numbers = #tpu.dot_dimension_numbers<[1], [0], [0], [1], [0, 0, 1, 1], [], []>} : vector<32x16xf32>, vector<16x128xf32>, vector<32x128xf32> -> vector<32x128xf32>
    %237 = arith.addf %233, %236 : vector<32x128xf32>
    %c4_148 = arith.constant 4 : index
    %c0_149 = arith.constant 0 : index
    %c0_150 = arith.constant 0 : index
    %238 = vector.load %arg7[%c4_148, %c0_149, %c0_150] : memref<6x1x128xf32, #tpu.memory_space<vmem>>, vector<1x1x128xf32>
    %239 = vector.shape_cast %238 : vector<1x1x128xf32> to vector<1x128xf32>
    %240 = vector.broadcast %239 : vector<1x128xf32> to vector<32x128xf32>
    %241 = arith.addf %237, %240 : vector<32x128xf32>
    %242 = arith.addf %79, %241 : vector<32x128xf32>
    %c2_151 = arith.constant 2 : index
    %c0_152 = arith.constant 0 : index
    %c0_153 = arith.constant 0 : index
    %243 = vector.load %arg2[%c2_151, %c0_152, %c0_153] : memref<4x384x128xbf16, #tpu.memory_space<vmem>>, vector<1x384x128xbf16>
    %244 = vector.shape_cast %243 : vector<1x384x128xbf16> to vector<384x128xbf16>
    %c2_154 = arith.constant 2 : index
    %c0_155 = arith.constant 0 : index
    %c0_156 = arith.constant 0 : index
    %245 = vector.load %arg7[%c2_154, %c0_155, %c0_156] : memref<6x1x128xf32, #tpu.memory_space<vmem>>, vector<1x1x128xf32>
    %246 = vector.shape_cast %245 : vector<1x1x128xf32> to vector<1x128xf32>
    %c1_i32_157 = arith.constant 1 : i32
    %247 = tpu.dynamic_rotate %242 by %c1_i32_157 dim 0 : vector<32x128xf32>, i32 -> vector<32x128xf32>
    %cst_158 = arith.constant 0.000000e+00 : f32
    %248 = vector.broadcast %cst_158 : f32 to vector<32x128xf32>
    %249 = arith.select %19, %247, %248 : vector<32x128xi1>, vector<32x128xf32>
    %c31_i32_159 = arith.constant 31 : i32
    %250 = tpu.dynamic_rotate %242 by %c31_i32_159 dim 0 : vector<32x128xf32>, i32 -> vector<32x128xf32>
    %cst_160 = arith.constant 0.000000e+00 : f32
    %251 = vector.broadcast %cst_160 : f32 to vector<32x128xf32>
    %252 = arith.select %21, %250, %251 : vector<32x128xi1>, vector<32x128xf32>
    %253 = arith.truncf %249 : vector<32x128xf32> to vector<32x128xbf16>
    %254 = arith.truncf %242 : vector<32x128xf32> to vector<32x128xbf16>
    %255 = arith.truncf %252 : vector<32x128xf32> to vector<32x128xbf16>
    %256 = tpu.concatenate %253, %254, %255 in 1 : vector<32x128xbf16>, vector<32x128xbf16>, vector<32x128xbf16> -> vector<32x384xbf16>
    %cst_161 = arith.constant dense<0.000000e+00> : vector<32x128xf32>
    %257 = tpu.matmul %256, %244, %cst_161 {dimension_numbers = #tpu.dot_dimension_numbers<[1], [0], [0], [1], [0, 0, 1, 1], [], []>} : vector<32x384xbf16>, vector<384x128xbf16>, vector<32x128xf32> -> vector<32x128xf32>
    %258 = vector.broadcast %246 : vector<1x128xf32> to vector<32x128xf32>
    %259 = arith.addf %257, %258 : vector<32x128xf32>
    %cst_162 = arith.constant 0.000000e+00 : f32
    %260 = vector.broadcast %cst_162 : f32 to vector<32x128xf32>
    %261 = arith.maximumf %259, %260 : vector<32x128xf32>
    %c3_163 = arith.constant 3 : index
    %c0_164 = arith.constant 0 : index
    %c0_165 = arith.constant 0 : index
    %262 = vector.load %arg2[%c3_163, %c0_164, %c0_165] : memref<4x384x128xbf16, #tpu.memory_space<vmem>>, vector<1x384x128xbf16>
    %263 = vector.shape_cast %262 : vector<1x384x128xbf16> to vector<384x128xbf16>
    %c3_166 = arith.constant 3 : index
    %c0_167 = arith.constant 0 : index
    %c0_168 = arith.constant 0 : index
    %264 = vector.load %arg7[%c3_166, %c0_167, %c0_168] : memref<6x1x128xf32, #tpu.memory_space<vmem>>, vector<1x1x128xf32>
    %265 = vector.shape_cast %264 : vector<1x1x128xf32> to vector<1x128xf32>
    %c1_i32_169 = arith.constant 1 : i32
    %266 = tpu.dynamic_rotate %261 by %c1_i32_169 dim 0 : vector<32x128xf32>, i32 -> vector<32x128xf32>
    %cst_170 = arith.constant 0.000000e+00 : f32
    %267 = vector.broadcast %cst_170 : f32 to vector<32x128xf32>
    %268 = arith.select %19, %266, %267 : vector<32x128xi1>, vector<32x128xf32>
    %c31_i32_171 = arith.constant 31 : i32
    %269 = tpu.dynamic_rotate %261 by %c31_i32_171 dim 0 : vector<32x128xf32>, i32 -> vector<32x128xf32>
    %cst_172 = arith.constant 0.000000e+00 : f32
    %270 = vector.broadcast %cst_172 : f32 to vector<32x128xf32>
    %271 = arith.select %21, %269, %270 : vector<32x128xi1>, vector<32x128xf32>
    %272 = arith.truncf %268 : vector<32x128xf32> to vector<32x128xbf16>
    %273 = arith.truncf %261 : vector<32x128xf32> to vector<32x128xbf16>
    %274 = arith.truncf %271 : vector<32x128xf32> to vector<32x128xbf16>
    %275 = tpu.concatenate %272, %273, %274 in 1 : vector<32x128xbf16>, vector<32x128xbf16>, vector<32x128xbf16> -> vector<32x384xbf16>
    %cst_173 = arith.constant dense<0.000000e+00> : vector<32x128xf32>
    %276 = tpu.matmul %275, %263, %cst_173 {dimension_numbers = #tpu.dot_dimension_numbers<[1], [0], [0], [1], [0, 0, 1, 1], [], []>} : vector<32x384xbf16>, vector<384x128xbf16>, vector<32x128xf32> -> vector<32x128xf32>
    %277 = vector.broadcast %265 : vector<1x128xf32> to vector<32x128xf32>
    %278 = arith.addf %276, %277 : vector<32x128xf32>
    %279 = arith.addf %278, %242 : vector<32x128xf32>
    %c0_174 = arith.constant 0 : index
    %c0_175 = arith.constant 0 : index
    %280 = vector.load %arg6[%c0_174, %c0_175] : memref<128x128xf32, #tpu.memory_space<vmem>>, vector<128x128xf32>
    %cst_176 = arith.constant dense<0.000000e+00> : vector<32x128xf32>
    %281 = tpu.matmul %279, %280, %cst_176 {dimension_numbers = #tpu.dot_dimension_numbers<[1], [0], [0], [1], [0, 0, 1, 1], [], []>} : vector<32x128xf32>, vector<128x128xf32>, vector<32x128xf32> -> vector<32x128xf32>
    %c5_177 = arith.constant 5 : index
    %c0_178 = arith.constant 0 : index
    %c0_179 = arith.constant 0 : index
    %282 = vector.load %arg7[%c5_177, %c0_178, %c0_179] : memref<6x1x128xf32, #tpu.memory_space<vmem>>, vector<1x1x128xf32>
    %283 = vector.shape_cast %282 : vector<1x1x128xf32> to vector<1x128xf32>
    %284 = vector.broadcast %283 : vector<1x128xf32> to vector<32x128xf32>
    %285 = arith.addf %281, %284 : vector<32x128xf32>
    %cst_180 = arith.constant 0.000000e+00 : f32
    %286 = vector.broadcast %cst_180 : f32 to vector<32x128xf32>
    %287 = arith.subf %286, %285 : vector<32x128xf32>
    %288 = math.exp %287 : vector<32x128xf32>
    %cst_181 = arith.constant 1.000000e+00 : f32
    %289 = vector.broadcast %cst_181 : f32 to vector<32x128xf32>
    %290 = arith.addf %289, %288 : vector<32x128xf32>
    %291 = tpu.reciprocal %290 {approx = true} : vector<32x128xf32> -> vector<32x128xf32>
    %c0_182 = arith.constant 0 : index
    %c0_183 = arith.constant 0 : index
    %292 = vector.load %arg11[%c0_182, %c0_183] : memref<32x128xf32, #tpu.memory_space<vmem>>, vector<32x128xf32>
    tpu.vector_store %arg11[%c0_182, %c0_183], %291 {strides = array<i32>} : memref<32x128xf32, #tpu.memory_space<vmem>>, vector<32x128xf32>,
    return
  }
  func.func @transform_0(%arg0: i32) -> (i32, i32) {
    %c0_i32 = arith.constant 0 : i32
    %c0_i32_0 = arith.constant 0 : i32
    return %arg0, %c0_i32 : i32, i32
  }
  func.func @transform_1(%arg0: i32) -> (i32, i32, i32) {
    %c0_i32 = arith.constant 0 : i32
    %c0_i32_0 = arith.constant 0 : i32
    %c0_i32_1 = arith.constant 0 : i32
    %c0_i32_2 = arith.constant 0 : i32
    return %c0_i32, %c0_i32_0, %c0_i32_1 : i32, i32, i32
  }
  func.func @transform_2(%arg0: i32) -> (i32, i32) {
    %c0_i32 = arith.constant 0 : i32
    %c0_i32_0 = arith.constant 0 : i32
    %c0_i32_1 = arith.constant 0 : i32
    return %c0_i32, %c0_i32_0 : i32, i32
  }
  func.func @transform_3(%arg0: i32) -> (i32, i32, i32) {
    %c0_i32 = arith.constant 0 : i32
    %c0_i32_0 = arith.constant 0 : i32
    %c0_i32_1 = arith.constant 0 : i32
    %c0_i32_2 = arith.constant 0 : i32
    return %c0_i32, %c0_i32_0, %c0_i32_1 : i32, i32, i32
  }
  func.func @transform_4(%arg0: i32) -> (i32, i32, i32) {
    %c0_i32 = arith.constant 0 : i32
    %c0_i32_0 = arith.constant 0 : i32
    %c0_i32_1 = arith.constant 0 : i32
    %c0_i32_2 = arith.constant 0 : i32
    return %c0_i32, %c0_i32_0, %c0_i32_1 : i32, i32, i32
  }
  func.func @transform_5(%arg0: i32) -> (i32, i32) {
    %c0_i32 = arith.constant 0 : i32
    %c0_i32_0 = arith.constant 0 : i32
    %c0_i32_1 = arith.constant 0 : i32
    return %c0_i32, %c0_i32_0 : i32, i32
  }
  func.func @transform_6(%arg0: i32) -> (i32, i32, i32) {
    %c0_i32 = arith.constant 0 : i32
    %c0_i32_0 = arith.constant 0 : i32
    %c0_i32_1 = arith.constant 0 : i32
    %c0_i32_2 = arith.constant 0 : i32
    return %c0_i32, %c0_i32_0, %c0_i32_1 : i32, i32, i32
  }
  func.func @transform_7(%arg0: i32) -> (i32, i32, i32) {
    %c0_i32 = arith.constant 0 : i32
    %c0_i32_0 = arith.constant 0 : i32
    %c0_i32_1 = arith.constant 0 : i32
    %c0_i32_2 = arith.constant 0 : i32
    return %c0_i32, %c0_i32_0, %c0_i32_1 : i32, i32, i32
  }
  func.func @transform_8(%arg0: i32) -> (i32, i32) {
    %c0_i32 = arith.constant 0 : i32
    %c0_i32_0 = arith.constant 0 : i32
    %c0_i32_1 = arith.constant 0 : i32
    return %c0_i32, %c0_i32_0 : i32, i32
  }
  func.func @transform_9(%arg0: i32) -> (i32, i32, i32) {
    %c0_i32 = arith.constant 0 : i32
    %c0_i32_0 = arith.constant 0 : i32
    %c0_i32_1 = arith.constant 0 : i32
    %c0_i32_2 = arith.constant 0 : i32
    return %c0_i32, %c0_i32_0, %c0_i32_1 : i32, i32, i32
  }
  func.func @transform_10(%arg0: i32) -> (i32, i32) {
    %c0_i32 = arith.constant 0 : i32
    %c0_i32_0 = arith.constant 0 : i32
    return %arg0, %c0_i32 : i32, i32
  }
}

</mosaic_0001>

<llo_original>
// kernel: mask_branch_down_up.1
$region0: #{mask_branch_down_up.1}
  #allocation0 [shape = 'u32[]', space=smem, size = 0x4, offset = 0x4, fixed_abs, tag = 'smem constant byte address 0x4 - core index']
  #allocation1 [shape = 'u32[144,128]{1,0:T(1,128)}', space=vmem, size = 0x12000, scoped, tag = 'internal scratch']
  %s0 = inlined_call_operand.vmem [shape: f32[64,128], index: 0, kind: input, shape index: {}]
  %s1 = inlined_call_operand.vmem [shape: bf16[4,384,128], index: 1, kind: input, shape index: {}]
  %s2 = inlined_call_operand.vmem [shape: bf16[384,64], index: 2, kind: input, shape index: {}]
  %s3 = inlined_call_operand.vmem [shape: bf16[12,64,64], index: 3, kind: input, shape index: {}]
  %s4 = inlined_call_operand.vmem [shape: bf16[6,64,128], index: 4, kind: input, shape index: {}]
  %s5 = inlined_call_operand.vmem [shape: f32[128,128], index: 5, kind: input, shape index: {}]
  %s6 = inlined_call_operand.vmem [shape: f32[6,1,128], index: 6, kind: input, shape index: {}]
  %s7 = inlined_call_operand.vmem [shape: f32[5,1,64], index: 7, kind: input, shape index: {}]
  %s8 = inlined_call_operand.vmem [shape: f32[16,32], index: 8, kind: input, shape index: {}]
  %s9 = inlined_call_operand.vmem [shape: f32[2,32,16], index: 9, kind: input, shape index: {}]
  %s10 = inlined_call_operand.vmem [shape: f32[64,128], index: 10, kind: output, shape index: {}]
  %s11 = sld [smem:[#allocation0]]
  $region73: #{mask_branch_down_up.1} parent=0
    _
  %s13 = ssub.s32 1, %s11
  %s14 = scalar_select 0, %s13, %s11
  loop: start=0, step=1, limit=4
  $region2: #{mask_branch_down_up.1} parent=0 // loop_pre_header
    _
  $region3: #{mask_branch_down_up.1} parent=0 // loop_header
    %s16 = sphi 0, %s20
    %p17 = scmp.ge.s32.totalorder %s16, 4
    %s26 = sphi 0, %s28
    %s29 = sphi 0, %s26
    %s30 = sphi 0, %s29
    %s46 = sphi 0, %s30
    %s50 = sphi 0, %s50
    %s52 = sphi 0, %s50
    %s53 = sphi 0, %s52
    %s67 = sphi 0, %s53
    %s71 = sphi 0, %s71
    %s73 = sphi 0, %s71
    %s74 = sphi 0, %s73
    %s88 = sphi 0, %s74
    %s92 = sphi 0, %s92
    %s94 = sphi 0, %s92
    %s95 = sphi 0, %s94
    %s109 = sphi 0, %s95
    %s113 = sphi 0, %s113
    %s115 = sphi 0, %s113
    %s116 = sphi 0, %s115
    %s130 = sphi 0, %s116
    %s134 = sphi 0, %s134
    %s136 = sphi 0, %s134
    %s137 = sphi 0, %s136
    %s151 = sphi 0, %s137
    %s155 = sphi 0, %s155
    %s157 = sphi 0, %s155
    %s158 = sphi 0, %s157
    %s172 = sphi 0, %s158
    %s176 = sphi 0, %s176
    %s178 = sphi 0, %s176
    %s179 = sphi 0, %s178
    %s193 = sphi 0, %s179
    %s197 = sphi 0, %s197
    %s199 = sphi 0, %s197
    %s200 = sphi 0, %s199
    %s214 = sphi 0, %s200
    %s218 = sphi 0, %s218
    %s220 = sphi 0, %s218
    %s221 = sphi 0, %s220
    %s235 = sphi 0, %s221
    %s241 = sphi 0, %s243
    %s244 = sphi 0, %s241
    %s245 = sphi 0, %s244
    %s261 = sphi 0, %s245
  $region4: #{mask_branch_down_up.1} parent=0 // loop_header_branch
    %19 = sbr.rel (%p17) target = $region8
  $region5: #{mask_branch_down_up.1} parent=0 // loop_body
    %s21 = ssub.s32 %s16, 1
    %s22 = ssub.s32 %s16, 2
    %s23 = sadd.s32 %s16, 1
    %s24 = ssub.s32 %s16, %s23
    %p25 = scmp.eq.s32.totalorder %s24, 0
    %s27 = sadd.s32 %s26, 1
    %s28 = scalar_select %p25, %s26, %s27
    %p31 = pneg %p25
    %p32 = scmp.eq.s32.totalorder %s16, 1
    %p33 = por %p31, %p32
    %p34 = scmp.ne.s32.totalorder %s26, %s29
    %p35 = scmp.eq.s32.totalorder %s16, 0
    %p36 = por %p34, %p35
    %p37 = scmp.ne.s32.totalorder %s26, %s29
    %p38 = scmp.eq.s32.totalorder %s21, 1
    %p39 = por %p37, %p38
    %p40 = scmp.ne.s32.totalorder %s29, %s30
    %p41 = scmp.eq.s32.totalorder %s21, 0
    %p42 = por %p40, %p41
    %p43 = scmp.ne.s32.totalorder %s29, %s30
    %p44 = scmp.eq.s32.totalorder %s22, 1
    %p45 = por %p43, %p44
    %p47 = scmp.ne.s32.totalorder %s30, %s46
    %p48 = scmp.eq.s32.totalorder %s22, 0
    %p49 = por %p47, %p48
    %s51 = sadd.s32 %s50, 1
    %p54 = scmp.eq.s32.totalorder %s16, 1
    %p55 = scmp.ne.s32.totalorder %s50, %s52
    %p56 = scmp.eq.s32.totalorder %s16, 0
    %p57 = por %p55, %p56
    %p58 = scmp.ne.s32.totalorder %s50, %s52
    %p59 = scmp.eq.s32.totalorder %s21, 1
    %p60 = por %p58, %p59
    %p61 = scmp.ne.s32.totalorder %s52, %s53
    %p62 = scmp.eq.s32.totalorder %s21, 0
    %p63 = por %p61, %p62
    %p64 = scmp.ne.s32.totalorder %s52, %s53
    %p65 = scmp.eq.s32.totalorder %s22, 1
    %p66 = por %p64, %p65
    %p68 = scmp.ne.s32.totalorder %s53, %s67
    %p69 = scmp.eq.s32.totalorder %s22, 0
    %p70 = por %p68, %p69
    %s72 = sadd.s32 %s71, 1
    %p75 = scmp.eq.s32.totalorder %s16, 1
    %p76 = scmp.ne.s32.totalorder %s71, %s73
    %p77 = scmp.eq.s32.totalorder %s16, 0
    %p78 = por %p76, %p77
    %p79 = scmp.ne.s32.totalorder %s71, %s73
    %p80 = scmp.eq.s32.totalorder %s21, 1
    %p81 = por %p79, %p80
    %p82 = scmp.ne.s32.totalorder %s73, %s74
    %p83 = scmp.eq.s32.totalorder %s21, 0
    %p84 = por %p82, %p83
    %p85 = scmp.ne.s32.totalorder %s73, %s74
    %p86 = scmp.eq.s32.totalorder %s22, 1
    %p87 = por %p85, %p86
    %p89 = scmp.ne.s32.totalorder %s74, %s88
    %p90 = scmp.eq.s32.totalorder %s22, 0
    %p91 = por %p89, %p90
    %s93 = sadd.s32 %s92, 1
    %p96 = scmp.eq.s32.totalorder %s16, 1
    %p97 = scmp.ne.s32.totalorder %s92, %s94
    %p98 = scmp.eq.s32.totalorder %s16, 0
    %p99 = por %p97, %p98
    %p100 = scmp.ne.s32.totalorder %s92, %s94
    %p101 = scmp.eq.s32.totalorder %s21, 1
    %p102 = por %p100, %p101
    %p103 = scmp.ne.s32.totalorder %s94, %s95
    %p104 = scmp.eq.s32.totalorder %s21, 0
    %p105 = por %p103, %p104
    %p106 = scmp.ne.s32.totalorder %s94, %s95
    %p107 = scmp.eq.s32.totalorder %s22, 1
    %p108 = por %p106, %p107
    %p110 = scmp.ne.s32.totalorder %s95, %s109
    %p111 = scmp.eq.s32.totalorder %s22, 0
    %p112 = por %p110, %p111
    %s114 = sadd.s32 %s113, 1
    %p117 = scmp.eq.s32.totalorder %s16, 1
    %p118 = scmp.ne.s32.totalorder %s113, %s115
    %p119 = scmp.eq.s32.totalorder %s16, 0
    %p120 = por %p118, %p119
    %p121 = scmp.ne.s32.totalorder %s113, %s115
    %p122 = scmp.eq.s32.totalorder %s21, 1
    %p123 = por %p121, %p122
    %p124 = scmp.ne.s32.totalorder %s115, %s116
    %p125 = scmp.eq.s32.totalorder %s21, 0
    %p126 = por %p124, %p125
    %p127 = scmp.ne.s32.totalorder %s115, %s116
    %p128 = scmp.eq.s32.totalorder %s22, 1
    %p129 = por %p127, %p128
    %p131 = scmp.ne.s32.totalorder %s116, %s130
    %p132 = scmp.eq.s32.totalorder %s22, 0
    %p133 = por %p131, %p132
    %s135 = sadd.s32 %s134, 1
    %p138 = scmp.eq.s32.totalorder %s16, 1
    %p139 = scmp.ne.s32.totalorder %s134, %s136
    %p140 = scmp.eq.s32.totalorder %s16, 0
    %p141 = por %p139, %p140
    %p142 = scmp.ne.s32.totalorder %s134, %s136
    %p143 = scmp.eq.s32.totalorder %s21, 1
    %p144 = por %p142, %p143
    %p145 = scmp.ne.s32.totalorder %s136, %s137
    %p146 = scmp.eq.s32.totalorder %s21, 0
    %p147 = por %p145, %p146
    %p148 = scmp.ne.s32.totalorder %s136, %s137
    %p149 = scmp.eq.s32.totalorder %s22, 1
    %p150 = por %p148, %p149
    %p152 = scmp.ne.s32.totalorder %s137, %s151
    %p153 = scmp.eq.s32.totalorder %s22, 0
    %p154 = por %p152, %p153
    %s156 = sadd.s32 %s155, 1
    %p159 = scmp.eq.s32.totalorder %s16, 1
    %p160 = scmp.ne.s32.totalorder %s155, %s157
    %p161 = scmp.eq.s32.totalorder %s16, 0
    %p162 = por %p160, %p161
    %p163 = scmp.ne.s32.totalorder %s155, %s157
    %p164 = scmp.eq.s32.totalorder %s21, 1
    %p165 = por %p163, %p164
    %p166 = scmp.ne.s32.totalorder %s157, %s158
    %p167 = scmp.eq.s32.totalorder %s21, 0
    %p168 = por %p166, %p167
    %p169 = scmp.ne.s32.totalorder %s157, %s158
    %p170 = scmp.eq.s32.totalorder %s22, 1
    %p171 = por %p169, %p170
    %p173 = scmp.ne.s32.totalorder %s158, %s172
    %p174 = scmp.eq.s32.totalorder %s22, 0
    %p175 = por %p173, %p174
    %s177 = sadd.s32 %s176, 1
    %p180 = scmp.eq.s32.totalorder %s16, 1
    %p181 = scmp.ne.s32.totalorder %s176, %s178
    %p182 = scmp.eq.s32.totalorder %s16, 0
    %p183 = por %p181, %p182
    %p184 = scmp.ne.s32.totalorder %s176, %s178
    %p185 = scmp.eq.s32.totalorder %s21, 1
    %p186 = por %p184, %p185
    %p187 = scmp.ne.s32.totalorder %s178, %s179
    %p188 = scmp.eq.s32.totalorder %s21, 0
    %p189 = por %p187, %p188
    %p190 = scmp.ne.s32.totalorder %s178, %s179
    %p191 = scmp.eq.s32.totalorder %s22, 1
    %p192 = por %p190, %p191
    %p194 = scmp.ne.s32.totalorder %s179, %s193
    %p195 = scmp.eq.s32.totalorder %s22, 0
    %p196 = por %p194, %p195
    %s198 = sadd.s32 %s197, 1
    %p201 = scmp.eq.s32.totalorder %s16, 1
    %p202 = scmp.ne.s32.totalorder %s197, %s199
    %p203 = scmp.eq.s32.totalorder %s16, 0
    %p204 = por %p202, %p203
    %p205 = scmp.ne.s32.totalorder %s197, %s199
    %p206 = scmp.eq.s32.totalorder %s21, 1
    %p207 = por %p205, %p206
    %p208 = scmp.ne.s32.totalorder %s199, %s200
    %p209 = scmp.eq.s32.totalorder %s21, 0
    %p210 = por %p208, %p209
    %p211 = scmp.ne.s32.totalorder %s199, %s200
    %p212 = scmp.eq.s32.totalorder %s22, 1
    %p213 = por %p211, %p212
    %p215 = scmp.ne.s32.totalorder %s200, %s214
    %p216 = scmp.eq.s32.totalorder %s22, 0
    %p217 = por %p215, %p216
    %s219 = sadd.s32 %s218, 1
    %p222 = scmp.eq.s32.totalorder %s16, 1
    %p223 = scmp.ne.s32.totalorder %s218, %s220
    %p224 = scmp.eq.s32.totalorder %s16, 0
    %p225 = por %p223, %p224
    %p226 = scmp.ne.s32.totalorder %s218, %s220
    %p227 = scmp.eq.s32.totalorder %s21, 1
    %p228 = por %p226, %p227
    %p229 = scmp.ne.s32.totalorder %s220, %s221
    %p230 = scmp.eq.s32.totalorder %s21, 0
    %p231 = por %p229, %p230
    %p232 = scmp.ne.s32.totalorder %s220, %s221
    %p233 = scmp.eq.s32.totalorder %s22, 1
    %p234 = por %p232, %p233
    %p236 = scmp.ne.s32.totalorder %s221, %s235
    %p237 = scmp.eq.s32.totalorder %s22, 0
    %p238 = por %p236, %p237
    %s239 = ssub.s32 %s16, %s23
    %p240 = scmp.eq.s32.totalorder %s239, 0
    %s242 = sadd.s32 %s241, 1
    %s243 = scalar_select %p240, %s241, %s242
    %p246 = pneg %p240
    %p247 = scmp.eq.s32.totalorder %s16, 1
    %p248 = por %p246, %p247
    %p249 = scmp.ne.s32.totalorder %s241, %s244
    %p250 = scmp.eq.s32.totalorder %s16, 0
    %p251 = por %p249, %p250
    %p252 = scmp.ne.s32.totalorder %s241, %s244
    %p253 = scmp.eq.s32.totalorder %s21, 1
    %p254 = por %p252, %p253
    %p255 = scmp.ne.s32.totalorder %s244, %s245
    %p256 = scmp.eq.s32.totalorder %s21, 0
    %p257 = por %p255, %p256
    %p258 = scmp.ne.s32.totalorder %s244, %s245
    %p259 = scmp.eq.s32.totalorder %s22, 1
    %p260 = por %p258, %p259
    %p262 = scmp.ne.s32.totalorder %s245, %s261
    %p263 = scmp.eq.s32.totalorder %s22, 0
    %p264 = por %p262, %p263
    %p265 = scmp.le.s32.totalorder 1, %s16
    %p266 = scmp.lt.s32.totalorder %s16, 3
    %p267 = pnand %p265, %p266
    %p268 = pneg %p267
    // Predicated region
    $region9: #{mask_branch_down_up.1} parent=5 // pred_check
      _
    $region10: #{mask_branch_down_up.1} parent=5 // pred_check_branch
      %270 = sbr.rel (%p267) target = $region12
    $region11: #{mask_branch_down_up.1} parent=5 // pred_region
      %s271 = ssub.s32 %s16, 1
      // Predicated region
      $region13: #{mask_branch_down_up.1} parent=11 // pred_check
        %p272 = pneg %p63
      $region14: #{mask_branch_down_up.1} parent=11 // pred_check_branch
        %274 = sbr.rel (%p272) target = $region16
      $region15: #{mask_branch_down_up.1} parent=11 // pred_region
        _
      $region16: #{mask_branch_down_up.1} parent=11 // pred_fallthru
        _
      // Predicated region
      $region17: #{mask_branch_down_up.1} parent=11 // pred_check
        %p275 = pneg %p84
      $region18: #{mask_branch_down_up.1} parent=11 // pred_check_branch
        %277 = sbr.rel (%p275) target = $region20
      $region19: #{mask_branch_down_up.1} parent=11 // pred_region
        _
      $region20: #{mask_branch_down_up.1} parent=11 // pred_fallthru
        _
      // Predicated region
      $region21: #{mask_branch_down_up.1} parent=11 // pred_check
        %p278 = pneg %p105
      $region22: #{mask_branch_down_up.1} parent=11 // pred_check_branch
        %280 = sbr.rel (%p278) target = $region24
      $region23: #{mask_branch_down_up.1} parent=11 // pred_region
        _
      $region24: #{mask_branch_down_up.1} parent=11 // pred_fallthru
        _
      // Predicated region
      $region25: #{mask_branch_down_up.1} parent=11 // pred_check
        %p281 = pneg %p126
      $region26: #{mask_branch_down_up.1} parent=11 // pred_check_branch
        %283 = sbr.rel (%p281) target = $region28
      $region27: #{mask_branch_down_up.1} parent=11 // pred_region
        _
      $region28: #{mask_branch_down_up.1} parent=11 // pred_fallthru
        _
      // Predicated region
      $region29: #{mask_branch_down_up.1} parent=11 // pred_check
        %p284 = pneg %p147
      $region30: #{mask_branch_down_up.1} parent=11 // pred_check_branch
        %286 = sbr.rel (%p284) target = $region32
      $region31: #{mask_branch_down_up.1} parent=11 // pred_region
        _
      $region32: #{mask_branch_down_up.1} parent=11 // pred_fallthru
        _
      // Predicated region
      $region33: #{mask_branch_down_up.1} parent=11 // pred_check
        %p287 = pneg %p168
      $region34: #{mask_branch_down_up.1} parent=11 // pred_check_branch
        %289 = sbr.rel (%p287) target = $region36
      $region35: #{mask_branch_down_up.1} parent=11 // pred_region
        _
      $region36: #{mask_branch_down_up.1} parent=11 // pred_fallthru
        _
      // Predicated region
      $region37: #{mask_branch_down_up.1} parent=11 // pred_check
        %p290 = pneg %p189
      $region38: #{mask_branch_down_up.1} parent=11 // pred_check_branch
        %292 = sbr.rel (%p290) target = $region40
      $region39: #{mask_branch_down_up.1} parent=11 // pred_region
        _
      $region40: #{mask_branch_down_up.1} parent=11 // pred_fallthru
        _
      // Predicated region
      $region41: #{mask_branch_down_up.1} parent=11 // pred_check
        %p293 = pneg %p210
      $region42: #{mask_branch_down_up.1} parent=11 // pred_check_branch
        %295 = sbr.rel (%p293) target = $region44
      $region43: #{mask_branch_down_up.1} parent=11 // pred_region
        _
      $region44: #{mask_branch_down_up.1} parent=11 // pred_fallthru
        _
      // Predicated region
      $region45: #{mask_branch_down_up.1} parent=11 // pred_check
        %p296 = pneg %p231
      $region46: #{mask_branch_down_up.1} parent=11 // pred_check_branch
        %298 = sbr.rel (%p296) target = $region48
      $region47: #{mask_branch_down_up.1} parent=11 // pred_region
        _
      $region48: #{mask_branch_down_up.1} parent=11 // pred_fallthru
        _
    $region12: #{mask_branch_down_up.1} parent=5 // pred_fallthru
      _
    %p299 = scmp.lt.s32.totalorder %s16, 2
    // Predicated region
    $region49: #{mask_branch_down_up.1} parent=5 // pred_check
      %p300 = pneg %p299
    $region50: #{mask_branch_down_up.1} parent=5 // pred_check_branch
      %302 = sbr.rel (%p300) target = $region52
    $region51: #{mask_branch_down_up.1} parent=5 // pred_region
      // Predicated region
      $region53: #{mask_branch_down_up.1} parent=51 // pred_check
        %p303 = pneg %p36
      $region54: #{mask_branch_down_up.1} parent=51 // pred_check_branch
        %305 = sbr.rel (%p303) target = $region56
      $region55: #{mask_branch_down_up.1} parent=51 // pred_region
        %s306 = smul.u32 4, %s16
        %p307 = scmp.lt.s32.totalorder %s306, 7
        %s308 = scalar_select %p307, %s306, 7
        %s309 = smul.addr %s308, 8
        %s310 = scalar_lea.vmem %s0, %s309
        %s311 = smul.u32 4, %s16
      $region56: #{mask_branch_down_up.1} parent=51 // pred_fallthru
        _
    $region52: #{mask_branch_down_up.1} parent=5 // pred_fallthru
      _
    %p312 = scmp.le.s32.totalorder 1, %s16
    %p313 = scmp.lt.s32.totalorder %s16, 3
    %p314 = pnand %p312, %p313
    %p315 = pneg %p314
    // Predicated region
    $region57: #{mask_branch_down_up.1} parent=5 // pred_check
      _
    $region58: #{mask_branch_down_up.1} parent=5 // pred_check_branch
      %317 = sbr.rel (%p314) target = $region60
    $region59: #{mask_branch_down_up.1} parent=5 // pred_region
      %s318 = ssub.s32 %s16, 1
      %s319 = smul.u32 4, %s21
      %p320 = scmp.lt.s32.totalorder %s319, 7
      %s321 = scalar_select %p320, %s319, 7
      %s322 = smul.addr %s321, 8
      %s323 = scalar_lea.vmem %s0, %s322
      %p324 = pneg %p42
      %p325 = pneg %p39
      %p326 = pneg %p63
      %p327 = pneg %p60
      %p328 = pneg %p84
      %p329 = pneg %p81
      %p330 = pneg %p105
      %p331 = pneg %p102
      %p332 = pneg %p126
      %p333 = pneg %p123
      %p334 = pneg %p147
      %p335 = pneg %p144
      %p336 = pneg %p168
      %p337 = pneg %p165
      %p338 = pneg %p189
      %p339 = pneg %p186
      %p340 = pneg %p210
      %p341 = pneg %p207
      %p342 = pneg %p231
      %p343 = pneg %p228
      %p344 = pneg %p257
      %p345 = pneg %p254
      %s346 = smul.u32 4, %s21
      %p347 = scmp.lt.s32.totalorder %s346, 7
      %s348 = scalar_select %p347, %s346, 7
      %s349 = smul.addr %s348, 8
      %s350 = scalar_lea.vmem %s10, %s349
      %s351 = smul.u32 4, %s21
      %p352 = scmp.lt.s32.totalorder %s351, 7
      %s353 = scalar_select %p352, %s351, 7
      %s354 = smul.addr %s353, 8
      %s355 = scalar_lea.vmem %s0, %s354
      %s356 = smul.u32 4, %s21
      %s357 = smul.u32 4, %s21
      %p358 = scmp.lt.s32.totalorder %s357, 7
      %s359 = scalar_select %p358, %s357, 7
      %s360 = smul.addr %s359, 8
      %s361 = scalar_lea.vmem %s10, %s360
      %s362 = smul.u32 4, %s21
      %v364 = vld [vmem:[%s355] sm:$0xff]
      %v365 = vld [vmem:[%s355 + $0x8] sm:$0xff]
      %v366 = vld [vmem:[%s355 + $0x10] sm:$0xff]
      %v367 = vld [vmem:[%s355 + $0x18] sm:$0xff]
      %v368 = vlaneseq
      %v369 = vshrl.u32 %v368, 7
      %v370 = vadd.s32 %v369, 8
      %v371 = vadd.s32 %v369, 16
      %v372 = vadd.s32 %v369, 24
      %vm373 = vcmp.lt.s32.totalorder %v369, 0
      %v374 = vsub.s32 0, %v369
      %v375 = vsel %vm373, %v374, %v369
      %v376 = vshrl.u32 %v375, 4
      %v377 = vand.u32 %v375, 15
      %v378 = vsub.s32 0, %v377
      %v379 = vsel %vm373, %v378, %v377
      %vm380 = vcmp.lt.s32.totalorder %v370, 0
      %v381 = vsub.s32 0, %v370
      %v382 = vsel %vm380, %v381, %v370
      %v383 = vshrl.u32 %v382, 4
      %v384 = vand.u32 %v382, 15
      %v385 = vsub.s32 0, %v384
      %v386 = vsel %vm380, %v385, %v384
      %vm387 = vcmp.lt.s32.totalorder %v371, 0
      %v388 = vsub.s32 0, %v371
      %v389 = vsel %vm387, %v388, %v371
      %v390 = vshrl.u32 %v389, 4
      %v391 = vand.u32 %v389, 15
      %v392 = vsub.s32 0, %v391
      %v393 = vsel %vm387, %v392, %v391
      %vm394 = vcmp.lt.s32.totalorder %v372, 0
      %v395 = vsub.s32 0, %v372
      %v396 = vsel %vm394, %v395, %v372
      %v397 = vshrl.u32 %v396, 4
      %v398 = vand.u32 %v396, 15
      %v399 = vsub.s32 0, %v398
      %v400 = vsel %vm394, %v399, %v398
      %vm401 = vcmp.ne.s32.totalorder %v379, 0
      %vm402 = vcmp.ne.s32.totalorder %v386, 0
      %vm403 = vcmp.ne.s32.totalorder %v393, 0
      %vm404 = vcmp.ne.s32.totalorder %v400, 0
      %vm405 = vcmp.lt.s32.totalorder %v379, 0
      %vm406 = vcmp.lt.s32.totalorder %v386, 0
      %vm407 = vcmp.lt.s32.totalorder %v393, 0
      %vm408 = vcmp.lt.s32.totalorder %v400, 0
      %vm409 = vmand %vm405, %vm401
      %vm410 = vmand %vm406, %vm402
      %vm411 = vmand %vm407, %vm403
      %vm412 = vmand %vm408, %vm404
      %v413 = vadd.s32 %v379, 16
      %v414 = vadd.s32 %v386, 16
      %v415 = vadd.s32 %v393, 16
      %v416 = vadd.s32 %v400, 16
      %v417 = vsel %vm409, %v413, %v379
      %v418 = vsel %vm410, %v414, %v386
      %v419 = vsel %vm411, %v415, %v393
      %v420 = vsel %vm412, %v416, %v400
      %vm421 = vcmp.ne.s32.totalorder %v417, 0
      %vm422 = vcmp.ne.s32.totalorder %v418, 0
      %vm423 = vcmp.ne.s32.totalorder %v419, 0
      %vm424 = vcmp.ne.s32.totalorder %v420, 0
      %vm425 = vcmp.ne.s32.totalorder %v417, 15
      %vm426 = vcmp.ne.s32.totalorder %v418, 15
      %vm427 = vcmp.ne.s32.totalorder %v419, 15
      %vm428 = vcmp.ne.s32.totalorder %v420, 15
      %vm429 = vcmp.lt.s32.totalorder %v369, 0
      %v430 = vsub.s32 0, %v369
      %v431 = vsel %vm429, %v430, %v369
      %v432 = vshrl.u32 %v431, 3
      %v433 = vand.u32 %v431, 7
      %v434 = vsub.s32 0, %v433
      %v435 = vsel %vm429, %v434, %v433
      %vm436 = vcmp.lt.s32.totalorder %v370, 0
      %v437 = vsub.s32 0, %v370
      %v438 = vsel %vm436, %v437, %v370
      %v439 = vshrl.u32 %v438, 3
      %v440 = vand.u32 %v438, 7
      %v441 = vsub.s32 0, %v440
      %v442 = vsel %vm436, %v441, %v440
      %vm443 = vcmp.ne.s32.totalorder %v435, 0
      %vm444 = vcmp.ne.s32.totalorder %v442, 0
      %vm445 = vcmp.lt.s32.totalorder %v435, 0
      %vm446 = vcmp.lt.s32.totalorder %v442, 0
      %vm447 = vmand %vm445, %vm443
      %vm448 = vmand %vm446, %vm444
      %v449 = vadd.s32 %v435, 8
      %v450 = vadd.s32 %v442, 8
      %v451 = vsel %vm447, %v449, %v435
      %v452 = vsel %vm448, %v450, %v442
      %vm453 = vcmp.ne.s32.totalorder %v451, 0
      %vm454 = vcmp.ne.s32.totalorder %v452, 0
      %vm455 = vcmp.ne.s32.totalorder %v451, 7
      %vm456 = vcmp.ne.s32.totalorder %v452, 7
      %v457 = vld [vmem:[%s1] sm:$0xf]
      %v458 = vld [vmem:[%s1 + $0x4] sm:$0xf]
      %v459 = vld [vmem:[%s1 + $0x8] sm:$0xf]
      %v460 = vld [vmem:[%s1 + $0xc] sm:$0xf]
      %v461 = vld [vmem:[%s1 + $0x10] sm:$0xf]
      %v462 = vld [vmem:[%s1 + $0x14] sm:$0xf]
      %v463 = vld [vmem:[%s1 + $0x18] sm:$0xf]
      %v464 = vld [vmem:[%s1 + $0x1c] sm:$0xf]
      %v465 = vld [vmem:[%s1 + $0x20] sm:$0xf]
      %v466 = vld [vmem:[%s1 + $0x24] sm:$0xf]
      %v467 = vld [vmem:[%s1 + $0x28] sm:$0xf]
      %v468 = vld [vmem:[%s1 + $0x2c] sm:$0xf]
      %v469 = vld [vmem:[%s1 + $0x30] sm:$0xf]
      %v470 = vld [vmem:[%s1 + $0x34] sm:$0xf]
      %v471 = vld [vmem:[%s1 + $0x38] sm:$0xf]
      %v472 = vld [vmem:[%s1 + $0x3c] sm:$0xf]
      %v473 = vld [vmem:[%s1 + $0x40] sm:$0xf]
      %v474 = vld [vmem:[%s1 + $0x44] sm:$0xf]
      %v475 = vld [vmem:[%s1 + $0x48] sm:$0xf]
      %v476 = vld [vmem:[%s1 + $0x4c] sm:$0xf]
      %v477 = vld [vmem:[%s1 + $0x50] sm:$0xf]
      %v478 = vld [vmem:[%s1 + $0x54] sm:$0xf]
      %v479 = vld [vmem:[%s1 + $0x58] sm:$0xf]
      %v480 = vld [vmem:[%s1 + $0x5c] sm:$0xf]
      %v481 = vld [vmem:[%s1 + $0x60] sm:$0xf]
      %v482 = vld [vmem:[%s1 + $0x64] sm:$0xf]
      %v483 = vld [vmem:[%s1 + $0x68] sm:$0xf]
      %v484 = vld [vmem:[%s1 + $0x6c] sm:$0xf]
      %v485 = vld [vmem:[%s1 + $0x70] sm:$0xf]
      %v486 = vld [vmem:[%s1 + $0x74] sm:$0xf]
      %v487 = vld [vmem:[%s1 + $0x78] sm:$0xf]
      %v488 = vld [vmem:[%s1 + $0x7c] sm:$0xf]
      %v489 = vld [vmem:[%s1 + $0x80] sm:$0xf]
      %v490 = vld [vmem:[%s1 + $0x84] sm:$0xf]
      %v491 = vld [vmem:[%s1 + $0x88] sm:$0xf]
      %v492 = vld [vmem:[%s1 + $0x8c] sm:$0xf]
      %v493 = vld [vmem:[%s1 + $0x90] sm:$0xf]
      %v494 = vld [vmem:[%s1 + $0x94] sm:$0xf]
      %v495 = vld [vmem:[%s1 + $0x98] sm:$0xf]
      %v496 = vld [vmem:[%s1 + $0x9c] sm:$0xf]
      %v497 = vld [vmem:[%s1 + $0xa0] sm:$0xf]
      %v498 = vld [vmem:[%s1 + $0xa4] sm:$0xf]
      %v499 = vld [vmem:[%s1 + $0xa8] sm:$0xf]
      %v500 = vld [vmem:[%s1 + $0xac] sm:$0xf]
      %v501 = vld [vmem:[%s1 + $0xb0] sm:$0xf]
      %v502 = vld [vmem:[%s1 + $0xb4] sm:$0xf]
      %v503 = vld [vmem:[%s1 + $0xb8] sm:$0xf]
      %v504 = vld [vmem:[%s1 + $0xbc] sm:$0xf]
      %v505 = vld [vmem:[%s6] sm:$0x1]
      %v506 = vrot.slane %v364, 7
      %v507 = vrot.slane %v365, 7
      %v508 = vrot.slane %v366, 7
      %v509 = vrot.slane %v367, 7
      %vm510 = vcmp.lt.s32.totalorder %v369, 1
      %v511 = vsel %vm510, %v508, %v509
      %v512 = vsel %vm510, %v507, %v508
      %v513 = vsel %vm510, %v506, %v507
      %v514 = vsel %vm510, %v509, %v506
      %v515 = vsel %vm421, %v514, 0.0
      %v516 = vsel %vm422, %v513, 0.0
      %v517 = vsel %vm423, %v512, 0.0
      %v518 = vsel %vm424, %v511, 0.0
      %v519 = vrot.slane %v364, 1
      %v520 = vrot.slane %v365, 1
      %v521 = vrot.slane %v366, 1
      %v522 = vrot.slane %v367, 1
      %vm523 = vcmp.lt.s32.totalorder %v369, 7
      %v524 = vsel %vm523, %v521, %v522
      %v525 = vsel %vm523, %v520, %v521
      %v526 = vsel %vm523, %v519, %v520
      %v527 = vsel %vm523, %v522, %v519
      %v528 = vsel %vm425, %v526, 0.0
      %v529 = vsel %vm426, %v525, 0.0
      %v530 = vsel %vm427, %v524, 0.0
      %v531 = vsel %vm428, %v527, 0.0
      %v532 = vpack.c.bf16 %v516, %v515
      %v533 = vpack.c.bf16 %v518, %v517
      %v534 = vpack.c.bf16 %v365, %v364
      %v535 = vpack.c.bf16 %v367, %v366
      %v536 = vpack.c.bf16 %v529, %v528
      %v537 = vpack.c.bf16 %v531, %v530
      %v539 = vlaneseq
      %v540 = vshrl.u32 %v539, 7
      %v541 = vsub.s32 0, %v540
      %v542 = vrot.slane %v505, %v541
      %v592 = vunpack.c.l.b16 %v457
      %v593 = vunpack.c.l.b16 %v458
      %v594 = vunpack.c.l.b16 %v459
      %v595 = vunpack.c.l.b16 %v460
      %v596 = vunpack.c.l.b16 %v461
      %v597 = vunpack.c.l.b16 %v462
      %v598 = vunpack.c.l.b16 %v463
      %v599 = vunpack.c.l.b16 %v464
      %v600 = vunpack.c.l.b16 %v465
      %v601 = vunpack.c.l.b16 %v466
      %v602 = vunpack.c.l.b16 %v467
      %v603 = vunpack.c.l.b16 %v468
      %v604 = vunpack.c.l.b16 %v469
      %v605 = vunpack.c.l.b16 %v470
      %v606 = vunpack.c.l.b16 %v471
      %v607 = vunpack.c.l.b16 %v472
      %v608 = vunpack.c.l.b16 %v473
      %v609 = vunpack.c.l.b16 %v474
      %v610 = vunpack.c.l.b16 %v475
      %v611 = vunpack.c.l.b16 %v476
      %v612 = vunpack.c.l.b16 %v477
      %v613 = vunpack.c.l.b16 %v478
      %v614 = vunpack.c.l.b16 %v479
      %v615 = vunpack.c.l.b16 %v480
      %v616 = vunpack.c.l.b16 %v481
      %v617 = vunpack.c.l.b16 %v482
      %v618 = vunpack.c.l.b16 %v483
      %v619 = vunpack.c.l.b16 %v484
      %v620 = vunpack.c.l.b16 %v485
      %v621 = vunpack.c.l.b16 %v486
      %v622 = vunpack.c.l.b16 %v487
      %v623 = vunpack.c.l.b16 %v488
      %v624 = vunpack.c.l.b16 %v489
      %v625 = vunpack.c.l.b16 %v490
      %v626 = vunpack.c.l.b16 %v491
      %v627 = vunpack.c.l.b16 %v492
      %v628 = vunpack.c.l.b16 %v493
      %v629 = vunpack.c.l.b16 %v494
      %v630 = vunpack.c.l.b16 %v495
      %v631 = vunpack.c.l.b16 %v496
      %v632 = vunpack.c.l.b16 %v497
      %v633 = vunpack.c.l.b16 %v498
      %v634 = vunpack.c.l.b16 %v499
      %v635 = vunpack.c.l.b16 %v500
      %v636 = vunpack.c.l.b16 %v501
      %v637 = vunpack.c.l.b16 %v502
      %v638 = vunpack.c.l.b16 %v503
      %v639 = vunpack.c.l.b16 %v504
      %v640 = vpack.c.b16 %v593, %v592
      %v641 = vpack.c.b16 %v595, %v594
      %v642 = vpack.c.b16 %v597, %v596
      %v643 = vpack.c.b16 %v599, %v598
      %v644 = vpack.c.b16 %v601, %v600
      %v645 = vpack.c.b16 %v603, %v602
      %v646 = vpack.c.b16 %v605, %v604
      %v647 = vpack.c.b16 %v607, %v606
      %v648 = vpack.c.b16 %v609, %v608
      %v649 = vpack.c.b16 %v611, %v610
      %v650 = vpack.c.b16 %v613, %v612
      %v651 = vpack.c.b16 %v615, %v614
      %v652 = vpack.c.b16 %v617, %v616
      %v653 = vpack.c.b16 %v619, %v618
      %v654 = vpack.c.b16 %v621, %v620
      %v655 = vpack.c.b16 %v623, %v622
      %v656 = vpack.c.b16 %v625, %v624
      %v657 = vpack.c.b16 %v627, %v626
      %v658 = vpack.c.b16 %v629, %v628
      %v659 = vpack.c.b16 %v631, %v630
      %v660 = vpack.c.b16 %v633, %v632
      %v661 = vpack.c.b16 %v635, %v634
      %v662 = vpack.c.b16 %v637, %v636
      %v663 = vpack.c.b16 %v639, %v638
      %688 = vmatprep.subr.bf16.mxu0 0
      %689 = vmatpush1.bf16.msra.mxu0 %v647
      %690 = vmatprep.subr.bf16.mxu0 0
      %691 = vmatpush1.bf16.msra.mxu0 %v646
      %692 = vmatprep.subr.bf16.mxu0 0
      %693 = vmatpush1.bf16.msra.mxu0 %v645
      %694 = vmatprep.subr.bf16.mxu0 0
      %695 = vmatpush1.bf16.msra.mxu0 %v644
      %696 = vmatprep.subr.bf16.mxu0 0
      %697 = vmatpush1.bf16.msra.mxu0 %v643
      %698 = vmatprep.subr.bf16.mxu0 0
      %699 = vmatpush1.bf16.msra.mxu0 %v642
      %700 = vmatprep.subr.bf16.mxu0 0
      %701 = vmatpush1.bf16.msra.mxu0 %v641
      %702 = vmatprep.subr.bf16.mxu0 0
      %703 = vmatpush1.bf16.msra.mxu0 %v640
      %704 = vmatprep.subr.bf16.mxu0 0
      %705 = vmatpush2.bf16.msra.mxu0 %v655
      %706 = vmatprep.subr.bf16.mxu0 0
      %707 = vmatpush2.bf16.msra.mxu0 %v654
      %708 = vmatprep.subr.bf16.mxu0 0
      %709 = vmatpush2.bf16.msra.mxu0 %v653
      %710 = vmatprep.subr.bf16.mxu0 0
      %711 = vmatpush2.bf16.msra.mxu0 %v652
      %712 = vmatprep.subr.bf16.mxu0 0
      %713 = vmatpush2.bf16.msra.mxu0 %v651
      %714 = vmatprep.subr.bf16.mxu0 0
      %715 = vmatpush2.bf16.msra.mxu0 %v650
      %716 = vmatprep.subr.bf16.mxu0 0
      %717 = vmatpush2.bf16.msra.mxu0 %v649
      %718 = vmatprep.subr.bf16.mxu0 0
      %719 = vmatpush2.bf16.msra.mxu0 %v648
      %720 = vmatprep.mubr.bf16.mxu0 %v534
      %721 = vmatmul.mubr.bf16.gmra.mxu0 %v532
      %v722 = vpop.f32.mrf.mxu0
      %v723 = vadd.f32 %v542, %v722
      %v724 = vpop.f32.mrf.mxu0
      %v725 = vpop.f32.mrf.mxu0
      %v726 = vadd.f32 %v542, %v725
      %v727 = vpop.f32.mrf.mxu0
      %728 = vmatprep.mubr.bf16.mxu0 %v535
      %729 = vmatmul.mubr.bf16.gmra.mxu0 %v533
      %v730 = vpop.f32.mrf.mxu0
      %v731 = vadd.f32 %v542, %v730
      %v732 = vpop.f32.mrf.mxu0
      %v733 = vpop.f32.mrf.mxu0
      %v734 = vadd.f32 %v542, %v733
      %v735 = vpop.f32.mrf.mxu0
      %736 = vdwg.mxu0
      %737 = vmatprep.subr.bf16.mxu0 0
      %738 = vmatpush1.bf16.msra.mxu0 %v663
      %739 = vmatprep.subr.bf16.mxu0 0
      %740 = vmatpush1.bf16.msra.mxu0 %v662
      %741 = vmatprep.subr.bf16.mxu0 0
      %742 = vmatpush1.bf16.msra.mxu0 %v661
      %743 = vmatprep.subr.bf16.mxu0 0
      %744 = vmatpush1.bf16.msra.mxu0 %v660
      %745 = vmatprep.subr.bf16.mxu0 0
      %746 = vmatpush1.bf16.msra.mxu0 %v659
      %747 = vmatprep.subr.bf16.mxu0 0
      %748 = vmatpush1.bf16.msra.mxu0 %v658
      %749 = vmatprep.subr.bf16.mxu0 0
      %750 = vmatpush1.bf16.msra.mxu0 %v657
      %751 = vmatprep.subr.bf16.mxu0 0
      %752 = vmatpush1.bf16.msra.mxu0 %v656
      %753 = vmatprep.subr.bf16.mxu0 0
      %754 = vmatpush2.bf16.msra.mxu0 0
      %755 = vmatprep.subr.bf16.mxu0 0
      %756 = vmatpush2.bf16.msra.mxu0 0
      %757 = vmatprep.subr.bf16.mxu0 0
      %758 = vmatpush2.bf16.msra.mxu0 0
      %759 = vmatprep.subr.bf16.mxu0 0
      %760 = vmatpush2.bf16.msra.mxu0 0
      %761 = vmatprep.subr.bf16.mxu0 0
      %762 = vmatpush2.bf16.msra.mxu0 0
      %763 = vmatprep.subr.bf16.mxu0 0
      %764 = vmatpush2.bf16.msra.mxu0 0
      %765 = vmatprep.subr.bf16.mxu0 0
      %766 = vmatpush2.bf16.msra.mxu0 0
      %767 = vmatprep.subr.bf16.mxu0 0
      %768 = vmatpush2.bf16.msra.mxu0 0
      %769 = vmatprep.mubr.bf16.mxu0 0
      %770 = vmatmul.mubr.bf16.gmra.mxu0 %v536
      %v771 = vpop.f32.mrf.mxu0
      %v772 = vadd.f32 %v723, %v771
      %v773 = vpop.f32.mrf.mxu0
      %v774 = vpop.f32.mrf.mxu0
      %v775 = vadd.f32 %v726, %v774
      %v776 = vpop.f32.mrf.mxu0
      %777 = vmatprep.mubr.bf16.mxu0 0
      %778 = vmatmul.mubr.bf16.gmra.mxu0 %v537
      %v779 = vpop.f32.mrf.mxu0
      %v780 = vadd.f32 %v731, %v779
      %v781 = vpop.f32.mrf.mxu0
      %v782 = vpop.f32.mrf.mxu0
      %v783 = vadd.f32 %v734, %v782
      %v784 = vpop.f32.mrf.mxu0
      %785 = vdwg.mxu0
      %v786 = vmax.f32 %v772, 0.0
      %v787 = vmax.f32 %v775, 0.0
      %v788 = vmax.f32 %v780, 0.0
      %v789 = vmax.f32 %v783, 0.0
      %s790 = scalar_lea.vmem %s1, 192
      %v791 = vld [vmem:[%s790] sm:$0xf]
      %v792 = vld [vmem:[%s790 + $0x4] sm:$0xf]
      %v793 = vld [vmem:[%s790 + $0x8] sm:$0xf]
      %v794 = vld [vmem:[%s790 + $0xc] sm:$0xf]
      %v795 = vld [vmem:[%s790 + $0x10] sm:$0xf]
      %v796 = vld [vmem:[%s790 + $0x14] sm:$0xf]
      %v797 = vld [vmem:[%s790 + $0x18] sm:$0xf]
      %v798 = vld [vmem:[%s790 + $0x1c] sm:$0xf]
      %v799 = vld [vmem:[%s790 + $0x20] sm:$0xf]
      %v800 = vld [vmem:[%s790 + $0x24] sm:$0xf]
      %v801 = vld [vmem:[%s790 + $0x28] sm:$0xf]
      %v802 = vld [vmem:[%s790 + $0x2c] sm:$0xf]
      %v803 = vld [vmem:[%s790 + $0x30] sm:$0xf]
      %v804 = vld [vmem:[%s790 + $0x34] sm:$0xf]
      %v805 = vld [vmem:[%s790 + $0x38] sm:$0xf]
      %v806 = vld [vmem:[%s790 + $0x3c] sm:$0xf]
      %v807 = vld [vmem:[%s790 + $0x40] sm:$0xf]
      %v808 = vld [vmem:[%s790 + $0x44] sm:$0xf]
      %v809 = vld [vmem:[%s790 + $0x48] sm:$0xf]
      %v810 = vld [vmem:[%s790 + $0x4c] sm:$0xf]
      %v811 = vld [vmem:[%s790 + $0x50] sm:$0xf]
      %v812 = vld [vmem:[%s790 + $0x54] sm:$0xf]
      %v813 = vld [vmem:[%s790 + $0x58] sm:$0xf]
      %v814 = vld [vmem:[%s790 + $0x5c] sm:$0xf]
      %v815 = vld [vmem:[%s790 + $0x60] sm:$0xf]
      %v816 = vld [vmem:[%s790 + $0x64] sm:$0xf]
      %v817 = vld [vmem:[%s790 + $0x68] sm:$0xf]
      %v818 = vld [vmem:[%s790 + $0x6c] sm:$0xf]
      %v819 = vld [vmem:[%s790 + $0x70] sm:$0xf]
      %v820 = vld [vmem:[%s790 + $0x74] sm:$0xf]
      %v821 = vld [vmem:[%s790 + $0x78] sm:$0xf]
      %v822 = vld [vmem:[%s790 + $0x7c] sm:$0xf]
      %v823 = vld [vmem:[%s790 + $0x80] sm:$0xf]
      %v824 = vld [vmem:[%s790 + $0x84] sm:$0xf]
      %v825 = vld [vmem:[%s790 + $0x88] sm:$0xf]
      %v826 = vld [vmem:[%s790 + $0x8c] sm:$0xf]
      %v827 = vld [vmem:[%s790 + $0x90] sm:$0xf]
      %v828 = vld [vmem:[%s790 + $0x94] sm:$0xf]
      %v829 = vld [vmem:[%s790 + $0x98] sm:$0xf]
      %v830 = vld [vmem:[%s790 + $0x9c] sm:$0xf]
      %v831 = vld [vmem:[%s790 + $0xa0] sm:$0xf]
      %v832 = vld [vmem:[%s790 + $0xa4] sm:$0xf]
      %v833 = vld [vmem:[%s790 + $0xa8] sm:$0xf]
      %v834 = vld [vmem:[%s790 + $0xac] sm:$0xf]
      %v835 = vld [vmem:[%s790 + $0xb0] sm:$0xf]
      %v836 = vld [vmem:[%s790 + $0xb4] sm:$0xf]
      %v837 = vld [vmem:[%s790 + $0xb8] sm:$0xf]
      %v838 = vld [vmem:[%s790 + $0xbc] sm:$0xf]
      %s839 = scalar_lea.vmem %s6, 1
      %v840 = vld [vmem:[%s839] sm:$0x1]
      %v841 = vrot.slane %v786, 7
      %v842 = vrot.slane %v787, 7
      %v843 = vrot.slane %v788, 7
      %v844 = vrot.slane %v789, 7
      %v845 = vsel %vm510, %v843, %v844
      %v846 = vsel %vm510, %v842, %v843
      %v847 = vsel %vm510, %v841, %v842
      %v848 = vsel %vm510, %v844, %v841
      %v849 = vsel %vm421, %v848, 0.0
      %v850 = vsel %vm422, %v847, 0.0
      %v851 = vsel %vm423, %v846, 0.0
      %v852 = vsel %vm424, %v845, 0.0
      %v853 = vrot.slane %v786, 1
      %v854 = vrot.slane %v787, 1
      %v855 = vrot.slane %v788, 1
      %v856 = vrot.slane %v789, 1
      %v857 = vsel %vm523, %v855, %v856
      %v858 = vsel %vm523, %v854, %v855
      %v859 = vsel %vm523, %v853, %v854
      %v860 = vsel %vm523, %v856, %v853
      %v861 = vsel %vm425, %v859, 0.0
      %v862 = vsel %vm426, %v858, 0.0
      %v863 = vsel %vm427, %v857, 0.0
      %v864 = vsel %vm428, %v860, 0.0
      %v865 = vpack.c.bf16 %v850, %v849
      %v866 = vpack.c.bf16 %v852, %v851
      %v867 = vpack.c.bf16 %v787, %v786
      %v868 = vpack.c.bf16 %v789, %v788
      %v869 = vpack.c.bf16 %v862, %v861
      %v870 = vpack.c.bf16 %v864, %v863
      %v872 = vlaneseq
      %v873 = vshrl.u32 %v872, 7
      %v874 = vsub.s32 0, %v873
      %v875 = vrot.slane %v840, %v874
      %v925 = vunpack.c.l.b16 %v791
      %v926 = vunpack.c.l.b16 %v792
      %v927 = vunpack.c.l.b16 %v793
      %v928 = vunpack.c.l.b16 %v794
      %v929 = vunpack.c.l.b16 %v795
      %v930 = vunpack.c.l.b16 %v796
      %v931 = vunpack.c.l.b16 %v797
      %v932 = vunpack.c.l.b16 %v798
      %v933 = vunpack.c.l.b16 %v799
      %v934 = vunpack.c.l.b16 %v800
      %v935 = vunpack.c.l.b16 %v801
      %v936 = vunpack.c.l.b16 %v802
      %v937 = vunpack.c.l.b16 %v803
      %v938 = vunpack.c.l.b16 %v804
      %v939 = vunpack.c.l.b16 %v805
      %v940 = vunpack.c.l.b16 %v806
      %v941 = vunpack.c.l.b16 %v807
      %v942 = vunpack.c.l.b16 %v808
      %v943 = vunpack.c.l.b16 %v809
      %v944 = vunpack.c.l.b16 %v810
      %v945 = vunpack.c.l.b16 %v811
      %v946 = vunpack.c.l.b16 %v812
      %v947 = vunpack.c.l.b16 %v813
      %v948 = vunpack.c.l.b16 %v814
      %v949 = vunpack.c.l.b16 %v815
      %v950 = vunpack.c.l.b16 %v816
      %v951 = vunpack.c.l.b16 %v817
      %v952 = vunpack.c.l.b16 %v818
      %v953 = vunpack.c.l.b16 %v819
      %v954 = vunpack.c.l.b16 %v820
      %v955 = vunpack.c.l.b16 %v821
      %v956 = vunpack.c.l.b16 %v822
      %v957 = vunpack.c.l.b16 %v823
      %v958 = vunpack.c.l.b16 %v824
      %v959 = vunpack.c.l.b16 %v825
      %v960 = vunpack.c.l.b16 %v826
      %v961 = vunpack.c.l.b16 %v827
      %v962 = vunpack.c.l.b16 %v828
      %v963 = vunpack.c.l.b16 %v829
      %v964 = vunpack.c.l.b16 %v830
      %v965 = vunpack.c.l.b16 %v831
      %v966 = vunpack.c.l.b16 %v832
      %v967 = vunpack.c.l.b16 %v833
      %v968 = vunpack.c.l.b16 %v834
      %v969 = vunpack.c.l.b16 %v835
      %v970 = vunpack.c.l.b16 %v836
      %v971 = vunpack.c.l.b16 %v837
      %v972 = vunpack.c.l.b16 %v838
      %v973 = vpack.c.b16 %v926, %v925
      %v974 = vpack.c.b16 %v928, %v927
      %v975 = vpack.c.b16 %v930, %v929
      %v976 = vpack.c.b16 %v932, %v931
      %v977 = vpack.c.b16 %v934, %v933
      %v978 = vpack.c.b16 %v936, %v935
      %v979 = vpack.c.b16 %v938, %v937
      %v980 = vpack.c.b16 %v940, %v939
      %v981 = vpack.c.b16 %v942, %v941
      %v982 = vpack.c.b16 %v944, %v943
      %v983 = vpack.c.b16 %v946, %v945
      %v984 = vpack.c.b16 %v948, %v947
      %v985 = vpack.c.b16 %v950, %v949
      %v986 = vpack.c.b16 %v952, %v951
      %v987 = vpack.c.b16 %v954, %v953
      %v988 = vpack.c.b16 %v956, %v955
      %v989 = vpack.c.b16 %v958, %v957
      %v990 = vpack.c.b16 %v960, %v959
      %v991 = vpack.c.b16 %v962, %v961
      %v992 = vpack.c.b16 %v964, %v963
      %v993 = vpack.c.b16 %v966, %v965
      %v994 = vpack.c.b16 %v968, %v967
      %v995 = vpack.c.b16 %v970, %v969
      %v996 = vpack.c.b16 %v972, %v971
      %1021 = vmatprep.subr.bf16.mxu0 0
      %1022 = vmatpush1.bf16.msra.mxu0 %v980
      %1023 = vmatprep.subr.bf16.mxu0 0
      %1024 = vmatpush1.bf16.msra.mxu0 %v979
      %1025 = vmatprep.subr.bf16.mxu0 0
      %1026 = vmatpush1.bf16.msra.mxu0 %v978
      %1027 = vmatprep.subr.bf16.mxu0 0
      %1028 = vmatpush1.bf16.msra.mxu0 %v977
      %1029 = vmatprep.subr.bf16.mxu0 0
      %1030 = vmatpush1.bf16.msra.mxu0 %v976
      %1031 = vmatprep.subr.bf16.mxu0 0
      %1032 = vmatpush1.bf16.msra.mxu0 %v975
      %1033 = vmatprep.subr.bf16.mxu0 0
      %1034 = vmatpush1.bf16.msra.mxu0 %v974
      %1035 = vmatprep.subr.bf16.mxu0 0
      %1036 = vmatpush1.bf16.msra.mxu0 %v973
      %1037 = vmatprep.subr.bf16.mxu0 0
      %1038 = vmatpush2.bf16.msra.mxu0 %v988
      %1039 = vmatprep.subr.bf16.mxu0 0
      %1040 = vmatpush2.bf16.msra.mxu0 %v987
      %1041 = vmatprep.subr.bf16.mxu0 0
      %1042 = vmatpush2.bf16.msra.mxu0 %v986
      %1043 = vmatprep.subr.bf16.mxu0 0
      %1044 = vmatpush2.bf16.msra.mxu0 %v985
      %1045 = vmatprep.subr.bf16.mxu0 0
      %1046 = vmatpush2.bf16.msra.mxu0 %v984
      %1047 = vmatprep.subr.bf16.mxu0 0
      %1048 = vmatpush2.bf16.msra.mxu0 %v983
      %1049 = vmatprep.subr.bf16.mxu0 0
      %1050 = vmatpush2.bf16.msra.mxu0 %v982
      %1051 = vmatprep.subr.bf16.mxu0 0
      %1052 = vmatpush2.bf16.msra.mxu0 %v981
      %1053 = vmatprep.mubr.bf16.mxu0 %v867
      %1054 = vmatmul.mubr.bf16.gmra.mxu0 %v865
      %v1055 = vpop.f32.mrf.mxu0
      %v1056 = vadd.f32 %v875, %v1055
      %v1057 = vpop.f32.mrf.mxu0
      %v1058 = vpop.f32.mrf.mxu0
      %v1059 = vadd.f32 %v875, %v1058
      %v1060 = vpop.f32.mrf.mxu0
      %1061 = vmatprep.mubr.bf16.mxu0 %v868
      %1062 = vmatmul.mubr.bf16.gmra.mxu0 %v866
      %v1063 = vpop.f32.mrf.mxu0
      %v1064 = vadd.f32 %v875, %v1063
      %v1065 = vpop.f32.mrf.mxu0
      %v1066 = vpop.f32.mrf.mxu0
      %v1067 = vadd.f32 %v875, %v1066
      %v1068 = vpop.f32.mrf.mxu0
      %1069 = vdwg.mxu0
      %1070 = vmatprep.subr.bf16.mxu0 0
      %1071 = vmatpush1.bf16.msra.mxu0 %v996
      %1072 = vmatprep.subr.bf16.mxu0 0
      %1073 = vmatpush1.bf16.msra.mxu0 %v995
      %1074 = vmatprep.subr.bf16.mxu0 0
      %1075 = vmatpush1.bf16.msra.mxu0 %v994
      %1076 = vmatprep.subr.bf16.mxu0 0
      %1077 = vmatpush1.bf16.msra.mxu0 %v993
      %1078 = vmatprep.subr.bf16.mxu0 0
      %1079 = vmatpush1.bf16.msra.mxu0 %v992
      %1080 = vmatprep.subr.bf16.mxu0 0
      %1081 = vmatpush1.bf16.msra.mxu0 %v991
      %1082 = vmatprep.subr.bf16.mxu0 0
      %1083 = vmatpush1.bf16.msra.mxu0 %v990
      %1084 = vmatprep.subr.bf16.mxu0 0
      %1085 = vmatpush1.bf16.msra.mxu0 %v989
      %1086 = vmatprep.subr.bf16.mxu0 0
      %1087 = vmatpush2.bf16.msra.mxu0 0
      %1088 = vmatprep.subr.bf16.mxu0 0
      %1089 = vmatpush2.bf16.msra.mxu0 0
      %1090 = vmatprep.subr.bf16.mxu0 0
      %1091 = vmatpush2.bf16.msra.mxu0 0
      %1092 = vmatprep.subr.bf16.mxu0 0
      %1093 = vmatpush2.bf16.msra.mxu0 0
      %1094 = vmatprep.subr.bf16.mxu0 0
      %1095 = vmatpush2.bf16.msra.mxu0 0
      %1096 = vmatprep.subr.bf16.mxu0 0
      %1097 = vmatpush2.bf16.msra.mxu0 0
      %1098 = vmatprep.subr.bf16.mxu0 0
      %1099 = vmatpush2.bf16.msra.mxu0 0
      %1100 = vmatprep.subr.bf16.mxu0 0
      %1101 = vmatpush2.bf16.msra.mxu0 0
      %1102 = vmatprep.mubr.bf16.mxu0 0
      %1103 = vmatmul.mubr.bf16.gmra.mxu0 %v869
      %v1104 = vpop.f32.mrf.mxu0
      %v1105 = vadd.f32 %v1056, %v1104
      %v1106 = vpop.f32.mrf.mxu0
      %v1107 = vpop.f32.mrf.mxu0
      %v1108 = vadd.f32 %v1059, %v1107
      %v1109 = vpop.f32.mrf.mxu0
      %1110 = vmatprep.mubr.bf16.mxu0 0
      %1111 = vmatmul.mubr.bf16.gmra.mxu0 %v870
      %v1112 = vpop.f32.mrf.mxu0
      %v1113 = vadd.f32 %v1064, %v1112
      %v1114 = vpop.f32.mrf.mxu0
      %v1115 = vpop.f32.mrf.mxu0
      %v1116 = vadd.f32 %v1067, %v1115
      %v1117 = vpop.f32.mrf.mxu0
      %1118 = vdwg.mxu0
      %v1119 = vadd.f32 %v1105, %v364
      %v1120 = vadd.f32 %v1108, %v365
      %v1121 = vadd.f32 %v1113, %v366
      %v1122 = vadd.f32 %v1116, %v367
      %v1123 = vld [vmem:[%s2] sm:$0xf]
      %v1124 = vld [vmem:[%s2 + $0x4] sm:$0xf]
      %v1125 = vld [vmem:[%s2 + $0x8] sm:$0xf]
      %v1126 = vld [vmem:[%s2 + $0xc] sm:$0xf]
      %v1127 = vld [vmem:[%s2 + $0x10] sm:$0xf]
      %v1128 = vld [vmem:[%s2 + $0x14] sm:$0xf]
      %v1129 = vld [vmem:[%s2 + $0x18] sm:$0xf]
      %v1130 = vld [vmem:[%s2 + $0x1c] sm:$0xf]
      %v1131 = vld [vmem:[%s2 + $0x20] sm:$0xf]
      %v1132 = vld [vmem:[%s2 + $0x24] sm:$0xf]
      %v1133 = vld [vmem:[%s2 + $0x28] sm:$0xf]
      %v1134 = vld [vmem:[%s2 + $0x2c] sm:$0xf]
      %v1135 = vld [vmem:[%s2 + $0x30] sm:$0xf]
      %v1136 = vld [vmem:[%s2 + $0x34] sm:$0xf]
      %v1137 = vld [vmem:[%s2 + $0x38] sm:$0xf]
      %v1138 = vld [vmem:[%s2 + $0x3c] sm:$0xf]
      %v1139 = vld [vmem:[%s2 + $0x40] sm:$0xf]
      %v1140 = vld [vmem:[%s2 + $0x44] sm:$0xf]
      %v1141 = vld [vmem:[%s2 + $0x48] sm:$0xf]
      %v1142 = vld [vmem:[%s2 + $0x4c] sm:$0xf]
      %v1143 = vld [vmem:[%s2 + $0x50] sm:$0xf]
      %v1144 = vld [vmem:[%s2 + $0x54] sm:$0xf]
      %v1145 = vld [vmem:[%s2 + $0x58] sm:$0xf]
      %v1146 = vld [vmem:[%s2 + $0x5c] sm:$0xf]
      %v1147 = vld [vmem:[%s2 + $0x60] sm:$0xf]
      %v1148 = vld [vmem:[%s2 + $0x64] sm:$0xf]
      %v1149 = vld [vmem:[%s2 + $0x68] sm:$0xf]
      %v1150 = vld [vmem:[%s2 + $0x6c] sm:$0xf]
      %v1151 = vld [vmem:[%s2 + $0x70] sm:$0xf]
      %v1152 = vld [vmem:[%s2 + $0x74] sm:$0xf]
      %v1153 = vld [vmem:[%s2 + $0x78] sm:$0xf]
      %v1154 = vld [vmem:[%s2 + $0x7c] sm:$0xf]
      %v1155 = vld [vmem:[%s2 + $0x80] sm:$0xf]
      %v1156 = vld [vmem:[%s2 + $0x84] sm:$0xf]
      %v1157 = vld [vmem:[%s2 + $0x88] sm:$0xf]
      %v1158 = vld [vmem:[%s2 + $0x8c] sm:$0xf]
      %v1159 = vld [vmem:[%s2 + $0x90] sm:$0xf]
      %v1160 = vld [vmem:[%s2 + $0x94] sm:$0xf]
      %v1161 = vld [vmem:[%s2 + $0x98] sm:$0xf]
      %v1162 = vld [vmem:[%s2 + $0x9c] sm:$0xf]
      %v1163 = vld [vmem:[%s2 + $0xa0] sm:$0xf]
      %v1164 = vld [vmem:[%s2 + $0xa4] sm:$0xf]
      %v1165 = vld [vmem:[%s2 + $0xa8] sm:$0xf]
      %v1166 = vld [vmem:[%s2 + $0xac] sm:$0xf]
      %v1167 = vld [vmem:[%s2 + $0xb0] sm:$0xf]
      %v1168 = vld [vmem:[%s2 + $0xb4] sm:$0xf]
      %v1169 = vld [vmem:[%s2 + $0xb8] sm:$0xf]
      %v1170 = vld [vmem:[%s2 + $0xbc] sm:$0xf]
      %v1171 = vrot.slane %v1119, 7
      %v1172 = vrot.slane %v1120, 7
      %v1173 = vrot.slane %v1121, 7
      %v1174 = vrot.slane %v1122, 7
      %v1175 = vsel %vm510, %v1173, %v1174
      %v1176 = vsel %vm510, %v1172, %v1173
      %v1177 = vsel %vm510, %v1171, %v1172
      %v1178 = vsel %vm510, %v1174, %v1171
      %v1179 = vsel %vm421, %v1178, 0.0
      %v1180 = vsel %vm422, %v1177, 0.0
      %v1181 = vsel %vm423, %v1176, 0.0
      %v1182 = vsel %vm424, %v1175, 0.0
      %v1183 = vrot.slane %v1119, 1
      %v1184 = vrot.slane %v1120, 1
      %v1185 = vrot.slane %v1121, 1
      %v1186 = vrot.slane %v1122, 1
      %v1187 = vsel %vm523, %v1185, %v1186
      %v1188 = vsel %vm523, %v1184, %v1185
      %v1189 = vsel %vm523, %v1183, %v1184
      %v1190 = vsel %vm523, %v1186, %v1183
      %v1191 = vsel %vm425, %v1189, 0.0
      %v1192 = vsel %vm426, %v1188, 0.0
      %v1193 = vsel %vm427, %v1187, 0.0
      %v1194 = vsel %vm428, %v1190, 0.0
      %v1195 = vpack.c.bf16 %v1180, %v1179
      %v1196 = vpack.c.bf16 %v1182, %v1181
      %v1197 = vpack.c.bf16 %v1120, %v1119
      %v1198 = vpack.c.bf16 %v1122, %v1121
      %v1199 = vpack.c.bf16 %v1192, %v1191
      %v1200 = vpack.c.bf16 %v1194, %v1193
      %v1249 = vunpack.c.l.b16 %v1123
      %v1250 = vunpack.c.l.b16 %v1124
      %v1251 = vunpack.c.l.b16 %v1125
      %v1252 = vunpack.c.l.b16 %v1126
      %v1253 = vunpack.c.l.b16 %v1127
      %v1254 = vunpack.c.l.b16 %v1128
      %v1255 = vunpack.c.l.b16 %v1129
      %v1256 = vunpack.c.l.b16 %v1130
      %v1257 = vunpack.c.l.b16 %v1131
      %v1258 = vunpack.c.l.b16 %v1132
      %v1259 = vunpack.c.l.b16 %v1133
      %v1260 = vunpack.c.l.b16 %v1134
      %v1261 = vunpack.c.l.b16 %v1135
      %v1262 = vunpack.c.l.b16 %v1136
      %v1263 = vunpack.c.l.b16 %v1137
      %v1264 = vunpack.c.l.b16 %v1138
      %v1265 = vunpack.c.l.b16 %v1139
      %v1266 = vunpack.c.l.b16 %v1140
      %v1267 = vunpack.c.l.b16 %v1141
      %v1268 = vunpack.c.l.b16 %v1142
      %v1269 = vunpack.c.l.b16 %v1143
      %v1270 = vunpack.c.l.b16 %v1144
      %v1271 = vunpack.c.l.b16 %v1145
      %v1272 = vunpack.c.l.b16 %v1146
      %v1273 = vunpack.c.l.b16 %v1147
      %v1274 = vunpack.c.l.b16 %v1148
      %v1275 = vunpack.c.l.b16 %v1149
      %v1276 = vunpack.c.l.b16 %v1150
      %v1277 = vunpack.c.l.b16 %v1151
      %v1278 = vunpack.c.l.b16 %v1152
      %v1279 = vunpack.c.l.b16 %v1153
      %v1280 = vunpack.c.l.b16 %v1154
      %v1281 = vunpack.c.l.b16 %v1155
      %v1282 = vunpack.c.l.b16 %v1156
      %v1283 = vunpack.c.l.b16 %v1157
      %v1284 = vunpack.c.l.b16 %v1158
      %v1285 = vunpack.c.l.b16 %v1159
      %v1286 = vunpack.c.l.b16 %v1160
      %v1287 = vunpack.c.l.b16 %v1161
      %v1288 = vunpack.c.l.b16 %v1162
      %v1289 = vunpack.c.l.b16 %v1163
      %v1290 = vunpack.c.l.b16 %v1164
      %v1291 = vunpack.c.l.b16 %v1165
      %v1292 = vunpack.c.l.b16 %v1166
      %v1293 = vunpack.c.l.b16 %v1167
      %v1294 = vunpack.c.l.b16 %v1168
      %v1295 = vunpack.c.l.b16 %v1169
      %v1296 = vunpack.c.l.b16 %v1170
      %v1297 = vpack.c.b16 %v1250, %v1249
      %v1298 = vpack.c.b16 %v1252, %v1251
      %v1299 = vpack.c.b16 %v1254, %v1253
      %v1300 = vpack.c.b16 %v1256, %v1255
      %v1301 = vpack.c.b16 %v1258, %v1257
      %v1302 = vpack.c.b16 %v1260, %v1259
      %v1303 = vpack.c.b16 %v1262, %v1261
      %v1304 = vpack.c.b16 %v1264, %v1263
      %v1305 = vpack.c.b16 %v1266, %v1265
      %v1306 = vpack.c.b16 %v1268, %v1267
      %v1307 = vpack.c.b16 %v1270, %v1269
      %v1308 = vpack.c.b16 %v1272, %v1271
      %v1309 = vpack.c.b16 %v1274, %v1273
      %v1310 = vpack.c.b16 %v1276, %v1275
      %v1311 = vpack.c.b16 %v1278, %v1277
      %v1312 = vpack.c.b16 %v1280, %v1279
      %v1313 = vpack.c.b16 %v1282, %v1281
      %v1314 = vpack.c.b16 %v1284, %v1283
      %v1315 = vpack.c.b16 %v1286, %v1285
      %v1316 = vpack.c.b16 %v1288, %v1287
      %v1317 = vpack.c.b16 %v1290, %v1289
      %v1318 = vpack.c.b16 %v1292, %v1291
      %v1319 = vpack.c.b16 %v1294, %v1293
      %v1320 = vpack.c.b16 %v1296, %v1295
      %1345 = vmatprep.subr.bf16.mxu0 0
      %1346 = vmatpush1.bf16.msra.mxu0 %v1304
      %1347 = vmatprep.subr.bf16.mxu0 0
      %1348 = vmatpush1.bf16.msra.mxu0 %v1303
      %1349 = vmatprep.subr.bf16.mxu0 0
      %1350 = vmatpush1.bf16.msra.mxu0 %v1302
      %1351 = vmatprep.subr.bf16.mxu0 0
      %1352 = vmatpush1.bf16.msra.mxu0 %v1301
      %1353 = vmatprep.subr.bf16.mxu0 0
      %1354 = vmatpush1.bf16.msra.mxu0 %v1300
      %1355 = vmatprep.subr.bf16.mxu0 0
      %1356 = vmatpush1.bf16.msra.mxu0 %v1299
      %1357 = vmatprep.subr.bf16.mxu0 0
      %1358 = vmatpush1.bf16.msra.mxu0 %v1298
      %1359 = vmatprep.subr.bf16.mxu0 0
      %1360 = vmatpush1.bf16.msra.mxu0 %v1297
      %1361 = vmatprep.subr.bf16.mxu0 0
      %1362 = vmatpush2.bf16.msra.mxu0 %v1312
      %1363 = vmatprep.subr.bf16.mxu0 0
      %1364 = vmatpush2.bf16.msra.mxu0 %v1311
      %1365 = vmatprep.subr.bf16.mxu0 0
      %1366 = vmatpush2.bf16.msra.mxu0 %v1310
      %1367 = vmatprep.subr.bf16.mxu0 0
      %1368 = vmatpush2.bf16.msra.mxu0 %v1309
      %1369 = vmatprep.subr.bf16.mxu0 0
      %1370 = vmatpush2.bf16.msra.mxu0 %v1308
      %1371 = vmatprep.subr.bf16.mxu0 0
      %1372 = vmatpush2.bf16.msra.mxu0 %v1307
      %1373 = vmatprep.subr.bf16.mxu0 0
      %1374 = vmatpush2.bf16.msra.mxu0 %v1306
      %1375 = vmatprep.subr.bf16.mxu0 0
      %1376 = vmatpush2.bf16.msra.mxu0 %v1305
      %1377 = vmatprep.mubr.bf16.mxu0 %v1197
      %1378 = vmatmul.mubr.bf16.gmra.mxu0 %v1195
      %v1379 = vpop.f32.mrf.mxu0
      %v1380 = vadd.f32 0.0, %v1379
      %v1381 = vpop.f32.mrf.mxu0
      %v1382 = vpop.f32.mrf.mxu0
      %v1383 = vadd.f32 0.0, %v1382
      %v1384 = vpop.f32.mrf.mxu0
      %1385 = vmatprep.mubr.bf16.mxu0 %v1198
      %1386 = vmatmul.mubr.bf16.gmra.mxu0 %v1196
      %v1387 = vpop.f32.mrf.mxu0
      %v1388 = vadd.f32 0.0, %v1387
      %v1389 = vpop.f32.mrf.mxu0
      %v1390 = vpop.f32.mrf.mxu0
      %v1391 = vadd.f32 0.0, %v1390
      %v1392 = vpop.f32.mrf.mxu0
      %1393 = vdwg.mxu0
      %1394 = vmatprep.subr.bf16.mxu0 0
      %1395 = vmatpush1.bf16.msra.mxu0 %v1320
      %1396 = vmatprep.subr.bf16.mxu0 0
      %1397 = vmatpush1.bf16.msra.mxu0 %v1319
      %1398 = vmatprep.subr.bf16.mxu0 0
      %1399 = vmatpush1.bf16.msra.mxu0 %v1318
      %1400 = vmatprep.subr.bf16.mxu0 0
      %1401 = vmatpush1.bf16.msra.mxu0 %v1317
      %1402 = vmatprep.subr.bf16.mxu0 0
      %1403 = vmatpush1.bf16.msra.mxu0 %v1316
      %1404 = vmatprep.subr.bf16.mxu0 0
      %1405 = vmatpush1.bf16.msra.mxu0 %v1315
      %1406 = vmatprep.subr.bf16.mxu0 0
      %1407 = vmatpush1.bf16.msra.mxu0 %v1314
      %1408 = vmatprep.subr.bf16.mxu0 0
      %1409 = vmatpush1.bf16.msra.mxu0 %v1313
      %1410 = vmatprep.subr.bf16.mxu0 0
      %1411 = vmatpush2.bf16.msra.mxu0 0
      %1412 = vmatprep.subr.bf16.mxu0 0
      %1413 = vmatpush2.bf16.msra.mxu0 0
      %1414 = vmatprep.subr.bf16.mxu0 0
      %1415 = vmatpush2.bf16.msra.mxu0 0
      %1416 = vmatprep.subr.bf16.mxu0 0
      %1417 = vmatpush2.bf16.msra.mxu0 0
      %1418 = vmatprep.subr.bf16.mxu0 0
      %1419 = vmatpush2.bf16.msra.mxu0 0
      %1420 = vmatprep.subr.bf16.mxu0 0
      %1421 = vmatpush2.bf16.msra.mxu0 0
      %1422 = vmatprep.subr.bf16.mxu0 0
      %1423 = vmatpush2.bf16.msra.mxu0 0
      %1424 = vmatprep.subr.bf16.mxu0 0
      %1425 = vmatpush2.bf16.msra.mxu0 0
      %1426 = vmatprep.mubr.bf16.mxu0 0
      %1427 = vmatmul.mubr.bf16.gmra.mxu0 %v1199
      %v1428 = vpop.f32.mrf.mxu0
      %v1429 = vadd.f32 %v1380, %v1428
      %v1430 = vpop.f32.mrf.mxu0
      %v1431 = vpop.f32.mrf.mxu0
      %v1432 = vadd.f32 %v1383, %v1431
      %v1433 = vpop.f32.mrf.mxu0
      %1434 = vmatprep.mubr.bf16.mxu0 0
      %1435 = vmatmul.mubr.bf16.gmra.mxu0 %v1200
      %v1436 = vpop.f32.mrf.mxu0
      %v1437 = vadd.f32 %v1388, %v1436
      %v1438 = vpop.f32.mrf.mxu0
      %v1439 = vpop.f32.mrf.mxu0
      %v1440 = vadd.f32 %v1391, %v1439
      %v1441 = vpop.f32.mrf.mxu0
      %1442 = vdwg.mxu0
      %v1443 = vld [vmem:[%s8] sm:$0xff]
      %v1444 = vld [vmem:[%s8 + $0x8] sm:$0xff]
      %s1445 = scalar_lea.vmem %s7, 4
      %v1446 = vld [vmem:[%s1445] sm:$0x1]
      %v1448 = vlaneseq
      %v1449 = vshrl.u32 %v1448, 7
      %v1450 = vsub.s32 0, %v1449
      %v1451 = vrot.slane %v1446, %v1450
      %vm1453 = vcmask 261120
      %v1455 = vsel %vm1453, %v1443, 0
      %v1458 = vsel %vm1453, %v1444, 0
      %1460 = vmatprep.subr.mxu0 0.0
      %1461 = vmatpush1.msra.mxu0 0.0
      %1462 = vmatprep.subr.mxu0 0.0
      %1463 = vmatpush1.msra.mxu0 0.0
      %1464 = vmatprep.subr.mxu0 0.0
      %1465 = vmatpush1.msra.mxu0 0.0
      %1466 = vmatprep.subr.mxu0 0.0
      %1467 = vmatpush1.msra.mxu0 0.0
      %1468 = vmatprep.subr.mxu0 0.0
      %1469 = vmatpush1.msra.mxu0 0.0
      %1470 = vmatprep.subr.mxu0 0.0
      %1471 = vmatpush1.msra.mxu0 0.0
      %1472 = vmatprep.subr.mxu0 0.0
      %1473 = vmatpush1.msra.mxu0 0.0
      %1474 = vmatprep.subr.mxu0 0.0
      %1475 = vmatpush1.msra.mxu0 0.0
      %1476 = vmatprep.subr.mxu0 0.0
      %1477 = vmatpush1.msra.mxu0 0.0
      %1478 = vmatprep.subr.mxu0 0.0
      %1479 = vmatpush1.msra.mxu0 0.0
      %1480 = vmatprep.subr.mxu0 0.0
      %1481 = vmatpush1.msra.mxu0 0.0
      %1482 = vmatprep.subr.mxu0 0.0
      %1483 = vmatpush1.msra.mxu0 0.0
      %1484 = vmatprep.subr.mxu0 0.0
      %1485 = vmatpush1.msra.mxu0 %v1440
      %1486 = vmatprep.subr.mxu0 0.0
      %1487 = vmatpush1.msra.mxu0 %v1437
      %1488 = vmatprep.subr.mxu0 0.0
      %1489 = vmatpush1.msra.mxu0 %v1432
      %1490 = vmatprep.subr.mxu0 0.0
      %1491 = vmatpush1.msra.mxu0 %v1429
      %1492 = vmatprep.subr.mxu0 0.0
      %1493 = vmatpush2.msra.mxu0 0.0
      %1494 = vmatprep.subr.mxu0 0.0
      %1495 = vmatpush2.msra.mxu0 0.0
      %1496 = vmatprep.subr.mxu0 0.0
      %1497 = vmatpush2.msra.mxu0 0.0
      %1498 = vmatprep.subr.mxu0 0.0
      %1499 = vmatpush2.msra.mxu0 0.0
      %1500 = vmatprep.subr.mxu0 0.0
      %1501 = vmatpush2.msra.mxu0 0.0
      %1502 = vmatprep.subr.mxu0 0.0
      %1503 = vmatpush2.msra.mxu0 0.0
      %1504 = vmatprep.subr.mxu0 0.0
      %1505 = vmatpush2.msra.mxu0 0.0
      %1506 = vmatprep.subr.mxu0 0.0
      %1507 = vmatpush2.msra.mxu0 0.0
      %1508 = vmatprep.subr.mxu0 0.0
      %1509 = vmatpush2.msra.mxu0 0.0
      %1510 = vmatprep.subr.mxu0 0.0
      %1511 = vmatpush2.msra.mxu0 0.0
      %1512 = vmatprep.subr.mxu0 0.0
      %1513 = vmatpush2.msra.mxu0 0.0
      %1514 = vmatprep.subr.mxu0 0.0
      %1515 = vmatpush2.msra.mxu0 0.0
      %1516 = vmatprep.subr.mxu0 0.0
      %1517 = vmatpush2.msra.mxu0 0.0
      %1518 = vmatprep.subr.mxu0 0.0
      %1519 = vmatpush2.msra.mxu0 0.0
      %1520 = vmatprep.subr.mxu0 0.0
      %1521 = vmatpush2.msra.mxu0 0.0
      %1522 = vmatprep.subr.mxu0 0.0
      %1523 = vmatpush2.msra.mxu0 0.0
      %1524 = vmatprep.mubr.f32.mxu0 0.0
      %1525 = vmatmul.mubr.f32.gmra.mxu0 %v1455
      %v1526 = vpop.f32.mrf.mxu0
      %v1527 = vadd.f32 %v1451, %v1526
      %v1528 = vpop.f32.mrf.mxu0
      %1529 = vmatprep.mubr.f32.mxu0 0.0
      %1530 = vmatmul.mubr.f32.gmra.mxu0 %v1458
      %v1531 = vpop.f32.mrf.mxu0
      %v1532 = vadd.f32 %v1451, %v1531
      %v1533 = vpop.f32.mrf.mxu0
      %1534 = vdwg.mxu0
      %v1535 = vrot.slane %v1527, 7
      %v1536 = vrot.slane %v1532, 7
      %v1537 = vsel %vm510, %v1535, %v1536
      %v1538 = vsel %vm510, %v1536, %v1535
      %v1539 = vsel %vm453, %v1538, 0.0
      %v1540 = vsel %vm454, %v1537, 0.0
      %v1541 = vrot.slane %v1527, 1
      %v1542 = vrot.slane %v1532, 1
      %v1543 = vsel %vm523, %v1541, %v1542
      %v1544 = vsel %vm523, %v1542, %v1541
      %v1545 = vsel %vm455, %v1543, 0.0
      %v1546 = vsel %vm456, %v1544, 0.0
      %v1547 = vpack.c.bf16 %v1540, %v1539
      %v1548 = vpack.c.bf16 %v1532, %v1527
      %v1549 = vpack.c.bf16 %v1546, %v1545
      %v1550 = vld [vmem:[%s7] sm:$0x1]
      %v1551 = vld [vmem:[%s3] sm:$0xf]
      %v1552 = vld [vmem:[%s3 + $0x4] sm:$0xf]
      %v1553 = vld [vmem:[%s3 + $0x8] sm:$0xf]
      %v1554 = vld [vmem:[%s3 + $0xc] sm:$0xf]
      %v1555 = vld [vmem:[%s3 + $0x10] sm:$0xf]
      %v1556 = vld [vmem:[%s3 + $0x14] sm:$0xf]
      %v1557 = vld [vmem:[%s3 + $0x18] sm:$0xf]
      %v1558 = vld [vmem:[%s3 + $0x1c] sm:$0xf]
      %s1559 = scalar_lea.vmem %s3, 32
      %v1560 = vld [vmem:[%s1559] sm:$0xf]
      %v1561 = vld [vmem:[%s1559 + $0x4] sm:$0xf]
      %v1562 = vld [vmem:[%s1559 + $0x8] sm:$0xf]
      %v1563 = vld [vmem:[%s1559 + $0xc] sm:$0xf]
      %v1564 = vld [vmem:[%s1559 + $0x10] sm:$0xf]
      %v1565 = vld [vmem:[%s1559 + $0x14] sm:$0xf]
      %v1566 = vld [vmem:[%s1559 + $0x18] sm:$0xf]
      %v1567 = vld [vmem:[%s1559 + $0x1c] sm:$0xf]
      %v1576 = vunpack.c.l.b16 %v1560
      %v1577 = vunpack.c.l.b16 %v1561
      %v1578 = vunpack.c.l.b16 %v1562
      %v1579 = vunpack.c.l.b16 %v1563
      %v1580 = vunpack.c.l.b16 %v1564
      %v1581 = vunpack.c.l.b16 %v1565
      %v1582 = vunpack.c.l.b16 %v1566
      %v1583 = vunpack.c.l.b16 %v1567
      %v1584 = vpack.c.b16 %v1577, %v1576
      %v1585 = vpack.c.b16 %v1579, %v1578
      %v1586 = vpack.c.b16 %v1581, %v1580
      %v1587 = vpack.c.b16 %v1583, %v1582
      %vm1592 = vcmask 523264
      %v1594 = vsel %vm1592, %v1548, 0
      %1596 = vmatprep.subr.bf16.mxu0 0
      %1597 = vmatpush1.bf16.msra.mxu0 0
      %1598 = vmatprep.subr.bf16.mxu0 0
      %1599 = vmatpush1.bf16.msra.mxu0 0
      %1600 = vmatprep.subr.bf16.mxu0 0
      %1601 = vmatpush1.bf16.msra.mxu0 0
      %1602 = vmatprep.subr.bf16.mxu0 0
      %1603 = vmatpush1.bf16.msra.mxu0 0
      %1604 = vmatprep.subr.bf16.mxu0 0
      %1605 = vmatpush1.bf16.msra.mxu0 %v1587
      %1606 = vmatprep.subr.bf16.mxu0 0
      %1607 = vmatpush1.bf16.msra.mxu0 %v1586
      %1608 = vmatprep.subr.bf16.mxu0 0
      %1609 = vmatpush1.bf16.msra.mxu0 %v1585
      %1610 = vmatprep.subr.bf16.mxu0 0
      %1611 = vmatpush1.bf16.msra.mxu0 %v1584
      %1612 = vmatprep.subr.bf16.mxu0 0
      %1613 = vmatpush2.bf16.msra.mxu0 0
      %1614 = vmatprep.subr.bf16.mxu0 0
      %1615 = vmatpush2.bf16.msra.mxu0 0
      %1616 = vmatprep.subr.bf16.mxu0 0
      %1617 = vmatpush2.bf16.msra.mxu0 0
      %1618 = vmatprep.subr.bf16.mxu0 0
      %1619 = vmatpush2.bf16.msra.mxu0 0
      %1620 = vmatprep.subr.bf16.mxu0 0
      %1621 = vmatpush2.bf16.msra.mxu0 0
      %1622 = vmatprep.subr.bf16.mxu0 0
      %1623 = vmatpush2.bf16.msra.mxu0 0
      %1624 = vmatprep.subr.bf16.mxu0 0
      %1625 = vmatpush2.bf16.msra.mxu0 0
      %1626 = vmatprep.subr.bf16.mxu0 0
      %1627 = vmatpush2.bf16.msra.mxu0 0
      %1628 = vmatprep.mubr.bf16.mxu0 0
      %1629 = vmatmul.mubr.bf16.gmra.mxu0 %v1594
      %v1630 = vpop.f32.mrf.mxu0
      %v1631 = vadd.f32 0.0, %v1630
      %v1632 = vpop.f32.mrf.mxu0
      %v1633 = vpop.f32.mrf.mxu0
      %v1634 = vadd.f32 0.0, %v1633
      %v1635 = vpop.f32.mrf.mxu0
      %1636 = vdwg.mxu0
      %v1645 = vunpack.c.l.b16 %v1551
      %v1646 = vunpack.c.l.b16 %v1552
      %v1647 = vunpack.c.l.b16 %v1553
      %v1648 = vunpack.c.l.b16 %v1554
      %v1649 = vunpack.c.l.b16 %v1555
      %v1650 = vunpack.c.l.b16 %v1556
      %v1651 = vunpack.c.l.b16 %v1557
      %v1652 = vunpack.c.l.b16 %v1558
      %v1653 = vpack.c.b16 %v1646, %v1645
      %v1654 = vpack.c.b16 %v1648, %v1647
      %v1655 = vpack.c.b16 %v1650, %v1649
      %v1656 = vpack.c.b16 %v1652, %v1651
      %v1662 = vsel %vm1592, %v1547, 0
      %1664 = vmatprep.subr.bf16.mxu0 0
      %1665 = vmatpush1.bf16.msra.mxu0 0
      %1666 = vmatprep.subr.bf16.mxu0 0
      %1667 = vmatpush1.bf16.msra.mxu0 0
      %1668 = vmatprep.subr.bf16.mxu0 0
      %1669 = vmatpush1.bf16.msra.mxu0 0
      %1670 = vmatprep.subr.bf16.mxu0 0
      %1671 = vmatpush1.bf16.msra.mxu0 0
      %1672 = vmatprep.subr.bf16.mxu0 0
      %1673 = vmatpush1.bf16.msra.mxu0 %v1656
      %1674 = vmatprep.subr.bf16.mxu0 0
      %1675 = vmatpush1.bf16.msra.mxu0 %v1655
      %1676 = vmatprep.subr.bf16.mxu0 0
      %1677 = vmatpush1.bf16.msra.mxu0 %v1654
      %1678 = vmatprep.subr.bf16.mxu0 0
      %1679 = vmatpush1.bf16.msra.mxu0 %v1653
      %1680 = vmatprep.subr.bf16.mxu0 0
      %1681 = vmatpush2.bf16.msra.mxu0 0
      %1682 = vmatprep.subr.bf16.mxu0 0
      %1683 = vmatpush2.bf16.msra.mxu0 0
      %1684 = vmatprep.subr.bf16.mxu0 0
      %1685 = vmatpush2.bf16.msra.mxu0 0
      %1686 = vmatprep.subr.bf16.mxu0 0
      %1687 = vmatpush2.bf16.msra.mxu0 0
      %1688 = vmatprep.subr.bf16.mxu0 0
      %1689 = vmatpush2.bf16.msra.mxu0 0
      %1690 = vmatprep.subr.bf16.mxu0 0
      %1691 = vmatpush2.bf16.msra.mxu0 0
      %1692 = vmatprep.subr.bf16.mxu0 0
      %1693 = vmatpush2.bf16.msra.mxu0 0
      %1694 = vmatprep.subr.bf16.mxu0 0
      %1695 = vmatpush2.bf16.msra.mxu0 0
      %1696 = vmatprep.mubr.bf16.mxu0 0
      %1697 = vmatmul.mubr.bf16.gmra.mxu0 %v1662
      %v1698 = vpop.f32.mrf.mxu0
      %v1699 = vadd.f32 %v1631, %v1698
      %v1700 = vpop.f32.mrf.mxu0
      %v1701 = vpop.f32.mrf.mxu0
      %v1702 = vadd.f32 %v1634, %v1701
      %v1703 = vpop.f32.mrf.mxu0
      %1704 = vdwg.mxu0
      %s1705 = scalar_lea.vmem %s3, 64
      %v1706 = vld [vmem:[%s1705] sm:$0xf]
      %v1707 = vld [vmem:[%s1705 + $0x4] sm:$0xf]
      %v1708 = vld [vmem:[%s1705 + $0x8] sm:$0xf]
      %v1709 = vld [vmem:[%s1705 + $0xc] sm:$0xf]
      %v1710 = vld [vmem:[%s1705 + $0x10] sm:$0xf]
      %v1711 = vld [vmem:[%s1705 + $0x14] sm:$0xf]
      %v1712 = vld [vmem:[%s1705 + $0x18] sm:$0xf]
      %v1713 = vld [vmem:[%s1705 + $0x1c] sm:$0xf]
      %v1722 = vunpack.c.l.b16 %v1706
      %v1723 = vunpack.c.l.b16 %v1707
      %v1724 = vunpack.c.l.b16 %v1708
      %v1725 = vunpack.c.l.b16 %v1709
      %v1726 = vunpack.c.l.b16 %v1710
      %v1727 = vunpack.c.l.b16 %v1711
      %v1728 = vunpack.c.l.b16 %v1712
      %v1729 = vunpack.c.l.b16 %v1713
      %v1730 = vpack.c.b16 %v1723, %v1722
      %v1731 = vpack.c.b16 %v1725, %v1724
      %v1732 = vpack.c.b16 %v1727, %v1726
      %v1733 = vpack.c.b16 %v1729, %v1728
      %v1739 = vsel %vm1592, %v1549, 0
      %1741 = vmatprep.subr.bf16.mxu0 0
      %1742 = vmatpush1.bf16.msra.mxu0 0
      %1743 = vmatprep.subr.bf16.mxu0 0
      %1744 = vmatpush1.bf16.msra.mxu0 0
      %1745 = vmatprep.subr.bf16.mxu0 0
      %1746 = vmatpush1.bf16.msra.mxu0 0
      %1747 = vmatprep.subr.bf16.mxu0 0
      %1748 = vmatpush1.bf16.msra.mxu0 0
      %1749 = vmatprep.subr.bf16.mxu0 0
      %1750 = vmatpush1.bf16.msra.mxu0 %v1733
      %1751 = vmatprep.subr.bf16.mxu0 0
      %1752 = vmatpush1.bf16.msra.mxu0 %v1732
      %1753 = vmatprep.subr.bf16.mxu0 0
      %1754 = vmatpush1.bf16.msra.mxu0 %v1731
      %1755 = vmatprep.subr.bf16.mxu0 0
      %1756 = vmatpush1.bf16.msra.mxu0 %v1730
      %1757 = vmatprep.subr.bf16.mxu0 0
      %1758 = vmatpush2.bf16.msra.mxu0 0
      %1759 = vmatprep.subr.bf16.mxu0 0
      %1760 = vmatpush2.bf16.msra.mxu0 0
      %1761 = vmatprep.subr.bf16.mxu0 0
      %1762 = vmatpush2.bf16.msra.mxu0 0
      %1763 = vmatprep.subr.bf16.mxu0 0
      %1764 = vmatpush2.bf16.msra.mxu0 0
      %1765 = vmatprep.subr.bf16.mxu0 0
      %1766 = vmatpush2.bf16.msra.mxu0 0
      %1767 = vmatprep.subr.bf16.mxu0 0
      %1768 = vmatpush2.bf16.msra.mxu0 0
      %1769 = vmatprep.subr.bf16.mxu0 0
      %1770 = vmatpush2.bf16.msra.mxu0 0
      %1771 = vmatprep.subr.bf16.mxu0 0
      %1772 = vmatpush2.bf16.msra.mxu0 0
      %1773 = vmatprep.mubr.bf16.mxu0 0
      %1774 = vmatmul.mubr.bf16.gmra.mxu0 %v1739
      %v1775 = vpop.f32.mrf.mxu0
      %v1776 = vadd.f32 0.0, %v1775
      %v1777 = vpop.f32.mrf.mxu0
      %v1778 = vpop.f32.mrf.mxu0
      %v1779 = vadd.f32 0.0, %v1778
      %v1780 = vpop.f32.mrf.mxu0
      %1781 = vdwg.mxu0
      %v1782 = vadd.f32 %v1699, %v1776
      %v1783 = vadd.f32 %v1702, %v1779
      %v1785 = vlaneseq
      %v1786 = vshrl.u32 %v1785, 7
      %v1787 = vsub.s32 0, %v1786
      %v1788 = vrot.slane %v1550, %v1787
      %v1790 = vadd.f32 %v1782, %v1788
      %v1791 = vadd.f32 %v1783, %v1788
      %v1792 = vmax.f32 %v1790, 0.0
      %v1793 = vmax.f32 %v1791, 0.0
      %v1794 = vrot.slane %v1792, 7
      %v1795 = vrot.slane %v1793, 7
      %v1796 = vsel %vm510, %v1794, %v1795
      %v1797 = vsel %vm510, %v1795, %v1794
      %v1798 = vsel %vm453, %v1797, 0.0
      %v1799 = vsel %vm454, %v1796, 0.0
      %v1800 = vrot.slane %v1792, 1
      %v1801 = vrot.slane %v1793, 1
      %v1802 = vsel %vm523, %v1800, %v1801
      %v1803 = vsel %vm523, %v1801, %v1800
      %v1804 = vsel %vm455, %v1802, 0.0
      %v1805 = vsel %vm456, %v1803, 0.0
      %v1806 = vpack.c.bf16 %v1799, %v1798
      %v1807 = vpack.c.bf16 %v1793, %v1792
      %v1808 = vpack.c.bf16 %v1805, %v1804
      %s1809 = scalar_lea.vmem %s7, 1
      %v1810 = vld [vmem:[%s1809] sm:$0x1]
      %s1811 = scalar_lea.vmem %s3, 96
      %v1812 = vld [vmem:[%s1811] sm:$0xf]
      %v1813 = vld [vmem:[%s1811 + $0x4] sm:$0xf]
      %v1814 = vld [vmem:[%s1811 + $0x8] sm:$0xf]
      %v1815 = vld [vmem:[%s1811 + $0xc] sm:$0xf]
      %v1816 = vld [vmem:[%s1811 + $0x10] sm:$0xf]
      %v1817 = vld [vmem:[%s1811 + $0x14] sm:$0xf]
      %v1818 = vld [vmem:[%s1811 + $0x18] sm:$0xf]
      %v1819 = vld [vmem:[%s1811 + $0x1c] sm:$0xf]
      %s1820 = scalar_lea.vmem %s3, 128
      %v1821 = vld [vmem:[%s1820] sm:$0xf]
      %v1822 = vld [vmem:[%s1820 + $0x4] sm:$0xf]
      %v1823 = vld [vmem:[%s1820 + $0x8] sm:$0xf]
      %v1824 = vld [vmem:[%s1820 + $0xc] sm:$0xf]
      %v1825 = vld [vmem:[%s1820 + $0x10] sm:$0xf]
      %v1826 = vld [vmem:[%s1820 + $0x14] sm:$0xf]
      %v1827 = vld [vmem:[%s1820 + $0x18] sm:$0xf]
      %v1828 = vld [vmem:[%s1820 + $0x1c] sm:$0xf]
      %v1837 = vunpack.c.l.b16 %v1821
      %v1838 = vunpack.c.l.b16 %v1822
      %v1839 = vunpack.c.l.b16 %v1823
      %v1840 = vunpack.c.l.b16 %v1824
      %v1841 = vunpack.c.l.b16 %v1825
      %v1842 = vunpack.c.l.b16 %v1826
      %v1843 = vunpack.c.l.b16 %v1827
      %v1844 = vunpack.c.l.b16 %v1828
      %v1845 = vpack.c.b16 %v1838, %v1837
      %v1846 = vpack.c.b16 %v1840, %v1839
      %v1847 = vpack.c.b16 %v1842, %v1841
      %v1848 = vpack.c.b16 %v1844, %v1843
      %v1854 = vsel %vm1592, %v1807, 0
      %1856 = vmatprep.subr.bf16.mxu0 0
      %1857 = vmatpush1.bf16.msra.mxu0 0
      %1858 = vmatprep.subr.bf16.mxu0 0
      %1859 = vmatpush1.bf16.msra.mxu0 0
      %1860 = vmatprep.subr.bf16.mxu0 0
      %1861 = vmatpush1.bf16.msra.mxu0 0
      %1862 = vmatprep.subr.bf16.mxu0 0
      %1863 = vmatpush1.bf16.msra.mxu0 0
      %1864 = vmatprep.subr.bf16.mxu0 0
      %1865 = vmatpush1.bf16.msra.mxu0 %v1848
      %1866 = vmatprep.subr.bf16.mxu0 0
      %1867 = vmatpush1.bf16.msra.mxu0 %v1847
      %1868 = vmatprep.subr.bf16.mxu0 0
      %1869 = vmatpush1.bf16.msra.mxu0 %v1846
      %1870 = vmatprep.subr.bf16.mxu0 0
      %1871 = vmatpush1.bf16.msra.mxu0 %v1845
      %1872 = vmatprep.subr.bf16.mxu0 0
      %1873 = vmatpush2.bf16.msra.mxu0 0
      %1874 = vmatprep.subr.bf16.mxu0 0
      %1875 = vmatpush2.bf16.msra.mxu0 0
      %1876 = vmatprep.subr.bf16.mxu0 0
      %1877 = vmatpush2.bf16.msra.mxu0 0
      %1878 = vmatprep.subr.bf16.mxu0 0
      %1879 = vmatpush2.bf16.msra.mxu0 0
      %1880 = vmatprep.subr.bf16.mxu0 0
      %1881 = vmatpush2.bf16.msra.mxu0 0
      %1882 = vmatprep.subr.bf16.mxu0 0
      %1883 = vmatpush2.bf16.msra.mxu0 0
      %1884 = vmatprep.subr.bf16.mxu0 0
      %1885 = vmatpush2.bf16.msra.mxu0 0
      %1886 = vmatprep.subr.bf16.mxu0 0
      %1887 = vmatpush2.bf16.msra.mxu0 0
      %1888 = vmatprep.mubr.bf16.mxu0 0
      %1889 = vmatmul.mubr.bf16.gmra.mxu0 %v1854
      %v1890 = vpop.f32.mrf.mxu0
      %v1891 = vadd.f32 0.0, %v1890
      %v1892 = vpop.f32.mrf.mxu0
      %v1893 = vpop.f32.mrf.mxu0
      %v1894 = vadd.f32 0.0, %v1893
      %v1895 = vpop.f32.mrf.mxu0
      %1896 = vdwg.mxu0
      %v1905 = vunpack.c.l.b16 %v1812
      %v1906 = vunpack.c.l.b16 %v1813
      %v1907 = vunpack.c.l.b16 %v1814
      %v1908 = vunpack.c.l.b16 %v1815
      %v1909 = vunpack.c.l.b16 %v1816
      %v1910 = vunpack.c.l.b16 %v1817
      %v1911 = vunpack.c.l.b16 %v1818
      %v1912 = vunpack.c.l.b16 %v1819
      %v1913 = vpack.c.b16 %v1906, %v1905
      %v1914 = vpack.c.b16 %v1908, %v1907
      %v1915 = vpack.c.b16 %v1910, %v1909
      %v1916 = vpack.c.b16 %v1912, %v1911
      %v1922 = vsel %vm1592, %v1806, 0
      %1924 = vmatprep.subr.bf16.mxu0 0
      %1925 = vmatpush1.bf16.msra.mxu0 0
      %1926 = vmatprep.subr.bf16.mxu0 0
      %1927 = vmatpush1.bf16.msra.mxu0 0
      %1928 = vmatprep.subr.bf16.mxu0 0
      %1929 = vmatpush1.bf16.msra.mxu0 0
      %1930 = vmatprep.subr.bf16.mxu0 0
      %1931 = vmatpush1.bf16.msra.mxu0 0
      %1932 = vmatprep.subr.bf16.mxu0 0
      %1933 = vmatpush1.bf16.msra.mxu0 %v1916
      %1934 = vmatprep.subr.bf16.mxu0 0
      %1935 = vmatpush1.bf16.msra.mxu0 %v1915
      %1936 = vmatprep.subr.bf16.mxu0 0
      %1937 = vmatpush1.bf16.msra.mxu0 %v1914
      %1938 = vmatprep.subr.bf16.mxu0 0
      %1939 = vmatpush1.bf16.msra.mxu0 %v1913
      %1940 = vmatprep.subr.bf16.mxu0 0
      %1941 = vmatpush2.bf16.msra.mxu0 0
      %1942 = vmatprep.subr.bf16.mxu0 0
      %1943 = vmatpush2.bf16.msra.mxu0 0
      %1944 = vmatprep.subr.bf16.mxu0 0
      %1945 = vmatpush2.bf16.msra.mxu0 0
      %1946 = vmatprep.subr.bf16.mxu0 0
      %1947 = vmatpush2.bf16.msra.mxu0 0
      %1948 = vmatprep.subr.bf16.mxu0 0
      %1949 = vmatpush2.bf16.msra.mxu0 0
      %1950 = vmatprep.subr.bf16.mxu0 0
      %1951 = vmatpush2.bf16.msra.mxu0 0
      %1952 = vmatprep.subr.bf16.mxu0 0
      %1953 = vmatpush2.bf16.msra.mxu0 0
      %1954 = vmatprep.subr.bf16.mxu0 0
      %1955 = vmatpush2.bf16.msra.mxu0 0
      %1956 = vmatprep.mubr.bf16.mxu0 0
      %1957 = vmatmul.mubr.bf16.gmra.mxu0 %v1922
      %v1958 = vpop.f32.mrf.mxu0
      %v1959 = vadd.f32 %v1891, %v1958
      %v1960 = vpop.f32.mrf.mxu0
      %v1961 = vpop.f32.mrf.mxu0
      %v1962 = vadd.f32 %v1894, %v1961
      %v1963 = vpop.f32.mrf.mxu0
      %1964 = vdwg.mxu0
      %s1965 = scalar_lea.vmem %s3, 160
      %v1966 = vld [vmem:[%s1965] sm:$0xf]
      %v1967 = vld [vmem:[%s1965 + $0x4] sm:$0xf]
      %v1968 = vld [vmem:[%s1965 + $0x8] sm:$0xf]
      %v1969 = vld [vmem:[%s1965 + $0xc] sm:$0xf]
      %v1970 = vld [vmem:[%s1965 + $0x10] sm:$0xf]
      %v1971 = vld [vmem:[%s1965 + $0x14] sm:$0xf]
      %v1972 = vld [vmem:[%s1965 + $0x18] sm:$0xf]
      %v1973 = vld [vmem:[%s1965 + $0x1c] sm:$0xf]
      %v1982 = vunpack.c.l.b16 %v1966
      %v1983 = vunpack.c.l.b16 %v1967
      %v1984 = vunpack.c.l.b16 %v1968
      %v1985 = vunpack.c.l.b16 %v1969
      %v1986 = vunpack.c.l.b16 %v1970
      %v1987 = vunpack.c.l.b16 %v1971
      %v1988 = vunpack.c.l.b16 %v1972
      %v1989 = vunpack.c.l.b16 %v1973
      %v1990 = vpack.c.b16 %v1983, %v1982
      %v1991 = vpack.c.b16 %v1985, %v1984
      %v1992 = vpack.c.b16 %v1987, %v1986
      %v1993 = vpack.c.b16 %v1989, %v1988
      %v1999 = vsel %vm1592, %v1808, 0
      %2001 = vmatprep.subr.bf16.mxu0 0
      %2002 = vmatpush1.bf16.msra.mxu0 0
      %2003 = vmatprep.subr.bf16.mxu0 0
      %2004 = vmatpush1.bf16.msra.mxu0 0
      %2005 = vmatprep.subr.bf16.mxu0 0
      %2006 = vmatpush1.bf16.msra.mxu0 0
      %2007 = vmatprep.subr.bf16.mxu0 0
      %2008 = vmatpush1.bf16.msra.mxu0 0
      %2009 = vmatprep.subr.bf16.mxu0 0
      %2010 = vmatpush1.bf16.msra.mxu0 %v1993
      %2011 = vmatprep.subr.bf16.mxu0 0
      %2012 = vmatpush1.bf16.msra.mxu0 %v1992
      %2013 = vmatprep.subr.bf16.mxu0 0
      %2014 = vmatpush1.bf16.msra.mxu0 %v1991
      %2015 = vmatprep.subr.bf16.mxu0 0
      %2016 = vmatpush1.bf16.msra.mxu0 %v1990
      %2017 = vmatprep.subr.bf16.mxu0 0
      %2018 = vmatpush2.bf16.msra.mxu0 0
      %2019 = vmatprep.subr.bf16.mxu0 0
      %2020 = vmatpush2.bf16.msra.mxu0 0
      %2021 = vmatprep.subr.bf16.mxu0 0
      %2022 = vmatpush2.bf16.msra.mxu0 0
      %2023 = vmatprep.subr.bf16.mxu0 0
      %2024 = vmatpush2.bf16.msra.mxu0 0
      %2025 = vmatprep.subr.bf16.mxu0 0
      %2026 = vmatpush2.bf16.msra.mxu0 0
      %2027 = vmatprep.subr.bf16.mxu0 0
      %2028 = vmatpush2.bf16.msra.mxu0 0
      %2029 = vmatprep.subr.bf16.mxu0 0
      %2030 = vmatpush2.bf16.msra.mxu0 0
      %2031 = vmatprep.subr.bf16.mxu0 0
      %2032 = vmatpush2.bf16.msra.mxu0 0
      %2033 = vmatprep.mubr.bf16.mxu0 0
      %2034 = vmatmul.mubr.bf16.gmra.mxu0 %v1999
      %v2035 = vpop.f32.mrf.mxu0
      %v2036 = vadd.f32 0.0, %v2035
      %v2037 = vpop.f32.mrf.mxu0
      %v2038 = vpop.f32.mrf.mxu0
      %v2039 = vadd.f32 0.0, %v2038
      %v2040 = vpop.f32.mrf.mxu0
      %2041 = vdwg.mxu0
      %v2042 = vadd.f32 %v1959, %v2036
      %v2043 = vadd.f32 %v1962, %v2039
      %v2045 = vlaneseq
      %v2046 = vshrl.u32 %v2045, 7
      %v2047 = vsub.s32 0, %v2046
      %v2048 = vrot.slane %v1810, %v2047
      %v2050 = vadd.f32 %v2042, %v2048
      %v2051 = vadd.f32 %v2043, %v2048
      %v2052 = vadd.f32 %v2050, %v1527
      %v2053 = vadd.f32 %v2051, %v1532
      %v2054 = vrot.slane %v2052, 7
      %v2055 = vrot.slane %v2053, 7
      %v2056 = vsel %vm510, %v2054, %v2055
      %v2057 = vsel %vm510, %v2055, %v2054
      %v2058 = vsel %vm453, %v2057, 0.0
      %v2059 = vsel %vm454, %v2056, 0.0
      %v2060 = vrot.slane %v2052, 1
      %v2061 = vrot.slane %v2053, 1
      %v2062 = vsel %vm523, %v2060, %v2061
      %v2063 = vsel %vm523, %v2061, %v2060
      %v2064 = vsel %vm455, %v2062, 0.0
      %v2065 = vsel %vm456, %v2063, 0.0
      %v2066 = vpack.c.bf16 %v2059, %v2058
      %v2067 = vpack.c.bf16 %v2053, %v2052
      %v2068 = vpack.c.bf16 %v2065, %v2064
      %s2069 = scalar_lea.vmem %s7, 2
      %v2070 = vld [vmem:[%s2069] sm:$0x1]
      %s2071 = scalar_lea.vmem %s3, 192
      %v2072 = vld [vmem:[%s2071] sm:$0xf]
      %v2073 = vld [vmem:[%s2071 + $0x4] sm:$0xf]
      %v2074 = vld [vmem:[%s2071 + $0x8] sm:$0xf]
      %v2075 = vld [vmem:[%s2071 + $0xc] sm:$0xf]
      %v2076 = vld [vmem:[%s2071 + $0x10] sm:$0xf]
      %v2077 = vld [vmem:[%s2071 + $0x14] sm:$0xf]
      %v2078 = vld [vmem:[%s2071 + $0x18] sm:$0xf]
      %v2079 = vld [vmem:[%s2071 + $0x1c] sm:$0xf]
      %s2080 = scalar_lea.vmem %s3, 224
      %v2081 = vld [vmem:[%s2080] sm:$0xf]
      %v2082 = vld [vmem:[%s2080 + $0x4] sm:$0xf]
      %v2083 = vld [vmem:[%s2080 + $0x8] sm:$0xf]
      %v2084 = vld [vmem:[%s2080 + $0xc] sm:$0xf]
      %v2085 = vld [vmem:[%s2080 + $0x10] sm:$0xf]
      %v2086 = vld [vmem:[%s2080 + $0x14] sm:$0xf]
      %v2087 = vld [vmem:[%s2080 + $0x18] sm:$0xf]
      %v2088 = vld [vmem:[%s2080 + $0x1c] sm:$0xf]
      %v2097 = vunpack.c.l.b16 %v2081
      %v2098 = vunpack.c.l.b16 %v2082
      %v2099 = vunpack.c.l.b16 %v2083
      %v2100 = vunpack.c.l.b16 %v2084
      %v2101 = vunpack.c.l.b16 %v2085
      %v2102 = vunpack.c.l.b16 %v2086
      %v2103 = vunpack.c.l.b16 %v2087
      %v2104 = vunpack.c.l.b16 %v2088
      %v2105 = vpack.c.b16 %v2098, %v2097
      %v2106 = vpack.c.b16 %v2100, %v2099
      %v2107 = vpack.c.b16 %v2102, %v2101
      %v2108 = vpack.c.b16 %v2104, %v2103
      %v2114 = vsel %vm1592, %v2067, 0
      %2116 = vmatprep.subr.bf16.mxu0 0
      %2117 = vmatpush1.bf16.msra.mxu0 0
      %2118 = vmatprep.subr.bf16.mxu0 0
      %2119 = vmatpush1.bf16.msra.mxu0 0
      %2120 = vmatprep.subr.bf16.mxu0 0
      %2121 = vmatpush1.bf16.msra.mxu0 0
      %2122 = vmatprep.subr.bf16.mxu0 0
      %2123 = vmatpush1.bf16.msra.mxu0 0
      %2124 = vmatprep.subr.bf16.mxu0 0
      %2125 = vmatpush1.bf16.msra.mxu0 %v2108
      %2126 = vmatprep.subr.bf16.mxu0 0
      %2127 = vmatpush1.bf16.msra.mxu0 %v2107
      %2128 = vmatprep.subr.bf16.mxu0 0
      %2129 = vmatpush1.bf16.msra.mxu0 %v2106
      %2130 = vmatprep.subr.bf16.mxu0 0
      %2131 = vmatpush1.bf16.msra.mxu0 %v2105
      %2132 = vmatprep.subr.bf16.mxu0 0
      %2133 = vmatpush2.bf16.msra.mxu0 0
      %2134 = vmatprep.subr.bf16.mxu0 0
      %2135 = vmatpush2.bf16.msra.mxu0 0
      %2136 = vmatprep.subr.bf16.mxu0 0
      %2137 = vmatpush2.bf16.msra.mxu0 0
      %2138 = vmatprep.subr.bf16.mxu0 0
      %2139 = vmatpush2.bf16.msra.mxu0 0
      %2140 = vmatprep.subr.bf16.mxu0 0
      %2141 = vmatpush2.bf16.msra.mxu0 0
      %2142 = vmatprep.subr.bf16.mxu0 0
      %2143 = vmatpush2.bf16.msra.mxu0 0
      %2144 = vmatprep.subr.bf16.mxu0 0
      %2145 = vmatpush2.bf16.msra.mxu0 0
      %2146 = vmatprep.subr.bf16.mxu0 0
      %2147 = vmatpush2.bf16.msra.mxu0 0
      %2148 = vmatprep.mubr.bf16.mxu0 0
      %2149 = vmatmul.mubr.bf16.gmra.mxu0 %v2114
      %v2150 = vpop.f32.mrf.mxu0
      %v2151 = vadd.f32 0.0, %v2150
      %v2152 = vpop.f32.mrf.mxu0
      %v2153 = vpop.f32.mrf.mxu0
      %v2154 = vadd.f32 0.0, %v2153
      %v2155 = vpop.f32.mrf.mxu0
      %2156 = vdwg.mxu0
      %v2165 = vunpack.c.l.b16 %v2072
      %v2166 = vunpack.c.l.b16 %v2073
      %v2167 = vunpack.c.l.b16 %v2074
      %v2168 = vunpack.c.l.b16 %v2075
      %v2169 = vunpack.c.l.b16 %v2076
      %v2170 = vunpack.c.l.b16 %v2077
      %v2171 = vunpack.c.l.b16 %v2078
      %v2172 = vunpack.c.l.b16 %v2079
      %v2173 = vpack.c.b16 %v2166, %v2165
      %v2174 = vpack.c.b16 %v2168, %v2167
      %v2175 = vpack.c.b16 %v2170, %v2169
      %v2176 = vpack.c.b16 %v2172, %v2171
      %v2182 = vsel %vm1592, %v2066, 0
      %2184 = vmatprep.subr.bf16.mxu0 0
      %2185 = vmatpush1.bf16.msra.mxu0 0
      %2186 = vmatprep.subr.bf16.mxu0 0
      %2187 = vmatpush1.bf16.msra.mxu0 0
      %2188 = vmatprep.subr.bf16.mxu0 0
      %2189 = vmatpush1.bf16.msra.mxu0 0
      %2190 = vmatprep.subr.bf16.mxu0 0
      %2191 = vmatpush1.bf16.msra.mxu0 0
      %2192 = vmatprep.subr.bf16.mxu0 0
      %2193 = vmatpush1.bf16.msra.mxu0 %v2176
      %2194 = vmatprep.subr.bf16.mxu0 0
      %2195 = vmatpush1.bf16.msra.mxu0 %v2175
      %2196 = vmatprep.subr.bf16.mxu0 0
      %2197 = vmatpush1.bf16.msra.mxu0 %v2174
      %2198 = vmatprep.subr.bf16.mxu0 0
      %2199 = vmatpush1.bf16.msra.mxu0 %v2173
      %2200 = vmatprep.subr.bf16.mxu0 0
      %2201 = vmatpush2.bf16.msra.mxu0 0
      %2202 = vmatprep.subr.bf16.mxu0 0
      %2203 = vmatpush2.bf16.msra.mxu0 0
      %2204 = vmatprep.subr.bf16.mxu0 0
      %2205 = vmatpush2.bf16.msra.mxu0 0
      %2206 = vmatprep.subr.bf16.mxu0 0
      %2207 = vmatpush2.bf16.msra.mxu0 0
      %2208 = vmatprep.subr.bf16.mxu0 0
      %2209 = vmatpush2.bf16.msra.mxu0 0
      %2210 = vmatprep.subr.bf16.mxu0 0
      %2211 = vmatpush2.bf16.msra.mxu0 0
      %2212 = vmatprep.subr.bf16.mxu0 0
      %2213 = vmatpush2.bf16.msra.mxu0 0
      %2214 = vmatprep.subr.bf16.mxu0 0
      %2215 = vmatpush2.bf16.msra.mxu0 0
      %2216 = vmatprep.mubr.bf16.mxu0 0
      %2217 = vmatmul.mubr.bf16.gmra.mxu0 %v2182
      %v2218 = vpop.f32.mrf.mxu0
      %v2219 = vadd.f32 %v2151, %v2218
      %v2220 = vpop.f32.mrf.mxu0
      %v2221 = vpop.f32.mrf.mxu0
      %v2222 = vadd.f32 %v2154, %v2221
      %v2223 = vpop.f32.mrf.mxu0
      %2224 = vdwg.mxu0
      %s2225 = scalar_lea.vmem %s3, 256
      %v2226 = vld [vmem:[%s2225] sm:$0xf]
      %v2227 = vld [vmem:[%s2225 + $0x4] sm:$0xf]
      %v2228 = vld [vmem:[%s2225 + $0x8] sm:$0xf]
      %v2229 = vld [vmem:[%s2225 + $0xc] sm:$0xf]
      %v2230 = vld [vmem:[%s2225 + $0x10] sm:$0xf]
      %v2231 = vld [vmem:[%s2225 + $0x14] sm:$0xf]
      %v2232 = vld [vmem:[%s2225 + $0x18] sm:$0xf]
      %v2233 = vld [vmem:[%s2225 + $0x1c] sm:$0xf]
      %v2242 = vunpack.c.l.b16 %v2226
      %v2243 = vunpack.c.l.b16 %v2227
      %v2244 = vunpack.c.l.b16 %v2228
      %v2245 = vunpack.c.l.b16 %v2229
      %v2246 = vunpack.c.l.b16 %v2230
      %v2247 = vunpack.c.l.b16 %v2231
      %v2248 = vunpack.c.l.b16 %v2232
      %v2249 = vunpack.c.l.b16 %v2233
      %v2250 = vpack.c.b16 %v2243, %v2242
      %v2251 = vpack.c.b16 %v2245, %v2244
      %v2252 = vpack.c.b16 %v2247, %v2246
      %v2253 = vpack.c.b16 %v2249, %v2248
      %v2259 = vsel %vm1592, %v2068, 0
      %2261 = vmatprep.subr.bf16.mxu0 0
      %2262 = vmatpush1.bf16.msra.mxu0 0
      %2263 = vmatprep.subr.bf16.mxu0 0
      %2264 = vmatpush1.bf16.msra.mxu0 0
      %2265 = vmatprep.subr.bf16.mxu0 0
      %2266 = vmatpush1.bf16.msra.mxu0 0
      %2267 = vmatprep.subr.bf16.mxu0 0
      %2268 = vmatpush1.bf16.msra.mxu0 0
      %2269 = vmatprep.subr.bf16.mxu0 0
      %2270 = vmatpush1.bf16.msra.mxu0 %v2253
      %2271 = vmatprep.subr.bf16.mxu0 0
      %2272 = vmatpush1.bf16.msra.mxu0 %v2252
      %2273 = vmatprep.subr.bf16.mxu0 0
      %2274 = vmatpush1.bf16.msra.mxu0 %v2251
      %2275 = vmatprep.subr.bf16.mxu0 0
      %2276 = vmatpush1.bf16.msra.mxu0 %v2250
      %2277 = vmatprep.subr.bf16.mxu0 0
      %2278 = vmatpush2.bf16.msra.mxu0 0
      %2279 = vmatprep.subr.bf16.mxu0 0
      %2280 = vmatpush2.bf16.msra.mxu0 0
      %2281 = vmatprep.subr.bf16.mxu0 0
      %2282 = vmatpush2.bf16.msra.mxu0 0
      %2283 = vmatprep.subr.bf16.mxu0 0
      %2284 = vmatpush2.bf16.msra.mxu0 0
      %2285 = vmatprep.subr.bf16.mxu0 0
      %2286 = vmatpush2.bf16.msra.mxu0 0
      %2287 = vmatprep.subr.bf16.mxu0 0
      %2288 = vmatpush2.bf16.msra.mxu0 0
      %2289 = vmatprep.subr.bf16.mxu0 0
      %2290 = vmatpush2.bf16.msra.mxu0 0
      %2291 = vmatprep.subr.bf16.mxu0 0
      %2292 = vmatpush2.bf16.msra.mxu0 0
      %2293 = vmatprep.mubr.bf16.mxu0 0
      %2294 = vmatmul.mubr.bf16.gmra.mxu0 %v2259
      %v2295 = vpop.f32.mrf.mxu0
      %v2296 = vadd.f32 0.0, %v2295
      %v2297 = vpop.f32.mrf.mxu0
      %v2298 = vpop.f32.mrf.mxu0
      %v2299 = vadd.f32 0.0, %v2298
      %v2300 = vpop.f32.mrf.mxu0
      %2301 = vdwg.mxu0
      %v2302 = vadd.f32 %v2219, %v2296
      %v2303 = vadd.f32 %v2222, %v2299
      %v2305 = vlaneseq
      %v2306 = vshrl.u32 %v2305, 7
      %v2307 = vsub.s32 0, %v2306
      %v2308 = vrot.slane %v2070, %v2307
      %v2310 = vadd.f32 %v2302, %v2308
      %v2311 = vadd.f32 %v2303, %v2308
      %v2312 = vmax.f32 %v2310, 0.0
      %v2313 = vmax.f32 %v2311, 0.0
      %v2314 = vrot.slane %v2312, 7
      %v2315 = vrot.slane %v2313, 7
      %v2316 = vsel %vm510, %v2314, %v2315
      %v2317 = vsel %vm510, %v2315, %v2314
      %v2318 = vsel %vm453, %v2317, 0.0
      %v2319 = vsel %vm454, %v2316, 0.0
      %v2320 = vrot.slane %v2312, 1
      %v2321 = vrot.slane %v2313, 1
      %v2322 = vsel %vm523, %v2320, %v2321
      %v2323 = vsel %vm523, %v2321, %v2320
      %v2324 = vsel %vm455, %v2322, 0.0
      %v2325 = vsel %vm456, %v2323, 0.0
      %v2326 = vpack.c.bf16 %v2319, %v2318
      %v2327 = vpack.c.bf16 %v2313, %v2312
      %v2328 = vpack.c.bf16 %v2325, %v2324
      %s2329 = scalar_lea.vmem %s7, 3
      %v2330 = vld [vmem:[%s2329] sm:$0x1]
      %s2331 = scalar_lea.vmem %s3, 288
      %v2332 = vld [vmem:[%s2331] sm:$0xf]
      %v2333 = vld [vmem:[%s2331 + $0x4] sm:$0xf]
      %v2334 = vld [vmem:[%s2331 + $0x8] sm:$0xf]
      %v2335 = vld [vmem:[%s2331 + $0xc] sm:$0xf]
      %v2336 = vld [vmem:[%s2331 + $0x10] sm:$0xf]
      %v2337 = vld [vmem:[%s2331 + $0x14] sm:$0xf]
      %v2338 = vld [vmem:[%s2331 + $0x18] sm:$0xf]
      %v2339 = vld [vmem:[%s2331 + $0x1c] sm:$0xf]
      %s2340 = scalar_lea.vmem %s3, 320
      %v2341 = vld [vmem:[%s2340] sm:$0xf]
      %v2342 = vld [vmem:[%s2340 + $0x4] sm:$0xf]
      %v2343 = vld [vmem:[%s2340 + $0x8] sm:$0xf]
      %v2344 = vld [vmem:[%s2340 + $0xc] sm:$0xf]
      %v2345 = vld [vmem:[%s2340 + $0x10] sm:$0xf]
      %v2346 = vld [vmem:[%s2340 + $0x14] sm:$0xf]
      %v2347 = vld [vmem:[%s2340 + $0x18] sm:$0xf]
      %v2348 = vld [vmem:[%s2340 + $0x1c] sm:$0xf]
      %v2357 = vunpack.c.l.b16 %v2341
      %v2358 = vunpack.c.l.b16 %v2342
      %v2359 = vunpack.c.l.b16 %v2343
      %v2360 = vunpack.c.l.b16 %v2344
      %v2361 = vunpack.c.l.b16 %v2345
      %v2362 = vunpack.c.l.b16 %v2346
      %v2363 = vunpack.c.l.b16 %v2347
      %v2364 = vunpack.c.l.b16 %v2348
      %v2365 = vpack.c.b16 %v2358, %v2357
      %v2366 = vpack.c.b16 %v2360, %v2359
      %v2367 = vpack.c.b16 %v2362, %v2361
      %v2368 = vpack.c.b16 %v2364, %v2363
      %v2374 = vsel %vm1592, %v2327, 0
      %2376 = vmatprep.subr.bf16.mxu0 0
      %2377 = vmatpush1.bf16.msra.mxu0 0
      %2378 = vmatprep.subr.bf16.mxu0 0
      %2379 = vmatpush1.bf16.msra.mxu0 0
      %2380 = vmatprep.subr.bf16.mxu0 0
      %2381 = vmatpush1.bf16.msra.mxu0 0
      %2382 = vmatprep.subr.bf16.mxu0 0
      %2383 = vmatpush1.bf16.msra.mxu0 0
      %2384 = vmatprep.subr.bf16.mxu0 0
      %2385 = vmatpush1.bf16.msra.mxu0 %v2368
      %2386 = vmatprep.subr.bf16.mxu0 0
      %2387 = vmatpush1.bf16.msra.mxu0 %v2367
      %2388 = vmatprep.subr.bf16.mxu0 0
      %2389 = vmatpush1.bf16.msra.mxu0 %v2366
      %2390 = vmatprep.subr.bf16.mxu0 0
      %2391 = vmatpush1.bf16.msra.mxu0 %v2365
      %2392 = vmatprep.subr.bf16.mxu0 0
      %2393 = vmatpush2.bf16.msra.mxu0 0
      %2394 = vmatprep.subr.bf16.mxu0 0
      %2395 = vmatpush2.bf16.msra.mxu0 0
      %2396 = vmatprep.subr.bf16.mxu0 0
      %2397 = vmatpush2.bf16.msra.mxu0 0
      %2398 = vmatprep.subr.bf16.mxu0 0
      %2399 = vmatpush2.bf16.msra.mxu0 0
      %2400 = vmatprep.subr.bf16.mxu0 0
      %2401 = vmatpush2.bf16.msra.mxu0 0
      %2402 = vmatprep.subr.bf16.mxu0 0
      %2403 = vmatpush2.bf16.msra.mxu0 0
      %2404 = vmatprep.subr.bf16.mxu0 0
      %2405 = vmatpush2.bf16.msra.mxu0 0
      %2406 = vmatprep.subr.bf16.mxu0 0
      %2407 = vmatpush2.bf16.msra.mxu0 0
      %2408 = vmatprep.mubr.bf16.mxu0 0
      %2409 = vmatmul.mubr.bf16.gmra.mxu0 %v2374
      %v2410 = vpop.f32.mrf.mxu0
      %v2411 = vadd.f32 0.0, %v2410
      %v2412 = vpop.f32.mrf.mxu0
      %v2413 = vpop.f32.mrf.mxu0
      %v2414 = vadd.f32 0.0, %v2413
      %v2415 = vpop.f32.mrf.mxu0
      %2416 = vdwg.mxu0
      %v2425 = vunpack.c.l.b16 %v2332
      %v2426 = vunpack.c.l.b16 %v2333
      %v2427 = vunpack.c.l.b16 %v2334
      %v2428 = vunpack.c.l.b16 %v2335
      %v2429 = vunpack.c.l.b16 %v2336
      %v2430 = vunpack.c.l.b16 %v2337
      %v2431 = vunpack.c.l.b16 %v2338
      %v2432 = vunpack.c.l.b16 %v2339
      %v2433 = vpack.c.b16 %v2426, %v2425
      %v2434 = vpack.c.b16 %v2428, %v2427
      %v2435 = vpack.c.b16 %v2430, %v2429
      %v2436 = vpack.c.b16 %v2432, %v2431
      %v2442 = vsel %vm1592, %v2326, 0
      %2444 = vmatprep.subr.bf16.mxu0 0
      %2445 = vmatpush1.bf16.msra.mxu0 0
      %2446 = vmatprep.subr.bf16.mxu0 0
      %2447 = vmatpush1.bf16.msra.mxu0 0
      %2448 = vmatprep.subr.bf16.mxu0 0
      %2449 = vmatpush1.bf16.msra.mxu0 0
      %2450 = vmatprep.subr.bf16.mxu0 0
      %2451 = vmatpush1.bf16.msra.mxu0 0
      %2452 = vmatprep.subr.bf16.mxu0 0
      %2453 = vmatpush1.bf16.msra.mxu0 %v2436
      %2454 = vmatprep.subr.bf16.mxu0 0
      %2455 = vmatpush1.bf16.msra.mxu0 %v2435
      %2456 = vmatprep.subr.bf16.mxu0 0
      %2457 = vmatpush1.bf16.msra.mxu0 %v2434
      %2458 = vmatprep.subr.bf16.mxu0 0
      %2459 = vmatpush1.bf16.msra.mxu0 %v2433
      %2460 = vmatprep.subr.bf16.mxu0 0
      %2461 = vmatpush2.bf16.msra.mxu0 0
      %2462 = vmatprep.subr.bf16.mxu0 0
      %2463 = vmatpush2.bf16.msra.mxu0 0
      %2464 = vmatprep.subr.bf16.mxu0 0
      %2465 = vmatpush2.bf16.msra.mxu0 0
      %2466 = vmatprep.subr.bf16.mxu0 0
      %2467 = vmatpush2.bf16.msra.mxu0 0
      %2468 = vmatprep.subr.bf16.mxu0 0
      %2469 = vmatpush2.bf16.msra.mxu0 0
      %2470 = vmatprep.subr.bf16.mxu0 0
      %2471 = vmatpush2.bf16.msra.mxu0 0
      %2472 = vmatprep.subr.bf16.mxu0 0
      %2473 = vmatpush2.bf16.msra.mxu0 0
      %2474 = vmatprep.subr.bf16.mxu0 0
      %2475 = vmatpush2.bf16.msra.mxu0 0
      %2476 = vmatprep.mubr.bf16.mxu0 0
      %2477 = vmatmul.mubr.bf16.gmra.mxu0 %v2442
      %v2478 = vpop.f32.mrf.mxu0
      %v2479 = vadd.f32 %v2411, %v2478
      %v2480 = vpop.f32.mrf.mxu0
      %v2481 = vpop.f32.mrf.mxu0
      %v2482 = vadd.f32 %v2414, %v2481
      %v2483 = vpop.f32.mrf.mxu0
      %2484 = vdwg.mxu0
      %s2485 = scalar_lea.vmem %s3, 352
      %v2486 = vld [vmem:[%s2485] sm:$0xf]
      %v2487 = vld [vmem:[%s2485 + $0x4] sm:$0xf]
      %v2488 = vld [vmem:[%s2485 + $0x8] sm:$0xf]
      %v2489 = vld [vmem:[%s2485 + $0xc] sm:$0xf]
      %v2490 = vld [vmem:[%s2485 + $0x10] sm:$0xf]
      %v2491 = vld [vmem:[%s2485 + $0x14] sm:$0xf]
      %v2492 = vld [vmem:[%s2485 + $0x18] sm:$0xf]
      %v2493 = vld [vmem:[%s2485 + $0x1c] sm:$0xf]
      %v2502 = vunpack.c.l.b16 %v2486
      %v2503 = vunpack.c.l.b16 %v2487
      %v2504 = vunpack.c.l.b16 %v2488
      %v2505 = vunpack.c.l.b16 %v2489
      %v2506 = vunpack.c.l.b16 %v2490
      %v2507 = vunpack.c.l.b16 %v2491
      %v2508 = vunpack.c.l.b16 %v2492
      %v2509 = vunpack.c.l.b16 %v2493
      %v2510 = vpack.c.b16 %v2503, %v2502
      %v2511 = vpack.c.b16 %v2505, %v2504
      %v2512 = vpack.c.b16 %v2507, %v2506
      %v2513 = vpack.c.b16 %v2509, %v2508
      %v2519 = vsel %vm1592, %v2328, 0
      %2521 = vmatprep.subr.bf16.mxu0 0
      %2522 = vmatpush1.bf16.msra.mxu0 0
      %2523 = vmatprep.subr.bf16.mxu0 0
      %2524 = vmatpush1.bf16.msra.mxu0 0
      %2525 = vmatprep.subr.bf16.mxu0 0
      %2526 = vmatpush1.bf16.msra.mxu0 0
      %2527 = vmatprep.subr.bf16.mxu0 0
      %2528 = vmatpush1.bf16.msra.mxu0 0
      %2529 = vmatprep.subr.bf16.mxu0 0
      %2530 = vmatpush1.bf16.msra.mxu0 %v2513
      %2531 = vmatprep.subr.bf16.mxu0 0
      %2532 = vmatpush1.bf16.msra.mxu0 %v2512
      %2533 = vmatprep.subr.bf16.mxu0 0
      %2534 = vmatpush1.bf16.msra.mxu0 %v2511
      %2535 = vmatprep.subr.bf16.mxu0 0
      %2536 = vmatpush1.bf16.msra.mxu0 %v2510
      %2537 = vmatprep.subr.bf16.mxu0 0
      %2538 = vmatpush2.bf16.msra.mxu0 0
      %2539 = vmatprep.subr.bf16.mxu0 0
      %2540 = vmatpush2.bf16.msra.mxu0 0
      %2541 = vmatprep.subr.bf16.mxu0 0
      %2542 = vmatpush2.bf16.msra.mxu0 0
      %2543 = vmatprep.subr.bf16.mxu0 0
      %2544 = vmatpush2.bf16.msra.mxu0 0
      %2545 = vmatprep.subr.bf16.mxu0 0
      %2546 = vmatpush2.bf16.msra.mxu0 0
      %2547 = vmatprep.subr.bf16.mxu0 0
      %2548 = vmatpush2.bf16.msra.mxu0 0
      %2549 = vmatprep.subr.bf16.mxu0 0
      %2550 = vmatpush2.bf16.msra.mxu0 0
      %2551 = vmatprep.subr.bf16.mxu0 0
      %2552 = vmatpush2.bf16.msra.mxu0 0
      %2553 = vmatprep.mubr.bf16.mxu0 0
      %2554 = vmatmul.mubr.bf16.gmra.mxu0 %v2519
      %v2555 = vpop.f32.mrf.mxu0
      %v2556 = vadd.f32 0.0, %v2555
      %v2557 = vpop.f32.mrf.mxu0
      %v2558 = vpop.f32.mrf.mxu0
      %v2559 = vadd.f32 0.0, %v2558
      %v2560 = vpop.f32.mrf.mxu0
      %2561 = vdwg.mxu0
      %v2562 = vadd.f32 %v2479, %v2556
      %v2563 = vadd.f32 %v2482, %v2559
      %v2565 = vlaneseq
      %v2566 = vshrl.u32 %v2565, 7
      %v2567 = vsub.s32 0, %v2566
      %v2568 = vrot.slane %v2330, %v2567
      %v2570 = vadd.f32 %v2562, %v2568
      %v2571 = vadd.f32 %v2563, %v2568
      %v2572 = vadd.f32 %v2570, %v2052
      %v2573 = vadd.f32 %v2571, %v2053
      %v2574 = vrot.slane %v2572, 7
      %v2575 = vrot.slane %v2573, 7
      %v2576 = vsel %vm510, %v2574, %v2575
      %v2577 = vsel %vm510, %v2575, %v2574
      %v2578 = vsel %vm453, %v2577, 0.0
      %v2579 = vsel %vm454, %v2576, 0.0
      %v2580 = vrot.slane %v2572, 1
      %v2581 = vrot.slane %v2573, 1
      %v2582 = vsel %vm523, %v2580, %v2581
      %v2583 = vsel %vm523, %v2581, %v2580
      %v2584 = vsel %vm455, %v2582, 0.0
      %v2585 = vsel %vm456, %v2583, 0.0
      %v2586 = vpack.c.bf16 %v2579, %v2578
      %v2587 = vpack.c.bf16 %v2573, %v2572
      %v2588 = vpack.c.bf16 %v2585, %v2584
      %v2589 = vld [vmem:[%s4] sm:$0xf]
      %v2590 = vld [vmem:[%s4 + $0x4] sm:$0xf]
      %v2591 = vld [vmem:[%s4 + $0x8] sm:$0xf]
      %v2592 = vld [vmem:[%s4 + $0xc] sm:$0xf]
      %v2593 = vld [vmem:[%s4 + $0x10] sm:$0xf]
      %v2594 = vld [vmem:[%s4 + $0x14] sm:$0xf]
      %v2595 = vld [vmem:[%s4 + $0x18] sm:$0xf]
      %v2596 = vld [vmem:[%s4 + $0x1c] sm:$0xf]
      %s2597 = scalar_lea.vmem %s4, 32
      %v2598 = vld [vmem:[%s2597] sm:$0xf]
      %v2599 = vld [vmem:[%s2597 + $0x4] sm:$0xf]
      %v2600 = vld [vmem:[%s2597 + $0x8] sm:$0xf]
      %v2601 = vld [vmem:[%s2597 + $0xc] sm:$0xf]
      %v2602 = vld [vmem:[%s2597 + $0x10] sm:$0xf]
      %v2603 = vld [vmem:[%s2597 + $0x14] sm:$0xf]
      %v2604 = vld [vmem:[%s2597 + $0x18] sm:$0xf]
      %v2605 = vld [vmem:[%s2597 + $0x1c] sm:$0xf]
      %v2614 = vunpack.c.l.b16 %v2598
      %v2615 = vunpack.c.l.b16 %v2599
      %v2616 = vunpack.c.l.b16 %v2600
      %v2617 = vunpack.c.l.b16 %v2601
      %v2618 = vunpack.c.l.b16 %v2602
      %v2619 = vunpack.c.l.b16 %v2603
      %v2620 = vunpack.c.l.b16 %v2604
      %v2621 = vunpack.c.l.b16 %v2605
      %v2622 = vpack.c.b16 %v2615, %v2614
      %v2623 = vpack.c.b16 %v2617, %v2616
      %v2624 = vpack.c.b16 %v2619, %v2618
      %v2625 = vpack.c.b16 %v2621, %v2620
      %v2631 = vsel %vm1592, %v2587, 0
      %2633 = vmatprep.subr.bf16.mxu0 0
      %2634 = vmatpush1.bf16.msra.mxu0 0
      %2635 = vmatprep.subr.bf16.mxu0 0
      %2636 = vmatpush1.bf16.msra.mxu0 0
      %2637 = vmatprep.subr.bf16.mxu0 0
      %2638 = vmatpush1.bf16.msra.mxu0 0
      %2639 = vmatprep.subr.bf16.mxu0 0
      %2640 = vmatpush1.bf16.msra.mxu0 0
      %2641 = vmatprep.subr.bf16.mxu0 0
      %2642 = vmatpush1.bf16.msra.mxu0 %v2625
      %2643 = vmatprep.subr.bf16.mxu0 0
      %2644 = vmatpush1.bf16.msra.mxu0 %v2624
      %2645 = vmatprep.subr.bf16.mxu0 0
      %2646 = vmatpush1.bf16.msra.mxu0 %v2623
      %2647 = vmatprep.subr.bf16.mxu0 0
      %2648 = vmatpush1.bf16.msra.mxu0 %v2622
      %2649 = vmatprep.subr.bf16.mxu0 0
      %2650 = vmatpush2.bf16.msra.mxu0 0
      %2651 = vmatprep.subr.bf16.mxu0 0
      %2652 = vmatpush2.bf16.msra.mxu0 0
      %2653 = vmatprep.subr.bf16.mxu0 0
      %2654 = vmatpush2.bf16.msra.mxu0 0
      %2655 = vmatprep.subr.bf16.mxu0 0
      %2656 = vmatpush2.bf16.msra.mxu0 0
      %2657 = vmatprep.subr.bf16.mxu0 0
      %2658 = vmatpush2.bf16.msra.mxu0 0
      %2659 = vmatprep.subr.bf16.mxu0 0
      %2660 = vmatpush2.bf16.msra.mxu0 0
      %2661 = vmatprep.subr.bf16.mxu0 0
      %2662 = vmatpush2.bf16.msra.mxu0 0
      %2663 = vmatprep.subr.bf16.mxu0 0
      %2664 = vmatpush2.bf16.msra.mxu0 0
      %2665 = vmatprep.mubr.bf16.mxu0 0
      %2666 = vmatmul.mubr.bf16.gmra.mxu0 %v2631
      %v2667 = vpop.f32.mrf.mxu0
      %v2668 = vadd.f32 0.0, %v2667
      %v2669 = vpop.f32.mrf.mxu0
      %v2670 = vpop.f32.mrf.mxu0
      %v2671 = vadd.f32 0.0, %v2670
      %v2672 = vpop.f32.mrf.mxu0
      %2673 = vdwg.mxu0
      %v2682 = vunpack.c.l.b16 %v2589
      %v2683 = vunpack.c.l.b16 %v2590
      %v2684 = vunpack.c.l.b16 %v2591
      %v2685 = vunpack.c.l.b16 %v2592
      %v2686 = vunpack.c.l.b16 %v2593
      %v2687 = vunpack.c.l.b16 %v2594
      %v2688 = vunpack.c.l.b16 %v2595
      %v2689 = vunpack.c.l.b16 %v2596
      %v2690 = vpack.c.b16 %v2683, %v2682
      %v2691 = vpack.c.b16 %v2685, %v2684
      %v2692 = vpack.c.b16 %v2687, %v2686
      %v2693 = vpack.c.b16 %v2689, %v2688
      %v2699 = vsel %vm1592, %v2586, 0
      %2701 = vmatprep.subr.bf16.mxu0 0
      %2702 = vmatpush1.bf16.msra.mxu0 0
      %2703 = vmatprep.subr.bf16.mxu0 0
      %2704 = vmatpush1.bf16.msra.mxu0 0
      %2705 = vmatprep.subr.bf16.mxu0 0
      %2706 = vmatpush1.bf16.msra.mxu0 0
      %2707 = vmatprep.subr.bf16.mxu0 0
      %2708 = vmatpush1.bf16.msra.mxu0 0
      %2709 = vmatprep.subr.bf16.mxu0 0
      %2710 = vmatpush1.bf16.msra.mxu0 %v2693
      %2711 = vmatprep.subr.bf16.mxu0 0
      %2712 = vmatpush1.bf16.msra.mxu0 %v2692
      %2713 = vmatprep.subr.bf16.mxu0 0
      %2714 = vmatpush1.bf16.msra.mxu0 %v2691
      %2715 = vmatprep.subr.bf16.mxu0 0
      %2716 = vmatpush1.bf16.msra.mxu0 %v2690
      %2717 = vmatprep.subr.bf16.mxu0 0
      %2718 = vmatpush2.bf16.msra.mxu0 0
      %2719 = vmatprep.subr.bf16.mxu0 0
      %2720 = vmatpush2.bf16.msra.mxu0 0
      %2721 = vmatprep.subr.bf16.mxu0 0
      %2722 = vmatpush2.bf16.msra.mxu0 0
      %2723 = vmatprep.subr.bf16.mxu0 0
      %2724 = vmatpush2.bf16.msra.mxu0 0
      %2725 = vmatprep.subr.bf16.mxu0 0
      %2726 = vmatpush2.bf16.msra.mxu0 0
      %2727 = vmatprep.subr.bf16.mxu0 0
      %2728 = vmatpush2.bf16.msra.mxu0 0
      %2729 = vmatprep.subr.bf16.mxu0 0
      %2730 = vmatpush2.bf16.msra.mxu0 0
      %2731 = vmatprep.subr.bf16.mxu0 0
      %2732 = vmatpush2.bf16.msra.mxu0 0
      %2733 = vmatprep.mubr.bf16.mxu0 0
      %2734 = vmatmul.mubr.bf16.gmra.mxu0 %v2699
      %v2735 = vpop.f32.mrf.mxu0
      %v2736 = vadd.f32 %v2668, %v2735
      %v2737 = vpop.f32.mrf.mxu0
      %v2738 = vpop.f32.mrf.mxu0
      %v2739 = vadd.f32 %v2671, %v2738
      %v2740 = vpop.f32.mrf.mxu0
      %2741 = vdwg.mxu0
      %s2742 = scalar_lea.vmem %s4, 64
      %v2743 = vld [vmem:[%s2742] sm:$0xf]
      %v2744 = vld [vmem:[%s2742 + $0x4] sm:$0xf]
      %v2745 = vld [vmem:[%s2742 + $0x8] sm:$0xf]
      %v2746 = vld [vmem:[%s2742 + $0xc] sm:$0xf]
      %v2747 = vld [vmem:[%s2742 + $0x10] sm:$0xf]
      %v2748 = vld [vmem:[%s2742 + $0x14] sm:$0xf]
      %v2749 = vld [vmem:[%s2742 + $0x18] sm:$0xf]
      %v2750 = vld [vmem:[%s2742 + $0x1c] sm:$0xf]
      %v2759 = vunpack.c.l.b16 %v2743
      %v2760 = vunpack.c.l.b16 %v2744
      %v2761 = vunpack.c.l.b16 %v2745
      %v2762 = vunpack.c.l.b16 %v2746
      %v2763 = vunpack.c.l.b16 %v2747
      %v2764 = vunpack.c.l.b16 %v2748
      %v2765 = vunpack.c.l.b16 %v2749
      %v2766 = vunpack.c.l.b16 %v2750
      %v2767 = vpack.c.b16 %v2760, %v2759
      %v2768 = vpack.c.b16 %v2762, %v2761
      %v2769 = vpack.c.b16 %v2764, %v2763
      %v2770 = vpack.c.b16 %v2766, %v2765
      %v2776 = vsel %vm1592, %v2588, 0
      %2778 = vmatprep.subr.bf16.mxu0 0
      %2779 = vmatpush1.bf16.msra.mxu0 0
      %2780 = vmatprep.subr.bf16.mxu0 0
      %2781 = vmatpush1.bf16.msra.mxu0 0
      %2782 = vmatprep.subr.bf16.mxu0 0
      %2783 = vmatpush1.bf16.msra.mxu0 0
      %2784 = vmatprep.subr.bf16.mxu0 0
      %2785 = vmatpush1.bf16.msra.mxu0 0
      %2786 = vmatprep.subr.bf16.mxu0 0
      %2787 = vmatpush1.bf16.msra.mxu0 %v2770
      %2788 = vmatprep.subr.bf16.mxu0 0
      %2789 = vmatpush1.bf16.msra.mxu0 %v2769
      %2790 = vmatprep.subr.bf16.mxu0 0
      %2791 = vmatpush1.bf16.msra.mxu0 %v2768
      %2792 = vmatprep.subr.bf16.mxu0 0
      %2793 = vmatpush1.bf16.msra.mxu0 %v2767
      %2794 = vmatprep.subr.bf16.mxu0 0
      %2795 = vmatpush2.bf16.msra.mxu0 0
      %2796 = vmatprep.subr.bf16.mxu0 0
      %2797 = vmatpush2.bf16.msra.mxu0 0
      %2798 = vmatprep.subr.bf16.mxu0 0
      %2799 = vmatpush2.bf16.msra.mxu0 0
      %2800 = vmatprep.subr.bf16.mxu0 0
      %2801 = vmatpush2.bf16.msra.mxu0 0
      %2802 = vmatprep.subr.bf16.mxu0 0
      %2803 = vmatpush2.bf16.msra.mxu0 0
      %2804 = vmatprep.subr.bf16.mxu0 0
      %2805 = vmatpush2.bf16.msra.mxu0 0
      %2806 = vmatprep.subr.bf16.mxu0 0
      %2807 = vmatpush2.bf16.msra.mxu0 0
      %2808 = vmatprep.subr.bf16.mxu0 0
      %2809 = vmatpush2.bf16.msra.mxu0 0
      %2810 = vmatprep.mubr.bf16.mxu0 0
      %2811 = vmatmul.mubr.bf16.gmra.mxu0 %v2776
      %v2812 = vpop.f32.mrf.mxu0
      %v2813 = vadd.f32 0.0, %v2812
      %v2814 = vpop.f32.mrf.mxu0
      %v2815 = vpop.f32.mrf.mxu0
      %v2816 = vadd.f32 0.0, %v2815
      %v2817 = vpop.f32.mrf.mxu0
      %2818 = vdwg.mxu0
      %v2819 = vadd.f32 %v2736, %v2813
      %v2820 = vadd.f32 %v2739, %v2816
      %s2821 = scalar_lea.vmem %s4, 96
      %v2822 = vld [vmem:[%s2821] sm:$0xf]
      %v2823 = vld [vmem:[%s2821 + $0x4] sm:$0xf]
      %v2824 = vld [vmem:[%s2821 + $0x8] sm:$0xf]
      %v2825 = vld [vmem:[%s2821 + $0xc] sm:$0xf]
      %v2826 = vld [vmem:[%s2821 + $0x10] sm:$0xf]
      %v2827 = vld [vmem:[%s2821 + $0x14] sm:$0xf]
      %v2828 = vld [vmem:[%s2821 + $0x18] sm:$0xf]
      %v2829 = vld [vmem:[%s2821 + $0x1c] sm:$0xf]
      %s2830 = scalar_lea.vmem %s4, 128
      %v2831 = vld [vmem:[%s2830] sm:$0xf]
      %v2832 = vld [vmem:[%s2830 + $0x4] sm:$0xf]
      %v2833 = vld [vmem:[%s2830 + $0x8] sm:$0xf]
      %v2834 = vld [vmem:[%s2830 + $0xc] sm:$0xf]
      %v2835 = vld [vmem:[%s2830 + $0x10] sm:$0xf]
      %v2836 = vld [vmem:[%s2830 + $0x14] sm:$0xf]
      %v2837 = vld [vmem:[%s2830 + $0x18] sm:$0xf]
      %v2838 = vld [vmem:[%s2830 + $0x1c] sm:$0xf]
      %v2847 = vunpack.c.l.b16 %v2831
      %v2848 = vunpack.c.l.b16 %v2832
      %v2849 = vunpack.c.l.b16 %v2833
      %v2850 = vunpack.c.l.b16 %v2834
      %v2851 = vunpack.c.l.b16 %v2835
      %v2852 = vunpack.c.l.b16 %v2836
      %v2853 = vunpack.c.l.b16 %v2837
      %v2854 = vunpack.c.l.b16 %v2838
      %v2855 = vpack.c.b16 %v2848, %v2847
      %v2856 = vpack.c.b16 %v2850, %v2849
      %v2857 = vpack.c.b16 %v2852, %v2851
      %v2858 = vpack.c.b16 %v2854, %v2853
      %2863 = vmatprep.subr.bf16.mxu0 0
      %2864 = vmatpush1.bf16.msra.mxu0 0
      %2865 = vmatprep.subr.bf16.mxu0 0
      %2866 = vmatpush1.bf16.msra.mxu0 0
      %2867 = vmatprep.subr.bf16.mxu0 0
      %2868 = vmatpush1.bf16.msra.mxu0 0
      %2869 = vmatprep.subr.bf16.mxu0 0
      %2870 = vmatpush1.bf16.msra.mxu0 0
      %2871 = vmatprep.subr.bf16.mxu0 0
      %2872 = vmatpush1.bf16.msra.mxu0 %v2858
      %2873 = vmatprep.subr.bf16.mxu0 0
      %2874 = vmatpush1.bf16.msra.mxu0 %v2857
      %2875 = vmatprep.subr.bf16.mxu0 0
      %2876 = vmatpush1.bf16.msra.mxu0 %v2856
      %2877 = vmatprep.subr.bf16.mxu0 0
      %2878 = vmatpush1.bf16.msra.mxu0 %v2855
      %2879 = vmatprep.subr.bf16.mxu0 0
      %2880 = vmatpush2.bf16.msra.mxu0 0
      %2881 = vmatprep.subr.bf16.mxu0 0
      %2882 = vmatpush2.bf16.msra.mxu0 0
      %2883 = vmatprep.subr.bf16.mxu0 0
      %2884 = vmatpush2.bf16.msra.mxu0 0
      %2885 = vmatprep.subr.bf16.mxu0 0
      %2886 = vmatpush2.bf16.msra.mxu0 0
      %2887 = vmatprep.subr.bf16.mxu0 0
      %2888 = vmatpush2.bf16.msra.mxu0 0
      %2889 = vmatprep.subr.bf16.mxu0 0
      %2890 = vmatpush2.bf16.msra.mxu0 0
      %2891 = vmatprep.subr.bf16.mxu0 0
      %2892 = vmatpush2.bf16.msra.mxu0 0
      %2893 = vmatprep.subr.bf16.mxu0 0
      %2894 = vmatpush2.bf16.msra.mxu0 0
      %2895 = vmatprep.mubr.bf16.mxu0 0
      %2896 = vmatmul.mubr.bf16.gmra.mxu0 %v2631
      %v2897 = vpop.f32.mrf.mxu0
      %v2898 = vadd.f32 0.0, %v2897
      %v2899 = vpop.f32.mrf.mxu0
      %v2900 = vpop.f32.mrf.mxu0
      %v2901 = vadd.f32 0.0, %v2900
      %v2902 = vpop.f32.mrf.mxu0
      %2903 = vdwg.mxu0
      %v2912 = vunpack.c.l.b16 %v2822
      %v2913 = vunpack.c.l.b16 %v2823
      %v2914 = vunpack.c.l.b16 %v2824
      %v2915 = vunpack.c.l.b16 %v2825
      %v2916 = vunpack.c.l.b16 %v2826
      %v2917 = vunpack.c.l.b16 %v2827
      %v2918 = vunpack.c.l.b16 %v2828
      %v2919 = vunpack.c.l.b16 %v2829
      %v2920 = vpack.c.b16 %v2913, %v2912
      %v2921 = vpack.c.b16 %v2915, %v2914
      %v2922 = vpack.c.b16 %v2917, %v2916
      %v2923 = vpack.c.b16 %v2919, %v2918
      %2928 = vmatprep.subr.bf16.mxu0 0
      %2929 = vmatpush1.bf16.msra.mxu0 0
      %2930 = vmatprep.subr.bf16.mxu0 0
      %2931 = vmatpush1.bf16.msra.mxu0 0
      %2932 = vmatprep.subr.bf16.mxu0 0
      %2933 = vmatpush1.bf16.msra.mxu0 0
      %2934 = vmatprep.subr.bf16.mxu0 0
      %2935 = vmatpush1.bf16.msra.mxu0 0
      %2936 = vmatprep.subr.bf16.mxu0 0
      %2937 = vmatpush1.bf16.msra.mxu0 %v2923
      %2938 = vmatprep.subr.bf16.mxu0 0
      %2939 = vmatpush1.bf16.msra.mxu0 %v2922
      %2940 = vmatprep.subr.bf16.mxu0 0
      %2941 = vmatpush1.bf16.msra.mxu0 %v2921
      %2942 = vmatprep.subr.bf16.mxu0 0
      %2943 = vmatpush1.bf16.msra.mxu0 %v2920
      %2944 = vmatprep.subr.bf16.mxu0 0
      %2945 = vmatpush2.bf16.msra.mxu0 0
      %2946 = vmatprep.subr.bf16.mxu0 0
      %2947 = vmatpush2.bf16.msra.mxu0 0
      %2948 = vmatprep.subr.bf16.mxu0 0
      %2949 = vmatpush2.bf16.msra.mxu0 0
      %2950 = vmatprep.subr.bf16.mxu0 0
      %2951 = vmatpush2.bf16.msra.mxu0 0
      %2952 = vmatprep.subr.bf16.mxu0 0
      %2953 = vmatpush2.bf16.msra.mxu0 0
      %2954 = vmatprep.subr.bf16.mxu0 0
      %2955 = vmatpush2.bf16.msra.mxu0 0
      %2956 = vmatprep.subr.bf16.mxu0 0
      %2957 = vmatpush2.bf16.msra.mxu0 0
      %2958 = vmatprep.subr.bf16.mxu0 0
      %2959 = vmatpush2.bf16.msra.mxu0 0
      %2960 = vmatprep.mubr.bf16.mxu0 0
      %2961 = vmatmul.mubr.bf16.gmra.mxu0 %v2699
      %v2962 = vpop.f32.mrf.mxu0
      %v2963 = vadd.f32 %v2898, %v2962
      %v2964 = vpop.f32.mrf.mxu0
      %v2965 = vpop.f32.mrf.mxu0
      %v2966 = vadd.f32 %v2901, %v2965
      %v2967 = vpop.f32.mrf.mxu0
      %2968 = vdwg.mxu0
      %s2969 = scalar_lea.vmem %s4, 160
      %v2970 = vld [vmem:[%s2969] sm:$0xf]
      %v2971 = vld [vmem:[%s2969 + $0x4] sm:$0xf]
      %v2972 = vld [vmem:[%s2969 + $0x8] sm:$0xf]
      %v2973 = vld [vmem:[%s2969 + $0xc] sm:$0xf]
      %v2974 = vld [vmem:[%s2969 + $0x10] sm:$0xf]
      %v2975 = vld [vmem:[%s2969 + $0x14] sm:$0xf]
      %v2976 = vld [vmem:[%s2969 + $0x18] sm:$0xf]
      %v2977 = vld [vmem:[%s2969 + $0x1c] sm:$0xf]
      %v2986 = vunpack.c.l.b16 %v2970
      %v2987 = vunpack.c.l.b16 %v2971
      %v2988 = vunpack.c.l.b16 %v2972
      %v2989 = vunpack.c.l.b16 %v2973
      %v2990 = vunpack.c.l.b16 %v2974
      %v2991 = vunpack.c.l.b16 %v2975
      %v2992 = vunpack.c.l.b16 %v2976
      %v2993 = vunpack.c.l.b16 %v2977
      %v2994 = vpack.c.b16 %v2987, %v2986
      %v2995 = vpack.c.b16 %v2989, %v2988
      %v2996 = vpack.c.b16 %v2991, %v2990
      %v2997 = vpack.c.b16 %v2993, %v2992
      %3002 = vmatprep.subr.bf16.mxu0 0
      %3003 = vmatpush1.bf16.msra.mxu0 0
      %3004 = vmatprep.subr.bf16.mxu0 0
      %3005 = vmatpush1.bf16.msra.mxu0 0
      %3006 = vmatprep.subr.bf16.mxu0 0
      %3007 = vmatpush1.bf16.msra.mxu0 0
      %3008 = vmatprep.subr.bf16.mxu0 0
      %3009 = vmatpush1.bf16.msra.mxu0 0
      %3010 = vmatprep.subr.bf16.mxu0 0
      %3011 = vmatpush1.bf16.msra.mxu0 %v2997
      %3012 = vmatprep.subr.bf16.mxu0 0
      %3013 = vmatpush1.bf16.msra.mxu0 %v2996
      %3014 = vmatprep.subr.bf16.mxu0 0
      %3015 = vmatpush1.bf16.msra.mxu0 %v2995
      %3016 = vmatprep.subr.bf16.mxu0 0
      %3017 = vmatpush1.bf16.msra.mxu0 %v2994
      %3018 = vmatprep.subr.bf16.mxu0 0
      %3019 = vmatpush2.bf16.msra.mxu0 0
      %3020 = vmatprep.subr.bf16.mxu0 0
      %3021 = vmatpush2.bf16.msra.mxu0 0
      %3022 = vmatprep.subr.bf16.mxu0 0
      %3023 = vmatpush2.bf16.msra.mxu0 0
      %3024 = vmatprep.subr.bf16.mxu0 0
      %3025 = vmatpush2.bf16.msra.mxu0 0
      %3026 = vmatprep.subr.bf16.mxu0 0
      %3027 = vmatpush2.bf16.msra.mxu0 0
      %3028 = vmatprep.subr.bf16.mxu0 0
      %3029 = vmatpush2.bf16.msra.mxu0 0
      %3030 = vmatprep.subr.bf16.mxu0 0
      %3031 = vmatpush2.bf16.msra.mxu0 0
      %3032 = vmatprep.subr.bf16.mxu0 0
      %3033 = vmatpush2.bf16.msra.mxu0 0
      %3034 = vmatprep.mubr.bf16.mxu0 0
      %3035 = vmatmul.mubr.bf16.gmra.mxu0 %v2776
      %v3036 = vpop.f32.mrf.mxu0
      %v3037 = vadd.f32 0.0, %v3036
      %v3038 = vpop.f32.mrf.mxu0
      %v3039 = vpop.f32.mrf.mxu0
      %v3040 = vadd.f32 0.0, %v3039
      %v3041 = vpop.f32.mrf.mxu0
      %3042 = vdwg.mxu0
      %v3043 = vadd.f32 %v2963, %v3037
      %v3044 = vadd.f32 %v2966, %v3040
      %v3045 = vld [vmem:[%s9] sm:$0xff]
      %v3046 = vld [vmem:[%s9 + $0x8] sm:$0xff]
      %v3047 = vld [vmem:[%s9 + $0x10] sm:$0xff]
      %v3048 = vld [vmem:[%s9 + $0x18] sm:$0xff]
      %s3049 = scalar_lea.vmem %s9, 32
      %v3050 = vld [vmem:[%s3049] sm:$0xff]
      %v3051 = vld [vmem:[%s3049 + $0x8] sm:$0xff]
      %v3052 = vld [vmem:[%s3049 + $0x10] sm:$0xff]
      %v3053 = vld [vmem:[%s3049 + $0x18] sm:$0xff]
      %vm3054 = vcmask 130048
      %v3056 = vsel %vm3054, %v3050, 0
      %v3059 = vsel %vm3054, %v3051, 0
      %v3062 = vsel %vm3054, %v3052, 0
      %v3065 = vsel %vm3054, %v3053, 0
      %3067 = vmatprep.subr.mxu0 0.0
      %3068 = vmatpush1.msra.mxu0 0.0
      %3069 = vmatprep.subr.mxu0 0.0
      %3070 = vmatpush1.msra.mxu0 0.0
      %3071 = vmatprep.subr.mxu0 0.0
      %3072 = vmatpush1.msra.mxu0 0.0
      %3073 = vmatprep.subr.mxu0 0.0
      %3074 = vmatpush1.msra.mxu0 0.0
      %3075 = vmatprep.subr.mxu0 0.0
      %3076 = vmatpush1.msra.mxu0 0.0
      %3077 = vmatprep.subr.mxu0 0.0
      %3078 = vmatpush1.msra.mxu0 0.0
      %3079 = vmatprep.subr.mxu0 0.0
      %3080 = vmatpush1.msra.mxu0 0.0
      %3081 = vmatprep.subr.mxu0 0.0
      %3082 = vmatpush1.msra.mxu0 0.0
      %3083 = vmatprep.subr.mxu0 0.0
      %3084 = vmatpush1.msra.mxu0 0.0
      %3085 = vmatprep.subr.mxu0 0.0
      %3086 = vmatpush1.msra.mxu0 0.0
      %3087 = vmatprep.subr.mxu0 0.0
      %3088 = vmatpush1.msra.mxu0 0.0
      %3089 = vmatprep.subr.mxu0 0.0
      %3090 = vmatpush1.msra.mxu0 0.0
      %3091 = vmatprep.subr.mxu0 0.0
      %3092 = vmatpush1.msra.mxu0 0.0
      %3093 = vmatprep.subr.mxu0 0.0
      %3094 = vmatpush1.msra.mxu0 0.0
      %3095 = vmatprep.subr.mxu0 0.0
      %3096 = vmatpush1.msra.mxu0 %v3044
      %3097 = vmatprep.subr.mxu0 0.0
      %3098 = vmatpush1.msra.mxu0 %v3043
      %3099 = vmatprep.subr.mxu0 0.0
      %3100 = vmatpush2.msra.mxu0 0.0
      %3101 = vmatprep.subr.mxu0 0.0
      %3102 = vmatpush2.msra.mxu0 0.0
      %3103 = vmatprep.subr.mxu0 0.0
      %3104 = vmatpush2.msra.mxu0 0.0
      %3105 = vmatprep.subr.mxu0 0.0
      %3106 = vmatpush2.msra.mxu0 0.0
      %3107 = vmatprep.subr.mxu0 0.0
      %3108 = vmatpush2.msra.mxu0 0.0
      %3109 = vmatprep.subr.mxu0 0.0
      %3110 = vmatpush2.msra.mxu0 0.0
      %3111 = vmatprep.subr.mxu0 0.0
      %3112 = vmatpush2.msra.mxu0 0.0
      %3113 = vmatprep.subr.mxu0 0.0
      %3114 = vmatpush2.msra.mxu0 0.0
      %3115 = vmatprep.subr.mxu0 0.0
      %3116 = vmatpush2.msra.mxu0 0.0
      %3117 = vmatprep.subr.mxu0 0.0
      %3118 = vmatpush2.msra.mxu0 0.0
      %3119 = vmatprep.subr.mxu0 0.0
      %3120 = vmatpush2.msra.mxu0 0.0
      %3121 = vmatprep.subr.mxu0 0.0
      %3122 = vmatpush2.msra.mxu0 0.0
      %3123 = vmatprep.subr.mxu0 0.0
      %3124 = vmatpush2.msra.mxu0 0.0
      %3125 = vmatprep.subr.mxu0 0.0
      %3126 = vmatpush2.msra.mxu0 0.0
      %3127 = vmatprep.subr.mxu0 0.0
      %3128 = vmatpush2.msra.mxu0 0.0
      %3129 = vmatprep.subr.mxu0 0.0
      %3130 = vmatpush2.msra.mxu0 0.0
      %3131 = vmatprep.mubr.f32.mxu0 0.0
      %3132 = vmatmul.mubr.f32.gmra.mxu0 %v3056
      %v3133 = vpop.f32.mrf.mxu0
      %v3134 = vadd.f32 0.0, %v3133
      %v3135 = vpop.f32.mrf.mxu0
      %3136 = vmatprep.mubr.f32.mxu0 0.0
      %3137 = vmatmul.mubr.f32.gmra.mxu0 %v3059
      %v3138 = vpop.f32.mrf.mxu0
      %v3139 = vadd.f32 0.0, %v3138
      %v3140 = vpop.f32.mrf.mxu0
      %3141 = vmatprep.mubr.f32.mxu0 0.0
      %3142 = vmatmul.mubr.f32.gmra.mxu0 %v3062
      %v3143 = vpop.f32.mrf.mxu0
      %v3144 = vadd.f32 0.0, %v3143
      %v3145 = vpop.f32.mrf.mxu0
      %3146 = vmatprep.mubr.f32.mxu0 0.0
      %3147 = vmatmul.mubr.f32.gmra.mxu0 %v3065
      %v3148 = vpop.f32.mrf.mxu0
      %v3149 = vadd.f32 0.0, %v3148
      %v3150 = vpop.f32.mrf.mxu0
      %3151 = vdwg.mxu0
      %v3153 = vsel %vm3054, %v3045, 0
      %v3156 = vsel %vm3054, %v3046, 0
      %v3159 = vsel %vm3054, %v3047, 0
      %v3162 = vsel %vm3054, %v3048, 0
      %3164 = vmatprep.subr.mxu0 0.0
      %3165 = vmatpush1.msra.mxu0 0.0
      %3166 = vmatprep.subr.mxu0 0.0
      %3167 = vmatpush1.msra.mxu0 0.0
      %3168 = vmatprep.subr.mxu0 0.0
      %3169 = vmatpush1.msra.mxu0 0.0
      %3170 = vmatprep.subr.mxu0 0.0
      %3171 = vmatpush1.msra.mxu0 0.0
      %3172 = vmatprep.subr.mxu0 0.0
      %3173 = vmatpush1.msra.mxu0 0.0
      %3174 = vmatprep.subr.mxu0 0.0
      %3175 = vmatpush1.msra.mxu0 0.0
      %3176 = vmatprep.subr.mxu0 0.0
      %3177 = vmatpush1.msra.mxu0 0.0
      %3178 = vmatprep.subr.mxu0 0.0
      %3179 = vmatpush1.msra.mxu0 0.0
      %3180 = vmatprep.subr.mxu0 0.0
      %3181 = vmatpush1.msra.mxu0 0.0
      %3182 = vmatprep.subr.mxu0 0.0
      %3183 = vmatpush1.msra.mxu0 0.0
      %3184 = vmatprep.subr.mxu0 0.0
      %3185 = vmatpush1.msra.mxu0 0.0
      %3186 = vmatprep.subr.mxu0 0.0
      %3187 = vmatpush1.msra.mxu0 0.0
      %3188 = vmatprep.subr.mxu0 0.0
      %3189 = vmatpush1.msra.mxu0 0.0
      %3190 = vmatprep.subr.mxu0 0.0
      %3191 = vmatpush1.msra.mxu0 0.0
      %3192 = vmatprep.subr.mxu0 0.0
      %3193 = vmatpush1.msra.mxu0 %v2820
      %3194 = vmatprep.subr.mxu0 0.0
      %3195 = vmatpush1.msra.mxu0 %v2819
      %3196 = vmatprep.subr.mxu0 0.0
      %3197 = vmatpush2.msra.mxu0 0.0
      %3198 = vmatprep.subr.mxu0 0.0
      %3199 = vmatpush2.msra.mxu0 0.0
      %3200 = vmatprep.subr.mxu0 0.0
      %3201 = vmatpush2.msra.mxu0 0.0
      %3202 = vmatprep.subr.mxu0 0.0
      %3203 = vmatpush2.msra.mxu0 0.0
      %3204 = vmatprep.subr.mxu0 0.0
      %3205 = vmatpush2.msra.mxu0 0.0
      %3206 = vmatprep.subr.mxu0 0.0
      %3207 = vmatpush2.msra.mxu0 0.0
      %3208 = vmatprep.subr.mxu0 0.0
      %3209 = vmatpush2.msra.mxu0 0.0
      %3210 = vmatprep.subr.mxu0 0.0
      %3211 = vmatpush2.msra.mxu0 0.0
      %3212 = vmatprep.subr.mxu0 0.0
      %3213 = vmatpush2.msra.mxu0 0.0
      %3214 = vmatprep.subr.mxu0 0.0
      %3215 = vmatpush2.msra.mxu0 0.0
      %3216 = vmatprep.subr.mxu0 0.0
      %3217 = vmatpush2.msra.mxu0 0.0
      %3218 = vmatprep.subr.mxu0 0.0
      %3219 = vmatpush2.msra.mxu0 0.0
      %3220 = vmatprep.subr.mxu0 0.0
      %3221 = vmatpush2.msra.mxu0 0.0
      %3222 = vmatprep.subr.mxu0 0.0
      %3223 = vmatpush2.msra.mxu0 0.0
      %3224 = vmatprep.subr.mxu0 0.0
      %3225 = vmatpush2.msra.mxu0 0.0
      %3226 = vmatprep.subr.mxu0 0.0
      %3227 = vmatpush2.msra.mxu0 0.0
      %3228 = vmatprep.mubr.f32.mxu0 0.0
      %3229 = vmatmul.mubr.f32.gmra.mxu0 %v3153
      %v3230 = vpop.f32.mrf.mxu0
      %v3231 = vadd.f32 %v3134, %v3230
      %v3232 = vpop.f32.mrf.mxu0
      %3233 = vmatprep.mubr.f32.mxu0 0.0
      %3234 = vmatmul.mubr.f32.gmra.mxu0 %v3156
      %v3235 = vpop.f32.mrf.mxu0
      %v3236 = vadd.f32 %v3139, %v3235
      %v3237 = vpop.f32.mrf.mxu0
      %3238 = vmatprep.mubr.f32.mxu0 0.0
      %3239 = vmatmul.mubr.f32.gmra.mxu0 %v3159
      %v3240 = vpop.f32.mrf.mxu0
      %v3241 = vadd.f32 %v3144, %v3240
      %v3242 = vpop.f32.mrf.mxu0
      %3243 = vmatprep.mubr.f32.mxu0 0.0
      %3244 = vmatmul.mubr.f32.gmra.mxu0 %v3162
      %v3245 = vpop.f32.mrf.mxu0
      %v3246 = vadd.f32 %v3149, %v3245
      %v3247 = vpop.f32.mrf.mxu0
      %3248 = vdwg.mxu0
      %s3249 = scalar_lea.vmem %s6, 4
      %v3250 = vld [vmem:[%s3249] sm:$0x1]
      %v3252 = vlaneseq
      %v3253 = vshrl.u32 %v3252, 7
      %v3254 = vsub.s32 0, %v3253
      %v3255 = vrot.slane %v3250, %v3254
      %v3257 = vadd.f32 %v3231, %v3255
      %v3258 = vadd.f32 %v3236, %v3255
      %v3259 = vadd.f32 %v3241, %v3255
      %v3260 = vadd.f32 %v3246, %v3255
      %v3261 = vadd.f32 %v1119, %v3257
      %v3262 = vadd.f32 %v1120, %v3258
      %v3263 = vadd.f32 %v1121, %v3259
      %v3264 = vadd.f32 %v1122, %v3260
      %s3265 = scalar_lea.vmem %s1, 384
      %v3266 = vld [vmem:[%s3265] sm:$0xf]
      %v3267 = vld [vmem:[%s3265 + $0x4] sm:$0xf]
      %v3268 = vld [vmem:[%s3265 + $0x8] sm:$0xf]
      %v3269 = vld [vmem:[%s3265 + $0xc] sm:$0xf]
      %v3270 = vld [vmem:[%s3265 + $0x10] sm:$0xf]
      %v3271 = vld [vmem:[%s3265 + $0x14] sm:$0xf]
      %v3272 = vld [vmem:[%s3265 + $0x18] sm:$0xf]
      %v3273 = vld [vmem:[%s3265 + $0x1c] sm:$0xf]
      %v3274 = vld [vmem:[%s3265 + $0x20] sm:$0xf]
      %v3275 = vld [vmem:[%s3265 + $0x24] sm:$0xf]
      %v3276 = vld [vmem:[%s3265 + $0x28] sm:$0xf]
      %v3277 = vld [vmem:[%s3265 + $0x2c] sm:$0xf]
      %v3278 = vld [vmem:[%s3265 + $0x30] sm:$0xf]
      %v3279 = vld [vmem:[%s3265 + $0x34] sm:$0xf]
      %v3280 = vld [vmem:[%s3265 + $0x38] sm:$0xf]
      %v3281 = vld [vmem:[%s3265 + $0x3c] sm:$0xf]
      %v3282 = vld [vmem:[%s3265 + $0x40] sm:$0xf]
      %v3283 = vld [vmem:[%s3265 + $0x44] sm:$0xf]
      %v3284 = vld [vmem:[%s3265 + $0x48] sm:$0xf]
      %v3285 = vld [vmem:[%s3265 + $0x4c] sm:$0xf]
      %v3286 = vld [vmem:[%s3265 + $0x50] sm:$0xf]
      %v3287 = vld [vmem:[%s3265 + $0x54] sm:$0xf]
      %v3288 = vld [vmem:[%s3265 + $0x58] sm:$0xf]
      %v3289 = vld [vmem:[%s3265 + $0x5c] sm:$0xf]
      %v3290 = vld [vmem:[%s3265 + $0x60] sm:$0xf]
      %v3291 = vld [vmem:[%s3265 + $0x64] sm:$0xf]
      %v3292 = vld [vmem:[%s3265 + $0x68] sm:$0xf]
      %v3293 = vld [vmem:[%s3265 + $0x6c] sm:$0xf]
      %v3294 = vld [vmem:[%s3265 + $0x70] sm:$0xf]
      %v3295 = vld [vmem:[%s3265 + $0x74] sm:$0xf]
      %v3296 = vld [vmem:[%s3265 + $0x78] sm:$0xf]
      %v3297 = vld [vmem:[%s3265 + $0x7c] sm:$0xf]
      %v3298 = vld [vmem:[%s3265 + $0x80] sm:$0xf]
      %v3299 = vld [vmem:[%s3265 + $0x84] sm:$0xf]
      %v3300 = vld [vmem:[%s3265 + $0x88] sm:$0xf]
      %v3301 = vld [vmem:[%s3265 + $0x8c] sm:$0xf]
      %v3302 = vld [vmem:[%s3265 + $0x90] sm:$0xf]
      %v3303 = vld [vmem:[%s3265 + $0x94] sm:$0xf]
      %v3304 = vld [vmem:[%s3265 + $0x98] sm:$0xf]
      %v3305 = vld [vmem:[%s3265 + $0x9c] sm:$0xf]
      %v3306 = vld [vmem:[%s3265 + $0xa0] sm:$0xf]
      %v3307 = vld [vmem:[%s3265 + $0xa4] sm:$0xf]
      %v3308 = vld [vmem:[%s3265 + $0xa8] sm:$0xf]
      %v3309 = vld [vmem:[%s3265 + $0xac] sm:$0xf]
      %v3310 = vld [vmem:[%s3265 + $0xb0] sm:$0xf]
      %v3311 = vld [vmem:[%s3265 + $0xb4] sm:$0xf]
      %v3312 = vld [vmem:[%s3265 + $0xb8] sm:$0xf]
      %v3313 = vld [vmem:[%s3265 + $0xbc] sm:$0xf]
      %s3314 = scalar_lea.vmem %s6, 2
      %v3315 = vld [vmem:[%s3314] sm:$0x1]
      %v3316 = vrot.slane %v3261, 7
      %v3317 = vrot.slane %v3262, 7
      %v3318 = vrot.slane %v3263, 7
      %v3319 = vrot.slane %v3264, 7
      %v3320 = vsel %vm510, %v3318, %v3319
      %v3321 = vsel %vm510, %v3317, %v3318
      %v3322 = vsel %vm510, %v3316, %v3317
      %v3323 = vsel %vm510, %v3319, %v3316
      %v3324 = vsel %vm421, %v3323, 0.0
      %v3325 = vsel %vm422, %v3322, 0.0
      %v3326 = vsel %vm423, %v3321, 0.0
      %v3327 = vsel %vm424, %v3320, 0.0
      %v3328 = vrot.slane %v3261, 1
      %v3329 = vrot.slane %v3262, 1
      %v3330 = vrot.slane %v3263, 1
      %v3331 = vrot.slane %v3264, 1
      %v3332 = vsel %vm523, %v3330, %v3331
      %v3333 = vsel %vm523, %v3329, %v3330
      %v3334 = vsel %vm523, %v3328, %v3329
      %v3335 = vsel %vm523, %v3331, %v3328
      %v3336 = vsel %vm425, %v3334, 0.0
      %v3337 = vsel %vm426, %v3333, 0.0
      %v3338 = vsel %vm427, %v3332, 0.0
      %v3339 = vsel %vm428, %v3335, 0.0
      %v3340 = vpack.c.bf16 %v3325, %v3324
      %v3341 = vpack.c.bf16 %v3327, %v3326
      %v3342 = vpack.c.bf16 %v3262, %v3261
      %v3343 = vpack.c.bf16 %v3264, %v3263
      %v3344 = vpack.c.bf16 %v3337, %v3336
      %v3345 = vpack.c.bf16 %v3339, %v3338
      %v3347 = vlaneseq
      %v3348 = vshrl.u32 %v3347, 7
      %v3349 = vsub.s32 0, %v3348
      %v3350 = vrot.slane %v3315, %v3349
      %v3400 = vunpack.c.l.b16 %v3266
      %v3401 = vunpack.c.l.b16 %v3267
      %v3402 = vunpack.c.l.b16 %v3268
      %v3403 = vunpack.c.l.b16 %v3269
      %v3404 = vunpack.c.l.b16 %v3270
      %v3405 = vunpack.c.l.b16 %v3271
      %v3406 = vunpack.c.l.b16 %v3272
      %v3407 = vunpack.c.l.b16 %v3273
      %v3408 = vunpack.c.l.b16 %v3274
      %v3409 = vunpack.c.l.b16 %v3275
      %v3410 = vunpack.c.l.b16 %v3276
      %v3411 = vunpack.c.l.b16 %v3277
      %v3412 = vunpack.c.l.b16 %v3278
      %v3413 = vunpack.c.l.b16 %v3279
      %v3414 = vunpack.c.l.b16 %v3280
      %v3415 = vunpack.c.l.b16 %v3281
      %v3416 = vunpack.c.l.b16 %v3282
      %v3417 = vunpack.c.l.b16 %v3283
      %v3418 = vunpack.c.l.b16 %v3284
      %v3419 = vunpack.c.l.b16 %v3285
      %v3420 = vunpack.c.l.b16 %v3286
      %v3421 = vunpack.c.l.b16 %v3287
      %v3422 = vunpack.c.l.b16 %v3288
      %v3423 = vunpack.c.l.b16 %v3289
      %v3424 = vunpack.c.l.b16 %v3290
      %v3425 = vunpack.c.l.b16 %v3291
      %v3426 = vunpack.c.l.b16 %v3292
      %v3427 = vunpack.c.l.b16 %v3293
      %v3428 = vunpack.c.l.b16 %v3294
      %v3429 = vunpack.c.l.b16 %v3295
      %v3430 = vunpack.c.l.b16 %v3296
      %v3431 = vunpack.c.l.b16 %v3297
      %v3432 = vunpack.c.l.b16 %v3298
      %v3433 = vunpack.c.l.b16 %v3299
      %v3434 = vunpack.c.l.b16 %v3300
      %v3435 = vunpack.c.l.b16 %v3301
      %v3436 = vunpack.c.l.b16 %v3302
      %v3437 = vunpack.c.l.b16 %v3303
      %v3438 = vunpack.c.l.b16 %v3304
      %v3439 = vunpack.c.l.b16 %v3305
      %v3440 = vunpack.c.l.b16 %v3306
      %v3441 = vunpack.c.l.b16 %v3307
      %v3442 = vunpack.c.l.b16 %v3308
      %v3443 = vunpack.c.l.b16 %v3309
      %v3444 = vunpack.c.l.b16 %v3310
      %v3445 = vunpack.c.l.b16 %v3311
      %v3446 = vunpack.c.l.b16 %v3312
      %v3447 = vunpack.c.l.b16 %v3313
      %v3448 = vpack.c.b16 %v3401, %v3400
      %v3449 = vpack.c.b16 %v3403, %v3402
      %v3450 = vpack.c.b16 %v3405, %v3404
      %v3451 = vpack.c.b16 %v3407, %v3406
      %v3452 = vpack.c.b16 %v3409, %v3408
      %v3453 = vpack.c.b16 %v3411, %v3410
      %v3454 = vpack.c.b16 %v3413, %v3412
      %v3455 = vpack.c.b16 %v3415, %v3414
      %v3456 = vpack.c.b16 %v3417, %v3416
      %v3457 = vpack.c.b16 %v3419, %v3418
      %v3458 = vpack.c.b16 %v3421, %v3420
      %v3459 = vpack.c.b16 %v3423, %v3422
      %v3460 = vpack.c.b16 %v3425, %v3424
      %v3461 = vpack.c.b16 %v3427, %v3426
      %v3462 = vpack.c.b16 %v3429, %v3428
      %v3463 = vpack.c.b16 %v3431, %v3430
      %v3464 = vpack.c.b16 %v3433, %v3432
      %v3465 = vpack.c.b16 %v3435, %v3434
      %v3466 = vpack.c.b16 %v3437, %v3436
      %v3467 = vpack.c.b16 %v3439, %v3438
      %v3468 = vpack.c.b16 %v3441, %v3440
      %v3469 = vpack.c.b16 %v3443, %v3442
      %v3470 = vpack.c.b16 %v3445, %v3444
      %v3471 = vpack.c.b16 %v3447, %v3446
      %3496 = vmatprep.subr.bf16.mxu0 0
      %3497 = vmatpush1.bf16.msra.mxu0 %v3455
      %3498 = vmatprep.subr.bf16.mxu0 0
      %3499 = vmatpush1.bf16.msra.mxu0 %v3454
      %3500 = vmatprep.subr.bf16.mxu0 0
      %3501 = vmatpush1.bf16.msra.mxu0 %v3453
      %3502 = vmatprep.subr.bf16.mxu0 0
      %3503 = vmatpush1.bf16.msra.mxu0 %v3452
      %3504 = vmatprep.subr.bf16.mxu0 0
      %3505 = vmatpush1.bf16.msra.mxu0 %v3451
      %3506 = vmatprep.subr.bf16.mxu0 0
      %3507 = vmatpush1.bf16.msra.mxu0 %v3450
      %3508 = vmatprep.subr.bf16.mxu0 0
      %3509 = vmatpush1.bf16.msra.mxu0 %v3449
      %3510 = vmatprep.subr.bf16.mxu0 0
      %3511 = vmatpush1.bf16.msra.mxu0 %v3448
      %3512 = vmatprep.subr.bf16.mxu0 0
      %3513 = vmatpush2.bf16.msra.mxu0 %v3463
      %3514 = vmatprep.subr.bf16.mxu0 0
      %3515 = vmatpush2.bf16.msra.mxu0 %v3462
      %3516 = vmatprep.subr.bf16.mxu0 0
      %3517 = vmatpush2.bf16.msra.mxu0 %v3461
      %3518 = vmatprep.subr.bf16.mxu0 0
      %3519 = vmatpush2.bf16.msra.mxu0 %v3460
      %3520 = vmatprep.subr.bf16.mxu0 0
      %3521 = vmatpush2.bf16.msra.mxu0 %v3459
      %3522 = vmatprep.subr.bf16.mxu0 0
      %3523 = vmatpush2.bf16.msra.mxu0 %v3458
      %3524 = vmatprep.subr.bf16.mxu0 0
      %3525 = vmatpush2.bf16.msra.mxu0 %v3457
      %3526 = vmatprep.subr.bf16.mxu0 0
      %3527 = vmatpush2.bf16.msra.mxu0 %v3456
      %3528 = vmatprep.mubr.bf16.mxu0 %v3342
      %3529 = vmatmul.mubr.bf16.gmra.mxu0 %v3340
      %v3530 = vpop.f32.mrf.mxu0
      %v3531 = vadd.f32 %v3350, %v3530
      %v3532 = vpop.f32.mrf.mxu0
      %v3533 = vpop.f32.mrf.mxu0
      %v3534 = vadd.f32 %v3350, %v3533
      %v3535 = vpop.f32.mrf.mxu0
      %3536 = vmatprep.mubr.bf16.mxu0 %v3343
      %3537 = vmatmul.mubr.bf16.gmra.mxu0 %v3341
      %v3538 = vpop.f32.mrf.mxu0
      %v3539 = vadd.f32 %v3350, %v3538
      %v3540 = vpop.f32.mrf.mxu0
      %v3541 = vpop.f32.mrf.mxu0
      %v3542 = vadd.f32 %v3350, %v3541
      %v3543 = vpop.f32.mrf.mxu0
      %3544 = vdwg.mxu0
      %3545 = vmatprep.subr.bf16.mxu0 0
      %3546 = vmatpush1.bf16.msra.mxu0 %v3471
      %3547 = vmatprep.subr.bf16.mxu0 0
      %3548 = vmatpush1.bf16.msra.mxu0 %v3470
      %3549 = vmatprep.subr.bf16.mxu0 0
      %3550 = vmatpush1.bf16.msra.mxu0 %v3469
      %3551 = vmatprep.subr.bf16.mxu0 0
      %3552 = vmatpush1.bf16.msra.mxu0 %v3468
      %3553 = vmatprep.subr.bf16.mxu0 0
      %3554 = vmatpush1.bf16.msra.mxu0 %v3467
      %3555 = vmatprep.subr.bf16.mxu0 0
      %3556 = vmatpush1.bf16.msra.mxu0 %v3466
      %3557 = vmatprep.subr.bf16.mxu0 0
      %3558 = vmatpush1.bf16.msra.mxu0 %v3465
      %3559 = vmatprep.subr.bf16.mxu0 0
      %3560 = vmatpush1.bf16.msra.mxu0 %v3464
      %3561 = vmatprep.subr.bf16.mxu0 0
      %3562 = vmatpush2.bf16.msra.mxu0 0
      %3563 = vmatprep.subr.bf16.mxu0 0
      %3564 = vmatpush2.bf16.msra.mxu0 0
      %3565 = vmatprep.subr.bf16.mxu0 0
      %3566 = vmatpush2.bf16.msra.mxu0 0
      %3567 = vmatprep.subr.bf16.mxu0 0
      %3568 = vmatpush2.bf16.msra.mxu0 0
      %3569 = vmatprep.subr.bf16.mxu0 0
      %3570 = vmatpush2.bf16.msra.mxu0 0
      %3571 = vmatprep.subr.bf16.mxu0 0
      %3572 = vmatpush2.bf16.msra.mxu0 0
      %3573 = vmatprep.subr.bf16.mxu0 0
      %3574 = vmatpush2.bf16.msra.mxu0 0
      %3575 = vmatprep.subr.bf16.mxu0 0
      %3576 = vmatpush2.bf16.msra.mxu0 0
      %3577 = vmatprep.mubr.bf16.mxu0 0
      %3578 = vmatmul.mubr.bf16.gmra.mxu0 %v3344
      %v3579 = vpop.f32.mrf.mxu0
      %v3580 = vadd.f32 %v3531, %v3579
      %v3581 = vpop.f32.mrf.mxu0
      %v3582 = vpop.f32.mrf.mxu0
      %v3583 = vadd.f32 %v3534, %v3582
      %v3584 = vpop.f32.mrf.mxu0
      %3585 = vmatprep.mubr.bf16.mxu0 0
      %3586 = vmatmul.mubr.bf16.gmra.mxu0 %v3345
      %v3587 = vpop.f32.mrf.mxu0
      %v3588 = vadd.f32 %v3539, %v3587
      %v3589 = vpop.f32.mrf.mxu0
      %v3590 = vpop.f32.mrf.mxu0
      %v3591 = vadd.f32 %v3542, %v3590
      %v3592 = vpop.f32.mrf.mxu0
      %3593 = vdwg.mxu0
      %v3594 = vmax.f32 %v3580, 0.0
      %v3595 = vmax.f32 %v3583, 0.0
      %v3596 = vmax.f32 %v3588, 0.0
      %v3597 = vmax.f32 %v3591, 0.0
      %s3598 = scalar_lea.vmem %s1, 576
      %v3599 = vld [vmem:[%s3598] sm:$0xf]
      %v3600 = vld [vmem:[%s3598 + $0x4] sm:$0xf]
      %v3601 = vld [vmem:[%s3598 + $0x8] sm:$0xf]
      %v3602 = vld [vmem:[%s3598 + $0xc] sm:$0xf]
      %v3603 = vld [vmem:[%s3598 + $0x10] sm:$0xf]
      %v3604 = vld [vmem:[%s3598 + $0x14] sm:$0xf]
      %v3605 = vld [vmem:[%s3598 + $0x18] sm:$0xf]
      %v3606 = vld [vmem:[%s3598 + $0x1c] sm:$0xf]
      %v3607 = vld [vmem:[%s3598 + $0x20] sm:$0xf]
      %v3608 = vld [vmem:[%s3598 + $0x24] sm:$0xf]
      %v3609 = vld [vmem:[%s3598 + $0x28] sm:$0xf]
      %v3610 = vld [vmem:[%s3598 + $0x2c] sm:$0xf]
      %v3611 = vld [vmem:[%s3598 + $0x30] sm:$0xf]
      %v3612 = vld [vmem:[%s3598 + $0x34] sm:$0xf]
      %v3613 = vld [vmem:[%s3598 + $0x38] sm:$0xf]
      %v3614 = vld [vmem:[%s3598 + $0x3c] sm:$0xf]
      %v3615 = vld [vmem:[%s3598 + $0x40] sm:$0xf]
      %v3616 = vld [vmem:[%s3598 + $0x44] sm:$0xf]
      %v3617 = vld [vmem:[%s3598 + $0x48] sm:$0xf]
      %v3618 = vld [vmem:[%s3598 + $0x4c] sm:$0xf]
      %v3619 = vld [vmem:[%s3598 + $0x50] sm:$0xf]
      %v3620 = vld [vmem:[%s3598 + $0x54] sm:$0xf]
      %v3621 = vld [vmem:[%s3598 + $0x58] sm:$0xf]
      %v3622 = vld [vmem:[%s3598 + $0x5c] sm:$0xf]
      %v3623 = vld [vmem:[%s3598 + $0x60] sm:$0xf]
      %v3624 = vld [vmem:[%s3598 + $0x64] sm:$0xf]
      %v3625 = vld [vmem:[%s3598 + $0x68] sm:$0xf]
      %v3626 = vld [vmem:[%s3598 + $0x6c] sm:$0xf]
      %v3627 = vld [vmem:[%s3598 + $0x70] sm:$0xf]
      %v3628 = vld [vmem:[%s3598 + $0x74] sm:$0xf]
      %v3629 = vld [vmem:[%s3598 + $0x78] sm:$0xf]
      %v3630 = vld [vmem:[%s3598 + $0x7c] sm:$0xf]
      %v3631 = vld [vmem:[%s3598 + $0x80] sm:$0xf]
      %v3632 = vld [vmem:[%s3598 + $0x84] sm:$0xf]
      %v3633 = vld [vmem:[%s3598 + $0x88] sm:$0xf]
      %v3634 = vld [vmem:[%s3598 + $0x8c] sm:$0xf]
      %v3635 = vld [vmem:[%s3598 + $0x90] sm:$0xf]
      %v3636 = vld [vmem:[%s3598 + $0x94] sm:$0xf]
      %v3637 = vld [vmem:[%s3598 + $0x98] sm:$0xf]
      %v3638 = vld [vmem:[%s3598 + $0x9c] sm:$0xf]
      %v3639 = vld [vmem:[%s3598 + $0xa0] sm:$0xf]
      %v3640 = vld [vmem:[%s3598 + $0xa4] sm:$0xf]
      %v3641 = vld [vmem:[%s3598 + $0xa8] sm:$0xf]
      %v3642 = vld [vmem:[%s3598 + $0xac] sm:$0xf]
      %v3643 = vld [vmem:[%s3598 + $0xb0] sm:$0xf]
      %v3644 = vld [vmem:[%s3598 + $0xb4] sm:$0xf]
      %v3645 = vld [vmem:[%s3598 + $0xb8] sm:$0xf]
      %v3646 = vld [vmem:[%s3598 + $0xbc] sm:$0xf]
      %s3647 = scalar_lea.vmem %s6, 3
      %v3648 = vld [vmem:[%s3647] sm:$0x1]
      %v3649 = vrot.slane %v3594, 7
      %v3650 = vrot.slane %v3595, 7
      %v3651 = vrot.slane %v3596, 7
      %v3652 = vrot.slane %v3597, 7
      %v3653 = vsel %vm510, %v3651, %v3652
      %v3654 = vsel %vm510, %v3650, %v3651
      %v3655 = vsel %vm510, %v3649, %v3650
      %v3656 = vsel %vm510, %v3652, %v3649
      %v3657 = vsel %vm421, %v3656, 0.0
      %v3658 = vsel %vm422, %v3655, 0.0
      %v3659 = vsel %vm423, %v3654, 0.0
      %v3660 = vsel %vm424, %v3653, 0.0
      %v3661 = vrot.slane %v3594, 1
      %v3662 = vrot.slane %v3595, 1
      %v3663 = vrot.slane %v3596, 1
      %v3664 = vrot.slane %v3597, 1
      %v3665 = vsel %vm523, %v3663, %v3664
      %v3666 = vsel %vm523, %v3662, %v3663
      %v3667 = vsel %vm523, %v3661, %v3662
      %v3668 = vsel %vm523, %v3664, %v3661
      %v3669 = vsel %vm425, %v3667, 0.0
      %v3670 = vsel %vm426, %v3666, 0.0
      %v3671 = vsel %vm427, %v3665, 0.0
      %v3672 = vsel %vm428, %v3668, 0.0
      %v3673 = vpack.c.bf16 %v3658, %v3657
      %v3674 = vpack.c.bf16 %v3660, %v3659
      %v3675 = vpack.c.bf16 %v3595, %v3594
      %v3676 = vpack.c.bf16 %v3597, %v3596
      %v3677 = vpack.c.bf16 %v3670, %v3669
      %v3678 = vpack.c.bf16 %v3672, %v3671
      %v3680 = vlaneseq
      %v3681 = vshrl.u32 %v3680, 7
      %v3682 = vsub.s32 0, %v3681
      %v3683 = vrot.slane %v3648, %v3682
      %v3733 = vunpack.c.l.b16 %v3599
      %v3734 = vunpack.c.l.b16 %v3600
      %v3735 = vunpack.c.l.b16 %v3601
      %v3736 = vunpack.c.l.b16 %v3602
      %v3737 = vunpack.c.l.b16 %v3603
      %v3738 = vunpack.c.l.b16 %v3604
      %v3739 = vunpack.c.l.b16 %v3605
      %v3740 = vunpack.c.l.b16 %v3606
      %v3741 = vunpack.c.l.b16 %v3607
      %v3742 = vunpack.c.l.b16 %v3608
      %v3743 = vunpack.c.l.b16 %v3609
      %v3744 = vunpack.c.l.b16 %v3610
      %v3745 = vunpack.c.l.b16 %v3611
      %v3746 = vunpack.c.l.b16 %v3612
      %v3747 = vunpack.c.l.b16 %v3613
      %v3748 = vunpack.c.l.b16 %v3614
      %v3749 = vunpack.c.l.b16 %v3615
      %v3750 = vunpack.c.l.b16 %v3616
      %v3751 = vunpack.c.l.b16 %v3617
      %v3752 = vunpack.c.l.b16 %v3618
      %v3753 = vunpack.c.l.b16 %v3619
      %v3754 = vunpack.c.l.b16 %v3620
      %v3755 = vunpack.c.l.b16 %v3621
      %v3756 = vunpack.c.l.b16 %v3622
      %v3757 = vunpack.c.l.b16 %v3623
      %v3758 = vunpack.c.l.b16 %v3624
      %v3759 = vunpack.c.l.b16 %v3625
      %v3760 = vunpack.c.l.b16 %v3626
      %v3761 = vunpack.c.l.b16 %v3627
      %v3762 = vunpack.c.l.b16 %v3628
      %v3763 = vunpack.c.l.b16 %v3629
      %v3764 = vunpack.c.l.b16 %v3630
      %v3765 = vunpack.c.l.b16 %v3631
      %v3766 = vunpack.c.l.b16 %v3632
      %v3767 = vunpack.c.l.b16 %v3633
      %v3768 = vunpack.c.l.b16 %v3634
      %v3769 = vunpack.c.l.b16 %v3635
      %v3770 = vunpack.c.l.b16 %v3636
      %v3771 = vunpack.c.l.b16 %v3637
      %v3772 = vunpack.c.l.b16 %v3638
      %v3773 = vunpack.c.l.b16 %v3639
      %v3774 = vunpack.c.l.b16 %v3640
      %v3775 = vunpack.c.l.b16 %v3641
      %v3776 = vunpack.c.l.b16 %v3642
      %v3777 = vunpack.c.l.b16 %v3643
      %v3778 = vunpack.c.l.b16 %v3644
      %v3779 = vunpack.c.l.b16 %v3645
      %v3780 = vunpack.c.l.b16 %v3646
      %v3781 = vpack.c.b16 %v3734, %v3733
      %v3782 = vpack.c.b16 %v3736, %v3735
      %v3783 = vpack.c.b16 %v3738, %v3737
      %v3784 = vpack.c.b16 %v3740, %v3739
      %v3785 = vpack.c.b16 %v3742, %v3741
      %v3786 = vpack.c.b16 %v3744, %v3743
      %v3787 = vpack.c.b16 %v3746, %v3745
      %v3788 = vpack.c.b16 %v3748, %v3747
      %v3789 = vpack.c.b16 %v3750, %v3749
      %v3790 = vpack.c.b16 %v3752, %v3751
      %v3791 = vpack.c.b16 %v3754, %v3753
      %v3792 = vpack.c.b16 %v3756, %v3755
      %v3793 = vpack.c.b16 %v3758, %v3757
      %v3794 = vpack.c.b16 %v3760, %v3759
      %v3795 = vpack.c.b16 %v3762, %v3761
      %v3796 = vpack.c.b16 %v3764, %v3763
      %v3797 = vpack.c.b16 %v3766, %v3765
      %v3798 = vpack.c.b16 %v3768, %v3767
      %v3799 = vpack.c.b16 %v3770, %v3769
      %v3800 = vpack.c.b16 %v3772, %v3771
      %v3801 = vpack.c.b16 %v3774, %v3773
      %v3802 = vpack.c.b16 %v3776, %v3775
      %v3803 = vpack.c.b16 %v3778, %v3777
      %v3804 = vpack.c.b16 %v3780, %v3779
      %3829 = vmatprep.subr.bf16.mxu0 0
      %3830 = vmatpush1.bf16.msra.mxu0 %v3788
      %3831 = vmatprep.subr.bf16.mxu0 0
      %3832 = vmatpush1.bf16.msra.mxu0 %v3787
      %3833 = vmatprep.subr.bf16.mxu0 0
      %3834 = vmatpush1.bf16.msra.mxu0 %v3786
      %3835 = vmatprep.subr.bf16.mxu0 0
      %3836 = vmatpush1.bf16.msra.mxu0 %v3785
      %3837 = vmatprep.subr.bf16.mxu0 0
      %3838 = vmatpush1.bf16.msra.mxu0 %v3784
      %3839 = vmatprep.subr.bf16.mxu0 0
      %3840 = vmatpush1.bf16.msra.mxu0 %v3783
      %3841 = vmatprep.subr.bf16.mxu0 0
      %3842 = vmatpush1.bf16.msra.mxu0 %v3782
      %3843 = vmatprep.subr.bf16.mxu0 0
      %3844 = vmatpush1.bf16.msra.mxu0 %v3781
      %3845 = vmatprep.subr.bf16.mxu0 0
      %3846 = vmatpush2.bf16.msra.mxu0 %v3796
      %3847 = vmatprep.subr.bf16.mxu0 0
      %3848 = vmatpush2.bf16.msra.mxu0 %v3795
      %3849 = vmatprep.subr.bf16.mxu0 0
      %3850 = vmatpush2.bf16.msra.mxu0 %v3794
      %3851 = vmatprep.subr.bf16.mxu0 0
      %3852 = vmatpush2.bf16.msra.mxu0 %v3793
      %3853 = vmatprep.subr.bf16.mxu0 0
      %3854 = vmatpush2.bf16.msra.mxu0 %v3792
      %3855 = vmatprep.subr.bf16.mxu0 0
      %3856 = vmatpush2.bf16.msra.mxu0 %v3791
      %3857 = vmatprep.subr.bf16.mxu0 0
      %3858 = vmatpush2.bf16.msra.mxu0 %v3790
      %3859 = vmatprep.subr.bf16.mxu0 0
      %3860 = vmatpush2.bf16.msra.mxu0 %v3789
      %3861 = vmatprep.mubr.bf16.mxu0 %v3675
      %3862 = vmatmul.mubr.bf16.gmra.mxu0 %v3673
      %v3863 = vpop.f32.mrf.mxu0
      %v3864 = vadd.f32 %v3683, %v3863
      %v3865 = vpop.f32.mrf.mxu0
      %v3866 = vpop.f32.mrf.mxu0
      %v3867 = vadd.f32 %v3683, %v3866
      %v3868 = vpop.f32.mrf.mxu0
      %3869 = vmatprep.mubr.bf16.mxu0 %v3676
      %3870 = vmatmul.mubr.bf16.gmra.mxu0 %v3674
      %v3871 = vpop.f32.mrf.mxu0
      %v3872 = vadd.f32 %v3683, %v3871
      %v3873 = vpop.f32.mrf.mxu0
      %v3874 = vpop.f32.mrf.mxu0
      %v3875 = vadd.f32 %v3683, %v3874
      %v3876 = vpop.f32.mrf.mxu0
      %3877 = vdwg.mxu0
      %3878 = vmatprep.subr.bf16.mxu0 0
      %3879 = vmatpush1.bf16.msra.mxu0 %v3804
      %3880 = vmatprep.subr.bf16.mxu0 0
      %3881 = vmatpush1.bf16.msra.mxu0 %v3803
      %3882 = vmatprep.subr.bf16.mxu0 0
      %3883 = vmatpush1.bf16.msra.mxu0 %v3802
      %3884 = vmatprep.subr.bf16.mxu0 0
      %3885 = vmatpush1.bf16.msra.mxu0 %v3801
      %3886 = vmatprep.subr.bf16.mxu0 0
      %3887 = vmatpush1.bf16.msra.mxu0 %v3800
      %3888 = vmatprep.subr.bf16.mxu0 0
      %3889 = vmatpush1.bf16.msra.mxu0 %v3799
      %3890 = vmatprep.subr.bf16.mxu0 0
      %3891 = vmatpush1.bf16.msra.mxu0 %v3798
      %3892 = vmatprep.subr.bf16.mxu0 0
      %3893 = vmatpush1.bf16.msra.mxu0 %v3797
      %3894 = vmatprep.subr.bf16.mxu0 0
      %3895 = vmatpush2.bf16.msra.mxu0 0
      %3896 = vmatprep.subr.bf16.mxu0 0
      %3897 = vmatpush2.bf16.msra.mxu0 0
      %3898 = vmatprep.subr.bf16.mxu0 0
      %3899 = vmatpush2.bf16.msra.mxu0 0
      %3900 = vmatprep.subr.bf16.mxu0 0
      %3901 = vmatpush2.bf16.msra.mxu0 0
      %3902 = vmatprep.subr.bf16.mxu0 0
      %3903 = vmatpush2.bf16.msra.mxu0 0
      %3904 = vmatprep.subr.bf16.mxu0 0
      %3905 = vmatpush2.bf16.msra.mxu0 0
      %3906 = vmatprep.subr.bf16.mxu0 0
      %3907 = vmatpush2.bf16.msra.mxu0 0
      %3908 = vmatprep.subr.bf16.mxu0 0
      %3909 = vmatpush2.bf16.msra.mxu0 0
      %3910 = vmatprep.mubr.bf16.mxu0 0
      %3911 = vmatmul.mubr.bf16.gmra.mxu0 %v3677
      %v3912 = vpop.f32.mrf.mxu0
      %v3913 = vadd.f32 %v3864, %v3912
      %v3914 = vpop.f32.mrf.mxu0
      %v3915 = vpop.f32.mrf.mxu0
      %v3916 = vadd.f32 %v3867, %v3915
      %v3917 = vpop.f32.mrf.mxu0
      %3918 = vmatprep.mubr.bf16.mxu0 0
      %3919 = vmatmul.mubr.bf16.gmra.mxu0 %v3678
      %v3920 = vpop.f32.mrf.mxu0
      %v3921 = vadd.f32 %v3872, %v3920
      %v3922 = vpop.f32.mrf.mxu0
      %v3923 = vpop.f32.mrf.mxu0
      %v3924 = vadd.f32 %v3875, %v3923
      %v3925 = vpop.f32.mrf.mxu0
      %3926 = vdwg.mxu0
      %v3927 = vadd.f32 %v3913, %v3261
      %v3928 = vadd.f32 %v3916, %v3262
      %v3929 = vadd.f32 %v3921, %v3263
      %v3930 = vadd.f32 %v3924, %v3264
      %v3931 = vld [vmem:[%s5] sm:$0xff]
      %v3932 = vld [vmem:[%s5 + $0x8] sm:$0xff]
      %v3933 = vld [vmem:[%s5 + $0x10] sm:$0xff]
      %v3934 = vld [vmem:[%s5 + $0x18] sm:$0xff]
      %v3935 = vld [vmem:[%s5 + $0x20] sm:$0xff]
      %v3936 = vld [vmem:[%s5 + $0x28] sm:$0xff]
      %v3937 = vld [vmem:[%s5 + $0x30] sm:$0xff]
      %v3938 = vld [vmem:[%s5 + $0x38] sm:$0xff]
      %v3939 = vld [vmem:[%s5 + $0x40] sm:$0xff]
      %v3940 = vld [vmem:[%s5 + $0x48] sm:$0xff]
      %v3941 = vld [vmem:[%s5 + $0x50] sm:$0xff]
      %v3942 = vld [vmem:[%s5 + $0x58] sm:$0xff]
      %v3943 = vld [vmem:[%s5 + $0x60] sm:$0xff]
      %v3944 = vld [vmem:[%s5 + $0x68] sm:$0xff]
      %v3945 = vld [vmem:[%s5 + $0x70] sm:$0xff]
      %v3946 = vld [vmem:[%s5 + $0x78] sm:$0xff]
      %s3947 = scalar_lea.vmem %s6, 5
      %v3948 = vld [vmem:[%s3947] sm:$0x1]
      %v3950 = vlaneseq
      %v3951 = vshrl.u32 %v3950, 7
      %v3952 = vsub.s32 0, %v3951
      %v3953 = vrot.slane %v3948, %v3952
      %3955 = vmatprep.subr.mxu0 0.0
      %3956 = vmatpush1.msra.mxu0 %v3946
      %3957 = vmatprep.subr.mxu0 0.0
      %3958 = vmatpush1.msra.mxu0 %v3945
      %3959 = vmatprep.subr.mxu0 0.0
      %3960 = vmatpush1.msra.mxu0 %v3944
      %3961 = vmatprep.subr.mxu0 0.0
      %3962 = vmatpush1.msra.mxu0 %v3943
      %3963 = vmatprep.subr.mxu0 0.0
      %3964 = vmatpush1.msra.mxu0 %v3942
      %3965 = vmatprep.subr.mxu0 0.0
      %3966 = vmatpush1.msra.mxu0 %v3941
      %3967 = vmatprep.subr.mxu0 0.0
      %3968 = vmatpush1.msra.mxu0 %v3940
      %3969 = vmatprep.subr.mxu0 0.0
      %3970 = vmatpush1.msra.mxu0 %v3939
      %3971 = vmatprep.subr.mxu0 0.0
      %3972 = vmatpush1.msra.mxu0 %v3938
      %3973 = vmatprep.subr.mxu0 0.0
      %3974 = vmatpush1.msra.mxu0 %v3937
      %3975 = vmatprep.subr.mxu0 0.0
      %3976 = vmatpush1.msra.mxu0 %v3936
      %3977 = vmatprep.subr.mxu0 0.0
      %3978 = vmatpush1.msra.mxu0 %v3935
      %3979 = vmatprep.subr.mxu0 0.0
      %3980 = vmatpush1.msra.mxu0 %v3934
      %3981 = vmatprep.subr.mxu0 0.0
      %3982 = vmatpush1.msra.mxu0 %v3933
      %3983 = vmatprep.subr.mxu0 0.0
      %3984 = vmatpush1.msra.mxu0 %v3932
      %3985 = vmatprep.subr.mxu0 0.0
      %3986 = vmatpush1.msra.mxu0 %v3931
      %3987 = vmatprep.subr.mxu0 0.0
      %3988 = vmatpush2.msra.mxu0 0.0
      %3989 = vmatprep.subr.mxu0 0.0
      %3990 = vmatpush2.msra.mxu0 0.0
      %3991 = vmatprep.subr.mxu0 0.0
      %3992 = vmatpush2.msra.mxu0 0.0
      %3993 = vmatprep.subr.mxu0 0.0
      %3994 = vmatpush2.msra.mxu0 0.0
      %3995 = vmatprep.subr.mxu0 0.0
      %3996 = vmatpush2.msra.mxu0 0.0
      %3997 = vmatprep.subr.mxu0 0.0
      %3998 = vmatpush2.msra.mxu0 0.0
      %3999 = vmatprep.subr.mxu0 0.0
      %4000 = vmatpush2.msra.mxu0 0.0
      %4001 = vmatprep.subr.mxu0 0.0
      %4002 = vmatpush2.msra.mxu0 0.0
      %4003 = vmatprep.subr.mxu0 0.0
      %4004 = vmatpush2.msra.mxu0 0.0
      %4005 = vmatprep.subr.mxu0 0.0
      %4006 = vmatpush2.msra.mxu0 0.0
      %4007 = vmatprep.subr.mxu0 0.0
      %4008 = vmatpush2.msra.mxu0 0.0
      %4009 = vmatprep.subr.mxu0 0.0
      %4010 = vmatpush2.msra.mxu0 0.0
      %4011 = vmatprep.subr.mxu0 0.0
      %4012 = vmatpush2.msra.mxu0 0.0
      %4013 = vmatprep.subr.mxu0 0.0
      %4014 = vmatpush2.msra.mxu0 0.0
      %4015 = vmatprep.subr.mxu0 0.0
      %4016 = vmatpush2.msra.mxu0 0.0
      %4017 = vmatprep.subr.mxu0 0.0
      %4018 = vmatpush2.msra.mxu0 0.0
      %4019 = vmatprep.mubr.f32.mxu0 0.0
      %4020 = vmatmul.mubr.f32.gmra.mxu0 %v3927
      %v4021 = vpop.f32.mrf.mxu0
      %v4022 = vadd.f32 %v3953, %v4021
      %v4023 = vpop.f32.mrf.mxu0
      %4024 = vmatprep.mubr.f32.mxu0 0.0
      %4025 = vmatmul.mubr.f32.gmra.mxu0 %v3928
      %v4026 = vpop.f32.mrf.mxu0
      %v4027 = vadd.f32 %v3953, %v4026
      %v4028 = vpop.f32.mrf.mxu0
      %4029 = vmatprep.mubr.f32.mxu0 0.0
      %4030 = vmatmul.mubr.f32.gmra.mxu0 %v3929
      %v4031 = vpop.f32.mrf.mxu0
      %v4032 = vadd.f32 %v3953, %v4031
      %v4033 = vpop.f32.mrf.mxu0
      %4034 = vmatprep.mubr.f32.mxu0 0.0
      %4035 = vmatmul.mubr.f32.gmra.mxu0 %v3930
      %v4036 = vpop.f32.mrf.mxu0
      %v4037 = vadd.f32 %v3953, %v4036
      %v4038 = vpop.f32.mrf.mxu0
      %4039 = vdwg.mxu0
      %v4040 = vsub.f32 0.0, %v4022
      %v4041 = vsub.f32 0.0, %v4027
      %v4042 = vsub.f32 0.0, %v4032
      %v4043 = vsub.f32 0.0, %v4037
      %v4044 = vmul.f32 %v4040, 1.442695
      %v4045 = vpow.pop %v4044
      %v4046 = vmul.f32 %v4041, 1.442695
      %v4047 = vpow.pop %v4046
      %v4048 = vmul.f32 %v4042, 1.442695
      %v4049 = vpow.pop %v4048
      %v4050 = vmul.f32 %v4043, 1.442695
      %v4051 = vpow.pop %v4050
      %v4052 = vadd.f32 %v4045, 1.0
      %v4053 = vadd.f32 %v4047, 1.0
      %v4054 = vadd.f32 %v4049, 1.0
      %v4055 = vadd.f32 %v4051, 1.0
      %v4056 = vrcp.pop %v4052
      %v4057 = vrcp.pop %v4053
      %v4058 = vrcp.pop %v4054
      %v4059 = vrcp.pop %v4055
      %4060 = vst [vmem:[%s361] sm:$0xff] %v4056
      %4061 = vst [vmem:[%s361 + $0x8] sm:$0xff] %v4057
      %4062 = vst [vmem:[%s361 + $0x10] sm:$0xff] %v4058
      %4063 = vst [vmem:[%s361 + $0x18] sm:$0xff] %v4059
      %s4064 = smul.u32 4, %s21
      %p4065 = scmp.lt.s32.totalorder %s4064, 7
      %s4066 = scalar_select %p4065, %s4064, 7
      %s4067 = smul.addr %s4066, 8
      %s4068 = scalar_lea.vmem %s10, %s4067
      // Predicated region
      $region61: #{mask_branch_down_up.1} parent=59 // pred_check
        %p4069 = pneg %p254
      $region62: #{mask_branch_down_up.1} parent=59 // pred_check_branch
        %4071 = sbr.rel (%p4069) target = $region64
      $region63: #{mask_branch_down_up.1} parent=59 // pred_region
        %s4072 = smul.u32 4, %s21
      $region64: #{mask_branch_down_up.1} parent=59 // pred_fallthru
        _
    $region60: #{mask_branch_down_up.1} parent=5 // pred_fallthru
      _
    %p4073 = scmp.le.s32.totalorder 2, %s16
    // Predicated region
    $region65: #{mask_branch_down_up.1} parent=5 // pred_check
      %p4074 = pneg %p4073
    $region66: #{mask_branch_down_up.1} parent=5 // pred_check_branch
      %4076 = sbr.rel (%p4074) target = $region68
    $region67: #{mask_branch_down_up.1} parent=5 // pred_region
      %s4077 = ssub.s32 %s16, 2
      // Predicated region
      $region69: #{mask_branch_down_up.1} parent=67 // pred_check
        %p4078 = pneg %p260
      $region70: #{mask_branch_down_up.1} parent=67 // pred_check_branch
        %4080 = sbr.rel (%p4078) target = $region72
      $region71: #{mask_branch_down_up.1} parent=67 // pred_region
        %s4081 = smul.u32 4, %s22
        %p4082 = scmp.lt.s32.totalorder %s4081, 7
        %s4083 = scalar_select %p4082, %s4081, 7
        %s4084 = smul.addr %s4083, 8
        %s4085 = scalar_lea.vmem %s10, %s4084
      $region72: #{mask_branch_down_up.1} parent=67 // pred_fallthru
        _
    $region68: #{mask_branch_down_up.1} parent=5 // pred_fallthru
      _
  $region6: #{mask_branch_down_up.1} parent=0 // loop_footer
    %s20 = sadd.s32 1, %s16
  $region7: #{mask_branch_down_up.1} parent=0 // loop_footer_branch
    %15 = sbr.rel target = $region3
  $region8: #{mask_branch_down_up.1} parent=0 // loop_exit
    _

</llo_original>
